<compile_context>
chip_gen: v5e
topology: v5e:2x2
jax: 0.10.0
libtpu: 0.0.40
codegen_flags: <defaults>
</compile_context>

<pallas_src>
import functools
import jax
import jax.numpy as jnp
from jax.experimental import pallas as pl
from jax.experimental.pallas import tpu as pltpu


def _round_up(x, m):
    return ((x + m - 1) // m) * m


def _pick_time_block(T, B, G, C, H, max_rows=512, block_budget=24 * 1024 * 1024):
    """Largest divisor of T whose pipelined block state fits the VMEM budget and
    whose (tblk*B) MLP row count stays modest (keeps layer-2 intermediates small).
    Alignment: out block rows (tblk*B) must be a multiple of 8 unless tblk == T."""
    per_t = B * ((G + 1 + C) * 4 * 2 + H * 4)   # gx/mask/out double-buffered + feat scratch
    valid = [c for c in range(1, T + 1)
             if T % c == 0 and (c == T or (c * B) % 8 == 0)]
    good = [c for c in valid if c * B <= max(max_rows, B) and c * per_t <= block_budget]
    return max(good) if good else min(valid)


# --------------------- fused masked-LSTM + two-head MLP kernel ----------------
# gx_ref  : (tblk, B, 4H) f32   precomputed x @ W_ih + (b_ih + b_hh), time-major
# m_ref   : (tblk, B, 1)  f32   masks (0 => reset episode before the step)
# h0/c0   : (B, H)        f32   initial state
# whh_ref : (H, 4H)       bf16  recurrent weight (transposed), resident
# aw1/cw1 : (H, 512)      bf16  actor / critic layer-1 weights, resident
# ab1/cb1 : (1, 512)      f32   layer-1 biases
# aw2/cw2 : (512, 512)    bf16  layer-2 weights
# ab2/cb2 : (1, 512)      f32   layer-2 biases
# aw3/cw3 : (512, C)      bf16  layer-3 weights, zero-padded lane-dense (C >= 128)
# b3_ref  : (1, C)        f32   combined layer-3 bias
# out_ref : (tblk*B, C)   f32   combined actor|critic slab, rows in (t, b) order
# hout/cout: (B, H)       f32   final state (written on the last grid step)
# h_sc/c_sc: (B, H)       f32   state carried across time blocks (VMEM scratch)
# feat_sc : (tblk, B, H)  f32   per-step hidden states within the block

def _fused_kernel(gx_ref, m_ref, h0_ref, c0_ref, whh_ref,
                  aw1_ref, cw1_ref, ab1_ref, cb1_ref,
                  aw2_ref, cw2_ref, ab2_ref, cb2_ref,
                  aw3_ref, cw3_ref, b3_ref,
                  out_ref, hout_ref, cout_ref,
                  h_sc, c_sc, feat_sc):
    tb = pl.program_id(0)

    @pl.when(tb == 0)
    def _():
        h_sc[...] = h0_ref[...]
        c_sc[...] = c0_ref[...]

    H = h0_ref.shape[-1]
    tblk, B = feat_sc.shape[0], feat_sc.shape[1]
    whh = whh_ref[...]                            # bf16, hoisted out of the serial loop

    def step(i, carry):
        h, c = carry                              # f32 carried state
        m = m_ref[i]                              # (B, 1); 0 => reset episode
        h = h * m
        c = c * m
        # bf16 MXU operands, f32 accumulation (serial critical path).
        gates = gx_ref[i] + jnp.dot(h.astype(jnp.bfloat16), whh,
                                    preferred_element_type=jnp.float32)
        # Activate on 128-lane-aligned halves, then split (PyTorch order i,f,g,o).
        s_if = jax.nn.sigmoid(gates[:, :2 * H])   # lanes [0,128): [i | f]
        go = gates[:, 2 * H:]                     # lanes [128,256): [g | o]
        i_g = s_if[:, :H]
        f_g = s_if[:, H:]
        g_g = jnp.tanh(go[:, :H])
        o_g = jax.nn.sigmoid(go[:, H:])
        c_new = f_g * c + i_g * g_g
        h_new = o_g * jnp.tanh(c_new)
        feat_sc[i] = h_new                        # VMEM scratch, never hits HBM
        return h_new, c_new

    unroll = tblk if tblk <= 8 else 8
    h_fin, c_fin = jax.lax.fori_loop(0, tblk, step, (h_sc[...], c_sc[...]),
                                     unroll=unroll)
    h_sc[...] = h_fin
    c_sc[...] = c_fin

    @pl.when(tb == pl.num_programs(0) - 1)
    def _():
        hout_ref[...] = h_fin
        cout_ref[...] = c_fin

    # ---- fused two-head MLP on the block's (tblk*B, H) feature slab ----------
    # Off the recurrence critical path; bf16 matmul operands, f32 accumulation,
    # f32 tanh (v5e has no bf16 VPU/EUP).  Layer 1 split per head (no (rows,1024)
    # intermediate).  Combined layer-3 output is one lane-dense store.
    x = feat_sc[...].reshape(tblk * B, H).astype(jnp.bfloat16)
    a1 = jnp.tanh(jnp.dot(x, aw1_ref[...],
                          preferred_element_type=jnp.float32) + ab1_ref[...])
    c1 = jnp.tanh(jnp.dot(x, cw1_ref[...],
                          preferred_element_type=jnp.float32) + cb1_ref[...])
    a2 = jnp.tanh(jnp.dot(a1.astype(jnp.bfloat16), aw2_ref[...],
                          preferred_element_type=jnp.float32) + ab2_ref[...])
    c2 = jnp.tanh(jnp.dot(c1.astype(jnp.bfloat16), cw2_ref[...],
                          preferred_element_type=jnp.float32) + cb2_ref[...])
    out_ref[...] = (jnp.dot(a2.astype(jnp.bfloat16), aw3_ref[...],
                            preferred_element_type=jnp.float32)
                    + jnp.dot(c2.astype(jnp.bfloat16), cw3_ref[...],
                              preferred_element_type=jnp.float32)
                    + b3_ref[...])


def fused_lstm_mlp(gx_tm, m_tm, h0, c0, whh_t, heads, time_block=None):
    """gx_tm: [T,B,4H] f32, m_tm: [T,B,1] f32, h0/c0: [B,H] f32, whh_t: [H,4H] bf16.
    heads: (aw1, cw1, ab1, cb1, aw2, cw2, ab2, cb2, aw3p, cw3p, b3c).
    Returns (out [T*B, C] f32 in (t,b) row order, h_final [B,H], c_final [B,H])."""
    T, B, G = gx_tm.shape
    H = h0.shape[-1]
    C = heads[-1].shape[-1]
    tblk = time_block or _pick_time_block(T, B, G, C, H)

    resident = lambda arr: pl.BlockSpec(arr.shape, lambda t: (0, 0))  # all 2-D

    return pl.pallas_call(
        _fused_kernel,
        out_shape=(
            jax.ShapeDtypeStruct((T * B, C), jnp.float32),   # combined actor|critic slab
            jax.ShapeDtypeStruct((B, H), jnp.float32),       # final h
            jax.ShapeDtypeStruct((B, H), jnp.float32),       # final c
        ),
        grid_spec=pltpu.PrefetchScalarGridSpec(
            num_scalar_prefetch=0,
            grid=(T // tblk,),
            in_specs=[
                pl.BlockSpec((tblk, B, G), lambda t: (t, 0, 0)),   # gates_x block
                pl.BlockSpec((tblk, B, 1), lambda t: (t, 0, 0)),   # mask block
                resident(h0), resident(c0), resident(whh_t),
            ] + [resident(w) for w in heads],
            out_specs=[
                pl.BlockSpec((tblk * B, C), lambda t: (t, 0)),     # lane-dense output rows
                pl.BlockSpec((B, H), lambda t: (0, 0)),
                pl.BlockSpec((B, H), lambda t: (0, 0)),
            ],
            scratch_shapes=[
                pltpu.VMEM((B, H), jnp.float32),          # h carry
                pltpu.VMEM((B, H), jnp.float32),          # c carry
                pltpu.VMEM((tblk, B, H), jnp.float32),    # per-step hidden states
            ],
        ),
        compiler_params=pltpu.CompilerParams(
            dimension_semantics=("arbitrary",),           # sequential recurrence over time
            vmem_limit_bytes=48 * 1024 * 1024),
    )(gx_tm, m_tm, h0, c0, whh_t, *heads)


# --------------------------- parameter init -----------------------------------

def orthogonal(key, rows, cols, gain):
    """PyTorch-style orthogonal init for a (rows, cols) Linear weight."""
    n, m = (rows, cols) if rows >= cols else (cols, rows)
    a = jax.random.normal(key, (n, m), dtype=jnp.float32)
    q, r = jnp.linalg.qr(a)
    q = q * jnp.sign(jnp.diagonal(r))[None, :]
    if rows < cols:
        q = q.T
    return (gain * q[:rows, :cols]).astype(jnp.float32)


def init_params(key, input_size, output_size, lstm_hidden=64, mlp_hidden=512):
    keys = jax.random.split(key, 10)
    tanh_gain = 5.0 / 3.0

    # LSTM (PyTorch default: uniform(-k, k), k = 1/sqrt(hidden))
    k = 1.0 / jnp.sqrt(jnp.float32(lstm_hidden))
    u = lambda kk, shp: jax.random.uniform(kk, shp, jnp.float32, -k, k)
    wih = u(keys[0], (4 * lstm_hidden, input_size))
    whh = u(keys[1], (4 * lstm_hidden, lstm_hidden))
    bih = u(keys[2], (4 * lstm_hidden,))
    bhh = u(keys[3], (4 * lstm_hidden,))
    lstm = dict(wih_t=wih.T,                                        # f32, used by XLA einsum
                whh_t=whh.T.astype(jnp.bfloat16),                   # bf16 MXU operand
                bias=(bih + bhh).reshape(1, 4 * lstm_hidden))

    def linear_t(kk, in_f, out_f, gain):
        return orthogonal(kk, out_f, in_f, gain).T                  # (in, out); biases zero

    aw1 = linear_t(keys[4], lstm_hidden, mlp_hidden, tanh_gain)
    aw2 = linear_t(keys[5], mlp_hidden, mlp_hidden, tanh_gain)
    aw3 = linear_t(keys[6], mlp_hidden, output_size, 0.01)
    cw1 = linear_t(keys[7], lstm_hidden, mlp_hidden, tanh_gain)
    cw2 = linear_t(keys[8], mlp_hidden, mlp_hidden, tanh_gain)
    cw3 = linear_t(keys[9], mlp_hidden, 1, 1.0)

    # Pack head params for the fused kernel: bf16 weights, f32 biases (zeros),
    # layer-3 zero-padded into lane-dense (512, C) slabs -> combined actor|critic output.
    C = max(128, _round_up(output_size + 1, 128))
    bf = jnp.bfloat16
    ab1 = jnp.zeros((1, mlp_hidden), jnp.float32)
    cb1 = jnp.zeros((1, mlp_hidden), jnp.float32)
    ab2 = jnp.zeros((1, mlp_hidden), jnp.float32)
    cb2 = jnp.zeros((1, mlp_hidden), jnp.float32)
    aw3p = jnp.zeros((mlp_hidden, C), jnp.float32).at[:, :output_size].set(aw3).astype(bf)
    cw3p = (jnp.zeros((mlp_hidden, C), jnp.float32)
            .at[:, output_size:output_size + 1].set(cw3).astype(bf))
    b3c = jnp.zeros((1, C), jnp.float32)
    heads = (aw1.astype(bf), cw1.astype(bf), ab1, cb1,
             aw2.astype(bf), cw2.astype(bf), ab2, cb2,
             aw3p, cw3p, b3c)
    return lstm, heads


# ------------------------------ forward ---------------------------------------

@functools.partial(jax.jit, static_argnames=("output_size",))
def lstm_mlp_forward(inputs, masks, states, lstm, heads, output_size):
    """inputs: [B, T, D_in], masks: [B, T], states: (h, c) each [B, 1, 64]."""
    B, T, D = inputs.shape
    H = states[0].shape[-1]

    # Hoisted input projection: one large matmul for all (b, t), written
    # time-major directly (no separate transpose pass over activations).
    gx = jnp.einsum('btd,dg->tbg', inputs, lstm["wih_t"]) + lstm["bias"]   # [T, B, 4H]
    m_tm = jnp.transpose(masks, (1, 0))[:, :, None]                        # [T, B, 1] (tiny)
    h0 = states[0][:, 0, :]                                                # [B, 64]
    c0 = states[1][:, 0, :]

    out_flat, h_f, c_f = fused_lstm_mlp(gx, m_tm, h0, c0, lstm["whh_t"], heads)
    C = out_flat.shape[-1]
    comb = out_flat.reshape(T, B, C)                                       # rows were (t, b)
    actor_out = jnp.transpose(comb[:, :, :output_size], (1, 0, 2))         # [B, T, out]
    critic_out = jnp.transpose(comb[:, :, output_size:output_size + 1], (1, 0, 2))  # [B, T, 1]

    new_states = (h_f[:, None, :], c_f[:, None, :])                        # [B, 1, 64] each
    return actor_out, critic_out, new_states


if __name__ == "__main__":
    B, T, INPUT_SIZE, OUTPUT_SIZE = 2, 8, 16, 6
    LSTM_H = 64

    key = jax.random.PRNGKey(0)
    k_in, k_mask, k_param = jax.random.split(key, 3)

    inputs = jax.random.normal(k_in, (B, T, INPUT_SIZE), dtype=jnp.float32)
    masks = (jax.random.uniform(k_mask, (B, T)) > 0.2).astype(jnp.float32)
    states = (jnp.zeros((B, 1, LSTM_H), jnp.float32),
              jnp.zeros((B, 1, LSTM_H), jnp.float32))       # initial_states(B)

    lstm_p, heads_p = init_params(k_param, INPUT_SIZE, OUTPUT_SIZE)

    actor_out, critic_out, new_states = lstm_mlp_forward(
        inputs, masks, states, lstm_p, heads_p, OUTPUT_SIZE)
    jax.block_until_ready((actor_out, critic_out, new_states))

    assert actor_out.shape == (B, T, OUTPUT_SIZE)
    assert critic_out.shape == (B, T, 1)
    assert new_states[0].shape == (B, 1, LSTM_H)
    assert new_states[1].shape == (B, 1, LSTM_H)
    print("KERNEL_OK")
</pallas_src>

<mosaic_0001>
module attributes {stable_mosaic.version = 11 : i64} {
  func.func @_fused_kernel(%arg0: i32, %arg1: memref<8x2x256xf32, #tpu.memory_space<vmem>>, %arg2: memref<8x2x1xf32, #tpu.memory_space<vmem>>, %arg3: memref<2x64xf32, #tpu.memory_space<vmem>>, %arg4: memref<2x64xf32, #tpu.memory_space<vmem>>, %arg5: memref<64x256xbf16, #tpu.memory_space<vmem>>, %arg6: memref<64x512xbf16, #tpu.memory_space<vmem>>, %arg7: memref<64x512xbf16, #tpu.memory_space<vmem>>, %arg8: memref<1x512xf32, #tpu.memory_space<vmem>>, %arg9: memref<1x512xf32, #tpu.memory_space<vmem>>, %arg10: memref<512x512xbf16, #tpu.memory_space<vmem>>, %arg11: memref<512x512xbf16, #tpu.memory_space<vmem>>, %arg12: memref<1x512xf32, #tpu.memory_space<vmem>>, %arg13: memref<1x512xf32, #tpu.memory_space<vmem>>, %arg14: memref<512x128xbf16, #tpu.memory_space<vmem>>, %arg15: memref<512x128xbf16, #tpu.memory_space<vmem>>, %arg16: memref<1x128xf32, #tpu.memory_space<vmem>>, %arg17: memref<16x128xf32, #tpu.memory_space<vmem>>, %arg18: memref<2x64xf32, #tpu.memory_space<vmem>>, %arg19: memref<2x64xf32, #tpu.memory_space<vmem>>, %arg20: memref<2x64xf32, #tpu.memory_space<vmem>>, %arg21: memref<2x64xf32, #tpu.memory_space<vmem>>, %arg22: memref<8x2x64xf32, #tpu.memory_space<vmem>>) attributes {dimension_semantics = [#tpu.dimension_semantics<arbitrary>], iteration_bounds = array<i64: 1>, scalar_prefetch = 0 : i64, scratch_operands = 3 : i64, tpu.core_type = #tpu.core_type<tc>, window_params = [{transform_indices = @transform_0, window_bounds = array<i64: 8, 2, 256>}, {transform_indices = @transform_1, window_bounds = array<i64: 8, 2, 1>}, {pipeline_mode = #tpu.pipeline_mode<synchronous>, transform_indices = @transform_2, window_bounds = array<i64: 2, 64>}, {pipeline_mode = #tpu.pipeline_mode<synchronous>, transform_indices = @transform_3, window_bounds = array<i64: 2, 64>}, {pipeline_mode = #tpu.pipeline_mode<synchronous>, transform_indices = @transform_4, window_bounds = array<i64: 64, 256>}, {pipeline_mode = #tpu.pipeline_mode<synchronous>, transform_indices = @transform_5, window_bounds = array<i64: 64, 512>}, {pipeline_mode = #tpu.pipeline_mode<synchronous>, transform_indices = @transform_6, window_bounds = array<i64: 64, 512>}, {pipeline_mode = #tpu.pipeline_mode<synchronous>, transform_indices = @transform_7, window_bounds = array<i64: 1, 512>}, {pipeline_mode = #tpu.pipeline_mode<synchronous>, transform_indices = @transform_8, window_bounds = array<i64: 1, 512>}, {pipeline_mode = #tpu.pipeline_mode<synchronous>, transform_indices = @transform_9, window_bounds = array<i64: 512, 512>}, {pipeline_mode = #tpu.pipeline_mode<synchronous>, transform_indices = @transform_10, window_bounds = array<i64: 512, 512>}, {pipeline_mode = #tpu.pipeline_mode<synchronous>, transform_indices = @transform_11, window_bounds = array<i64: 1, 512>}, {pipeline_mode = #tpu.pipeline_mode<synchronous>, transform_indices = @transform_12, window_bounds = array<i64: 1, 512>}, {pipeline_mode = #tpu.pipeline_mode<synchronous>, transform_indices = @transform_13, window_bounds = array<i64: 512, 128>}, {pipeline_mode = #tpu.pipeline_mode<synchronous>, transform_indices = @transform_14, window_bounds = array<i64: 512, 128>}, {pipeline_mode = #tpu.pipeline_mode<synchronous>, transform_indices = @transform_15, window_bounds = array<i64: 1, 128>}, {transform_indices = @transform_16, window_bounds = array<i64: 16, 128>}, {pipeline_mode = #tpu.pipeline_mode<synchronous>, transform_indices = @transform_17, window_bounds = array<i64: 2, 64>}, {pipeline_mode = #tpu.pipeline_mode<synchronous>, transform_indices = @transform_18, window_bounds = array<i64: 2, 64>}]} {
    %c0_i32 = arith.constant 0 : i32
    %0 = arith.cmpi eq, %arg0, %c0_i32 : i32
    %1 = arith.extui %0 : i1 to i32
    %c0_i32_0 = arith.constant 0 : i32
    %2 = arith.cmpi ne, %1, %c0_i32_0 : i32
    scf.if %2 {
      %c0_117 = arith.constant 0 : index
      %c0_118 = arith.constant 0 : index
      %363 = vector.load %arg3[%c0_117, %c0_118] : memref<2x64xf32, #tpu.memory_space<vmem>>, vector<2x64xf32>
      %c0_119 = arith.constant 0 : index
      %c0_120 = arith.constant 0 : index
      %364 = vector.load %arg20[%c0_119, %c0_120] : memref<2x64xf32, #tpu.memory_space<vmem>>, vector<2x64xf32>
      tpu.vector_store %arg20[%c0_119, %c0_120], %363 {strides = array<i32>} : memref<2x64xf32, #tpu.memory_space<vmem>>, vector<2x64xf32>,
      %c0_121 = arith.constant 0 : index
      %c0_122 = arith.constant 0 : index
      %365 = vector.load %arg4[%c0_121, %c0_122] : memref<2x64xf32, #tpu.memory_space<vmem>>, vector<2x64xf32>
      %c0_123 = arith.constant 0 : index
      %c0_124 = arith.constant 0 : index
      %366 = vector.load %arg21[%c0_123, %c0_124] : memref<2x64xf32, #tpu.memory_space<vmem>>, vector<2x64xf32>
      tpu.vector_store %arg21[%c0_123, %c0_124], %365 {strides = array<i32>} : memref<2x64xf32, #tpu.memory_space<vmem>>, vector<2x64xf32>,
    } else {
    }
    %c0 = arith.constant 0 : index
    %c0_1 = arith.constant 0 : index
    %3 = vector.load %arg5[%c0, %c0_1] : memref<64x256xbf16, #tpu.memory_space<vmem>>, vector<64x256xbf16>
    %c0_2 = arith.constant 0 : index
    %c0_3 = arith.constant 0 : index
    %4 = vector.load %arg20[%c0_2, %c0_3] : memref<2x64xf32, #tpu.memory_space<vmem>>, vector<2x64xf32>
    %c0_4 = arith.constant 0 : index
    %c0_5 = arith.constant 0 : index
    %5 = vector.load %arg21[%c0_4, %c0_5] : memref<2x64xf32, #tpu.memory_space<vmem>>, vector<2x64xf32>
    %c0_i32_6 = arith.constant 0 : i32
    %6 = arith.index_cast %c0_i32_6 : i32 to index
    %c0_7 = arith.constant 0 : index
    %c0_8 = arith.constant 0 : index
    %7 = vector.load %arg2[%6, %c0_7, %c0_8] : memref<8x2x1xf32, #tpu.memory_space<vmem>>, vector<1x2x1xf32>
    %8 = vector.shape_cast %7 : vector<1x2x1xf32> to vector<2x1xf32>
    %9 = vector.broadcast %8 : vector<2x1xf32> to vector<2x64xf32>
    %10 = arith.mulf %4, %9 : vector<2x64xf32>
    %11 = vector.broadcast %8 : vector<2x1xf32> to vector<2x64xf32>
    %12 = arith.mulf %5, %11 : vector<2x64xf32>
    %13 = arith.index_cast %c0_i32_6 : i32 to index
    %c0_9 = arith.constant 0 : index
    %c0_10 = arith.constant 0 : index
    %14 = vector.load %arg1[%13, %c0_9, %c0_10] : memref<8x2x256xf32, #tpu.memory_space<vmem>>, vector<1x2x256xf32>
    %15 = vector.shape_cast %14 : vector<1x2x256xf32> to vector<2x256xf32>
    %16 = arith.truncf %10 : vector<2x64xf32> to vector<2x64xbf16>
    %cst = arith.constant dense<0.000000e+00> : vector<2x256xf32>
    %17 = tpu.matmul %16, %3, %cst {dimension_numbers = #tpu.dot_dimension_numbers<[1], [0], [0], [1], [0, 0, 1, 1], [], []>} : vector<2x64xbf16>, vector<64x256xbf16>, vector<2x256xf32> -> vector<2x256xf32>
    %18 = arith.addf %15, %17 : vector<2x256xf32>
    %19 = vector.extract_strided_slice %18 {offsets = [0, 0], sizes = [2, 128], strides = [1, 1]} : vector<2x256xf32> to vector<2x128xf32>
    %20 = arith.negf %19 : vector<2x128xf32>
    %21 = math.exp %20 : vector<2x128xf32>
    %cst_11 = arith.constant 1.000000e+00 : f32
    %22 = vector.broadcast %cst_11 : f32 to vector<2x128xf32>
    %23 = arith.addf %22, %21 : vector<2x128xf32>
    %24 = arith.divf %22, %23 : vector<2x128xf32>
    %25 = vector.extract_strided_slice %18 {offsets = [0, 128], sizes = [2, 128], strides = [1, 1]} : vector<2x256xf32> to vector<2x128xf32>
    %26 = vector.extract_strided_slice %24 {offsets = [0, 0], sizes = [2, 64], strides = [1, 1]} : vector<2x128xf32> to vector<2x64xf32>
    %27 = vector.extract_strided_slice %24 {offsets = [0, 64], sizes = [2, 64], strides = [1, 1]} : vector<2x128xf32> to vector<2x64xf32>
    %28 = vector.extract_strided_slice %25 {offsets = [0, 0], sizes = [2, 64], strides = [1, 1]} : vector<2x128xf32> to vector<2x64xf32>
    %29 = math.tanh %28 : vector<2x64xf32>
    %30 = vector.extract_strided_slice %25 {offsets = [0, 64], sizes = [2, 64], strides = [1, 1]} : vector<2x128xf32> to vector<2x64xf32>
    %31 = arith.negf %30 : vector<2x64xf32>
    %32 = math.exp %31 : vector<2x64xf32>
    %cst_12 = arith.constant 1.000000e+00 : f32
    %33 = vector.broadcast %cst_12 : f32 to vector<2x64xf32>
    %34 = arith.addf %33, %32 : vector<2x64xf32>
    %35 = arith.divf %33, %34 : vector<2x64xf32>
    %36 = arith.mulf %27, %12 : vector<2x64xf32>
    %37 = arith.mulf %26, %29 : vector<2x64xf32>
    %38 = arith.addf %36, %37 : vector<2x64xf32>
    %39 = math.tanh %38 : vector<2x64xf32>
    %40 = arith.mulf %35, %39 : vector<2x64xf32>
    %41 = arith.index_cast %c0_i32_6 : i32 to index
    %c0_13 = arith.constant 0 : index
    %c0_14 = arith.constant 0 : index
    %42 = vector.load %arg22[%41, %c0_13, %c0_14] : memref<8x2x64xf32, #tpu.memory_space<vmem>>, vector<1x2x64xf32>
    %43 = vector.shape_cast %42 : vector<1x2x64xf32> to vector<2x64xf32>
    %44 = vector.shape_cast %40 : vector<2x64xf32> to vector<1x2x64xf32>
    tpu.vector_store %arg22[%41, %c0_13, %c0_14], %44 {strides = array<i32>} : memref<8x2x64xf32, #tpu.memory_space<vmem>>, vector<1x2x64xf32>,
    %c1_i32 = arith.constant 1 : i32
    %45 = arith.index_cast %c1_i32 : i32 to index
    %c0_15 = arith.constant 0 : index
    %c0_16 = arith.constant 0 : index
    %46 = vector.load %arg2[%45, %c0_15, %c0_16] : memref<8x2x1xf32, #tpu.memory_space<vmem>>, vector<1x2x1xf32>
    %47 = vector.shape_cast %46 : vector<1x2x1xf32> to vector<2x1xf32>
    %48 = vector.broadcast %47 : vector<2x1xf32> to vector<2x64xf32>
    %49 = arith.mulf %40, %48 : vector<2x64xf32>
    %50 = vector.broadcast %47 : vector<2x1xf32> to vector<2x64xf32>
    %51 = arith.mulf %38, %50 : vector<2x64xf32>
    %52 = arith.index_cast %c1_i32 : i32 to index
    %c0_17 = arith.constant 0 : index
    %c0_18 = arith.constant 0 : index
    %53 = vector.load %arg1[%52, %c0_17, %c0_18] : memref<8x2x256xf32, #tpu.memory_space<vmem>>, vector<1x2x256xf32>
    %54 = vector.shape_cast %53 : vector<1x2x256xf32> to vector<2x256xf32>
    %55 = arith.truncf %49 : vector<2x64xf32> to vector<2x64xbf16>
    %cst_19 = arith.constant dense<0.000000e+00> : vector<2x256xf32>
    %56 = tpu.matmul %55, %3, %cst_19 {dimension_numbers = #tpu.dot_dimension_numbers<[1], [0], [0], [1], [0, 0, 1, 1], [], []>} : vector<2x64xbf16>, vector<64x256xbf16>, vector<2x256xf32> -> vector<2x256xf32>
    %57 = arith.addf %54, %56 : vector<2x256xf32>
    %58 = vector.extract_strided_slice %57 {offsets = [0, 0], sizes = [2, 128], strides = [1, 1]} : vector<2x256xf32> to vector<2x128xf32>
    %59 = arith.negf %58 : vector<2x128xf32>
    %60 = math.exp %59 : vector<2x128xf32>
    %cst_20 = arith.constant 1.000000e+00 : f32
    %61 = vector.broadcast %cst_20 : f32 to vector<2x128xf32>
    %62 = arith.addf %61, %60 : vector<2x128xf32>
    %63 = arith.divf %61, %62 : vector<2x128xf32>
    %64 = vector.extract_strided_slice %57 {offsets = [0, 128], sizes = [2, 128], strides = [1, 1]} : vector<2x256xf32> to vector<2x128xf32>
    %65 = vector.extract_strided_slice %63 {offsets = [0, 0], sizes = [2, 64], strides = [1, 1]} : vector<2x128xf32> to vector<2x64xf32>
    %66 = vector.extract_strided_slice %63 {offsets = [0, 64], sizes = [2, 64], strides = [1, 1]} : vector<2x128xf32> to vector<2x64xf32>
    %67 = vector.extract_strided_slice %64 {offsets = [0, 0], sizes = [2, 64], strides = [1, 1]} : vector<2x128xf32> to vector<2x64xf32>
    %68 = math.tanh %67 : vector<2x64xf32>
    %69 = vector.extract_strided_slice %64 {offsets = [0, 64], sizes = [2, 64], strides = [1, 1]} : vector<2x128xf32> to vector<2x64xf32>
    %70 = arith.negf %69 : vector<2x64xf32>
    %71 = math.exp %70 : vector<2x64xf32>
    %cst_21 = arith.constant 1.000000e+00 : f32
    %72 = vector.broadcast %cst_21 : f32 to vector<2x64xf32>
    %73 = arith.addf %72, %71 : vector<2x64xf32>
    %74 = arith.divf %72, %73 : vector<2x64xf32>
    %75 = arith.mulf %66, %51 : vector<2x64xf32>
    %76 = arith.mulf %65, %68 : vector<2x64xf32>
    %77 = arith.addf %75, %76 : vector<2x64xf32>
    %78 = math.tanh %77 : vector<2x64xf32>
    %79 = arith.mulf %74, %78 : vector<2x64xf32>
    %80 = arith.index_cast %c1_i32 : i32 to index
    %c0_22 = arith.constant 0 : index
    %c0_23 = arith.constant 0 : index
    %81 = vector.load %arg22[%80, %c0_22, %c0_23] : memref<8x2x64xf32, #tpu.memory_space<vmem>>, vector<1x2x64xf32>
    %82 = vector.shape_cast %81 : vector<1x2x64xf32> to vector<2x64xf32>
    %83 = vector.shape_cast %79 : vector<2x64xf32> to vector<1x2x64xf32>
    tpu.vector_store %arg22[%80, %c0_22, %c0_23], %83 {strides = array<i32>} : memref<8x2x64xf32, #tpu.memory_space<vmem>>, vector<1x2x64xf32>,
    %c2_i32 = arith.constant 2 : i32
    %84 = arith.index_cast %c2_i32 : i32 to index
    %c0_24 = arith.constant 0 : index
    %c0_25 = arith.constant 0 : index
    %85 = vector.load %arg2[%84, %c0_24, %c0_25] : memref<8x2x1xf32, #tpu.memory_space<vmem>>, vector<1x2x1xf32>
    %86 = vector.shape_cast %85 : vector<1x2x1xf32> to vector<2x1xf32>
    %87 = vector.broadcast %86 : vector<2x1xf32> to vector<2x64xf32>
    %88 = arith.mulf %79, %87 : vector<2x64xf32>
    %89 = vector.broadcast %86 : vector<2x1xf32> to vector<2x64xf32>
    %90 = arith.mulf %77, %89 : vector<2x64xf32>
    %91 = arith.index_cast %c2_i32 : i32 to index
    %c0_26 = arith.constant 0 : index
    %c0_27 = arith.constant 0 : index
    %92 = vector.load %arg1[%91, %c0_26, %c0_27] : memref<8x2x256xf32, #tpu.memory_space<vmem>>, vector<1x2x256xf32>
    %93 = vector.shape_cast %92 : vector<1x2x256xf32> to vector<2x256xf32>
    %94 = arith.truncf %88 : vector<2x64xf32> to vector<2x64xbf16>
    %cst_28 = arith.constant dense<0.000000e+00> : vector<2x256xf32>
    %95 = tpu.matmul %94, %3, %cst_28 {dimension_numbers = #tpu.dot_dimension_numbers<[1], [0], [0], [1], [0, 0, 1, 1], [], []>} : vector<2x64xbf16>, vector<64x256xbf16>, vector<2x256xf32> -> vector<2x256xf32>
    %96 = arith.addf %93, %95 : vector<2x256xf32>
    %97 = vector.extract_strided_slice %96 {offsets = [0, 0], sizes = [2, 128], strides = [1, 1]} : vector<2x256xf32> to vector<2x128xf32>
    %98 = arith.negf %97 : vector<2x128xf32>
    %99 = math.exp %98 : vector<2x128xf32>
    %cst_29 = arith.constant 1.000000e+00 : f32
    %100 = vector.broadcast %cst_29 : f32 to vector<2x128xf32>
    %101 = arith.addf %100, %99 : vector<2x128xf32>
    %102 = arith.divf %100, %101 : vector<2x128xf32>
    %103 = vector.extract_strided_slice %96 {offsets = [0, 128], sizes = [2, 128], strides = [1, 1]} : vector<2x256xf32> to vector<2x128xf32>
    %104 = vector.extract_strided_slice %102 {offsets = [0, 0], sizes = [2, 64], strides = [1, 1]} : vector<2x128xf32> to vector<2x64xf32>
    %105 = vector.extract_strided_slice %102 {offsets = [0, 64], sizes = [2, 64], strides = [1, 1]} : vector<2x128xf32> to vector<2x64xf32>
    %106 = vector.extract_strided_slice %103 {offsets = [0, 0], sizes = [2, 64], strides = [1, 1]} : vector<2x128xf32> to vector<2x64xf32>
    %107 = math.tanh %106 : vector<2x64xf32>
    %108 = vector.extract_strided_slice %103 {offsets = [0, 64], sizes = [2, 64], strides = [1, 1]} : vector<2x128xf32> to vector<2x64xf32>
    %109 = arith.negf %108 : vector<2x64xf32>
    %110 = math.exp %109 : vector<2x64xf32>
    %cst_30 = arith.constant 1.000000e+00 : f32
    %111 = vector.broadcast %cst_30 : f32 to vector<2x64xf32>
    %112 = arith.addf %111, %110 : vector<2x64xf32>
    %113 = arith.divf %111, %112 : vector<2x64xf32>
    %114 = arith.mulf %105, %90 : vector<2x64xf32>
    %115 = arith.mulf %104, %107 : vector<2x64xf32>
    %116 = arith.addf %114, %115 : vector<2x64xf32>
    %117 = math.tanh %116 : vector<2x64xf32>
    %118 = arith.mulf %113, %117 : vector<2x64xf32>
    %119 = arith.index_cast %c2_i32 : i32 to index
    %c0_31 = arith.constant 0 : index
    %c0_32 = arith.constant 0 : index
    %120 = vector.load %arg22[%119, %c0_31, %c0_32] : memref<8x2x64xf32, #tpu.memory_space<vmem>>, vector<1x2x64xf32>
    %121 = vector.shape_cast %120 : vector<1x2x64xf32> to vector<2x64xf32>
    %122 = vector.shape_cast %118 : vector<2x64xf32> to vector<1x2x64xf32>
    tpu.vector_store %arg22[%119, %c0_31, %c0_32], %122 {strides = array<i32>} : memref<8x2x64xf32, #tpu.memory_space<vmem>>, vector<1x2x64xf32>,
    %c3_i32 = arith.constant 3 : i32
    %123 = arith.index_cast %c3_i32 : i32 to index
    %c0_33 = arith.constant 0 : index
    %c0_34 = arith.constant 0 : index
    %124 = vector.load %arg2[%123, %c0_33, %c0_34] : memref<8x2x1xf32, #tpu.memory_space<vmem>>, vector<1x2x1xf32>
    %125 = vector.shape_cast %124 : vector<1x2x1xf32> to vector<2x1xf32>
    %126 = vector.broadcast %125 : vector<2x1xf32> to vector<2x64xf32>
    %127 = arith.mulf %118, %126 : vector<2x64xf32>
    %128 = vector.broadcast %125 : vector<2x1xf32> to vector<2x64xf32>
    %129 = arith.mulf %116, %128 : vector<2x64xf32>
    %130 = arith.index_cast %c3_i32 : i32 to index
    %c0_35 = arith.constant 0 : index
    %c0_36 = arith.constant 0 : index
    %131 = vector.load %arg1[%130, %c0_35, %c0_36] : memref<8x2x256xf32, #tpu.memory_space<vmem>>, vector<1x2x256xf32>
    %132 = vector.shape_cast %131 : vector<1x2x256xf32> to vector<2x256xf32>
    %133 = arith.truncf %127 : vector<2x64xf32> to vector<2x64xbf16>
    %cst_37 = arith.constant dense<0.000000e+00> : vector<2x256xf32>
    %134 = tpu.matmul %133, %3, %cst_37 {dimension_numbers = #tpu.dot_dimension_numbers<[1], [0], [0], [1], [0, 0, 1, 1], [], []>} : vector<2x64xbf16>, vector<64x256xbf16>, vector<2x256xf32> -> vector<2x256xf32>
    %135 = arith.addf %132, %134 : vector<2x256xf32>
    %136 = vector.extract_strided_slice %135 {offsets = [0, 0], sizes = [2, 128], strides = [1, 1]} : vector<2x256xf32> to vector<2x128xf32>
    %137 = arith.negf %136 : vector<2x128xf32>
    %138 = math.exp %137 : vector<2x128xf32>
    %cst_38 = arith.constant 1.000000e+00 : f32
    %139 = vector.broadcast %cst_38 : f32 to vector<2x128xf32>
    %140 = arith.addf %139, %138 : vector<2x128xf32>
    %141 = arith.divf %139, %140 : vector<2x128xf32>
    %142 = vector.extract_strided_slice %135 {offsets = [0, 128], sizes = [2, 128], strides = [1, 1]} : vector<2x256xf32> to vector<2x128xf32>
    %143 = vector.extract_strided_slice %141 {offsets = [0, 0], sizes = [2, 64], strides = [1, 1]} : vector<2x128xf32> to vector<2x64xf32>
    %144 = vector.extract_strided_slice %141 {offsets = [0, 64], sizes = [2, 64], strides = [1, 1]} : vector<2x128xf32> to vector<2x64xf32>
    %145 = vector.extract_strided_slice %142 {offsets = [0, 0], sizes = [2, 64], strides = [1, 1]} : vector<2x128xf32> to vector<2x64xf32>
    %146 = math.tanh %145 : vector<2x64xf32>
    %147 = vector.extract_strided_slice %142 {offsets = [0, 64], sizes = [2, 64], strides = [1, 1]} : vector<2x128xf32> to vector<2x64xf32>
    %148 = arith.negf %147 : vector<2x64xf32>
    %149 = math.exp %148 : vector<2x64xf32>
    %cst_39 = arith.constant 1.000000e+00 : f32
    %150 = vector.broadcast %cst_39 : f32 to vector<2x64xf32>
    %151 = arith.addf %150, %149 : vector<2x64xf32>
    %152 = arith.divf %150, %151 : vector<2x64xf32>
    %153 = arith.mulf %144, %129 : vector<2x64xf32>
    %154 = arith.mulf %143, %146 : vector<2x64xf32>
    %155 = arith.addf %153, %154 : vector<2x64xf32>
    %156 = math.tanh %155 : vector<2x64xf32>
    %157 = arith.mulf %152, %156 : vector<2x64xf32>
    %158 = arith.index_cast %c3_i32 : i32 to index
    %c0_40 = arith.constant 0 : index
    %c0_41 = arith.constant 0 : index
    %159 = vector.load %arg22[%158, %c0_40, %c0_41] : memref<8x2x64xf32, #tpu.memory_space<vmem>>, vector<1x2x64xf32>
    %160 = vector.shape_cast %159 : vector<1x2x64xf32> to vector<2x64xf32>
    %161 = vector.shape_cast %157 : vector<2x64xf32> to vector<1x2x64xf32>
    tpu.vector_store %arg22[%158, %c0_40, %c0_41], %161 {strides = array<i32>} : memref<8x2x64xf32, #tpu.memory_space<vmem>>, vector<1x2x64xf32>,
    %c4_i32 = arith.constant 4 : i32
    %162 = arith.index_cast %c4_i32 : i32 to index
    %c0_42 = arith.constant 0 : index
    %c0_43 = arith.constant 0 : index
    %163 = vector.load %arg2[%162, %c0_42, %c0_43] : memref<8x2x1xf32, #tpu.memory_space<vmem>>, vector<1x2x1xf32>
    %164 = vector.shape_cast %163 : vector<1x2x1xf32> to vector<2x1xf32>
    %165 = vector.broadcast %164 : vector<2x1xf32> to vector<2x64xf32>
    %166 = arith.mulf %157, %165 : vector<2x64xf32>
    %167 = vector.broadcast %164 : vector<2x1xf32> to vector<2x64xf32>
    %168 = arith.mulf %155, %167 : vector<2x64xf32>
    %169 = arith.index_cast %c4_i32 : i32 to index
    %c0_44 = arith.constant 0 : index
    %c0_45 = arith.constant 0 : index
    %170 = vector.load %arg1[%169, %c0_44, %c0_45] : memref<8x2x256xf32, #tpu.memory_space<vmem>>, vector<1x2x256xf32>
    %171 = vector.shape_cast %170 : vector<1x2x256xf32> to vector<2x256xf32>
    %172 = arith.truncf %166 : vector<2x64xf32> to vector<2x64xbf16>
    %cst_46 = arith.constant dense<0.000000e+00> : vector<2x256xf32>
    %173 = tpu.matmul %172, %3, %cst_46 {dimension_numbers = #tpu.dot_dimension_numbers<[1], [0], [0], [1], [0, 0, 1, 1], [], []>} : vector<2x64xbf16>, vector<64x256xbf16>, vector<2x256xf32> -> vector<2x256xf32>
    %174 = arith.addf %171, %173 : vector<2x256xf32>
    %175 = vector.extract_strided_slice %174 {offsets = [0, 0], sizes = [2, 128], strides = [1, 1]} : vector<2x256xf32> to vector<2x128xf32>
    %176 = arith.negf %175 : vector<2x128xf32>
    %177 = math.exp %176 : vector<2x128xf32>
    %cst_47 = arith.constant 1.000000e+00 : f32
    %178 = vector.broadcast %cst_47 : f32 to vector<2x128xf32>
    %179 = arith.addf %178, %177 : vector<2x128xf32>
    %180 = arith.divf %178, %179 : vector<2x128xf32>
    %181 = vector.extract_strided_slice %174 {offsets = [0, 128], sizes = [2, 128], strides = [1, 1]} : vector<2x256xf32> to vector<2x128xf32>
    %182 = vector.extract_strided_slice %180 {offsets = [0, 0], sizes = [2, 64], strides = [1, 1]} : vector<2x128xf32> to vector<2x64xf32>
    %183 = vector.extract_strided_slice %180 {offsets = [0, 64], sizes = [2, 64], strides = [1, 1]} : vector<2x128xf32> to vector<2x64xf32>
    %184 = vector.extract_strided_slice %181 {offsets = [0, 0], sizes = [2, 64], strides = [1, 1]} : vector<2x128xf32> to vector<2x64xf32>
    %185 = math.tanh %184 : vector<2x64xf32>
    %186 = vector.extract_strided_slice %181 {offsets = [0, 64], sizes = [2, 64], strides = [1, 1]} : vector<2x128xf32> to vector<2x64xf32>
    %187 = arith.negf %186 : vector<2x64xf32>
    %188 = math.exp %187 : vector<2x64xf32>
    %cst_48 = arith.constant 1.000000e+00 : f32
    %189 = vector.broadcast %cst_48 : f32 to vector<2x64xf32>
    %190 = arith.addf %189, %188 : vector<2x64xf32>
    %191 = arith.divf %189, %190 : vector<2x64xf32>
    %192 = arith.mulf %183, %168 : vector<2x64xf32>
    %193 = arith.mulf %182, %185 : vector<2x64xf32>
    %194 = arith.addf %192, %193 : vector<2x64xf32>
    %195 = math.tanh %194 : vector<2x64xf32>
    %196 = arith.mulf %191, %195 : vector<2x64xf32>
    %197 = arith.index_cast %c4_i32 : i32 to index
    %c0_49 = arith.constant 0 : index
    %c0_50 = arith.constant 0 : index
    %198 = vector.load %arg22[%197, %c0_49, %c0_50] : memref<8x2x64xf32, #tpu.memory_space<vmem>>, vector<1x2x64xf32>
    %199 = vector.shape_cast %198 : vector<1x2x64xf32> to vector<2x64xf32>
    %200 = vector.shape_cast %196 : vector<2x64xf32> to vector<1x2x64xf32>
    tpu.vector_store %arg22[%197, %c0_49, %c0_50], %200 {strides = array<i32>} : memref<8x2x64xf32, #tpu.memory_space<vmem>>, vector<1x2x64xf32>,
    %c5_i32 = arith.constant 5 : i32
    %201 = arith.index_cast %c5_i32 : i32 to index
    %c0_51 = arith.constant 0 : index
    %c0_52 = arith.constant 0 : index
    %202 = vector.load %arg2[%201, %c0_51, %c0_52] : memref<8x2x1xf32, #tpu.memory_space<vmem>>, vector<1x2x1xf32>
    %203 = vector.shape_cast %202 : vector<1x2x1xf32> to vector<2x1xf32>
    %204 = vector.broadcast %203 : vector<2x1xf32> to vector<2x64xf32>
    %205 = arith.mulf %196, %204 : vector<2x64xf32>
    %206 = vector.broadcast %203 : vector<2x1xf32> to vector<2x64xf32>
    %207 = arith.mulf %194, %206 : vector<2x64xf32>
    %208 = arith.index_cast %c5_i32 : i32 to index
    %c0_53 = arith.constant 0 : index
    %c0_54 = arith.constant 0 : index
    %209 = vector.load %arg1[%208, %c0_53, %c0_54] : memref<8x2x256xf32, #tpu.memory_space<vmem>>, vector<1x2x256xf32>
    %210 = vector.shape_cast %209 : vector<1x2x256xf32> to vector<2x256xf32>
    %211 = arith.truncf %205 : vector<2x64xf32> to vector<2x64xbf16>
    %cst_55 = arith.constant dense<0.000000e+00> : vector<2x256xf32>
    %212 = tpu.matmul %211, %3, %cst_55 {dimension_numbers = #tpu.dot_dimension_numbers<[1], [0], [0], [1], [0, 0, 1, 1], [], []>} : vector<2x64xbf16>, vector<64x256xbf16>, vector<2x256xf32> -> vector<2x256xf32>
    %213 = arith.addf %210, %212 : vector<2x256xf32>
    %214 = vector.extract_strided_slice %213 {offsets = [0, 0], sizes = [2, 128], strides = [1, 1]} : vector<2x256xf32> to vector<2x128xf32>
    %215 = arith.negf %214 : vector<2x128xf32>
    %216 = math.exp %215 : vector<2x128xf32>
    %cst_56 = arith.constant 1.000000e+00 : f32
    %217 = vector.broadcast %cst_56 : f32 to vector<2x128xf32>
    %218 = arith.addf %217, %216 : vector<2x128xf32>
    %219 = arith.divf %217, %218 : vector<2x128xf32>
    %220 = vector.extract_strided_slice %213 {offsets = [0, 128], sizes = [2, 128], strides = [1, 1]} : vector<2x256xf32> to vector<2x128xf32>
    %221 = vector.extract_strided_slice %219 {offsets = [0, 0], sizes = [2, 64], strides = [1, 1]} : vector<2x128xf32> to vector<2x64xf32>
    %222 = vector.extract_strided_slice %219 {offsets = [0, 64], sizes = [2, 64], strides = [1, 1]} : vector<2x128xf32> to vector<2x64xf32>
    %223 = vector.extract_strided_slice %220 {offsets = [0, 0], sizes = [2, 64], strides = [1, 1]} : vector<2x128xf32> to vector<2x64xf32>
    %224 = math.tanh %223 : vector<2x64xf32>
    %225 = vector.extract_strided_slice %220 {offsets = [0, 64], sizes = [2, 64], strides = [1, 1]} : vector<2x128xf32> to vector<2x64xf32>
    %226 = arith.negf %225 : vector<2x64xf32>
    %227 = math.exp %226 : vector<2x64xf32>
    %cst_57 = arith.constant 1.000000e+00 : f32
    %228 = vector.broadcast %cst_57 : f32 to vector<2x64xf32>
    %229 = arith.addf %228, %227 : vector<2x64xf32>
    %230 = arith.divf %228, %229 : vector<2x64xf32>
    %231 = arith.mulf %222, %207 : vector<2x64xf32>
    %232 = arith.mulf %221, %224 : vector<2x64xf32>
    %233 = arith.addf %231, %232 : vector<2x64xf32>
    %234 = math.tanh %233 : vector<2x64xf32>
    %235 = arith.mulf %230, %234 : vector<2x64xf32>
    %236 = arith.index_cast %c5_i32 : i32 to index
    %c0_58 = arith.constant 0 : index
    %c0_59 = arith.constant 0 : index
    %237 = vector.load %arg22[%236, %c0_58, %c0_59] : memref<8x2x64xf32, #tpu.memory_space<vmem>>, vector<1x2x64xf32>
    %238 = vector.shape_cast %237 : vector<1x2x64xf32> to vector<2x64xf32>
    %239 = vector.shape_cast %235 : vector<2x64xf32> to vector<1x2x64xf32>
    tpu.vector_store %arg22[%236, %c0_58, %c0_59], %239 {strides = array<i32>} : memref<8x2x64xf32, #tpu.memory_space<vmem>>, vector<1x2x64xf32>,
    %c6_i32 = arith.constant 6 : i32
    %240 = arith.index_cast %c6_i32 : i32 to index
    %c0_60 = arith.constant 0 : index
    %c0_61 = arith.constant 0 : index
    %241 = vector.load %arg2[%240, %c0_60, %c0_61] : memref<8x2x1xf32, #tpu.memory_space<vmem>>, vector<1x2x1xf32>
    %242 = vector.shape_cast %241 : vector<1x2x1xf32> to vector<2x1xf32>
    %243 = vector.broadcast %242 : vector<2x1xf32> to vector<2x64xf32>
    %244 = arith.mulf %235, %243 : vector<2x64xf32>
    %245 = vector.broadcast %242 : vector<2x1xf32> to vector<2x64xf32>
    %246 = arith.mulf %233, %245 : vector<2x64xf32>
    %247 = arith.index_cast %c6_i32 : i32 to index
    %c0_62 = arith.constant 0 : index
    %c0_63 = arith.constant 0 : index
    %248 = vector.load %arg1[%247, %c0_62, %c0_63] : memref<8x2x256xf32, #tpu.memory_space<vmem>>, vector<1x2x256xf32>
    %249 = vector.shape_cast %248 : vector<1x2x256xf32> to vector<2x256xf32>
    %250 = arith.truncf %244 : vector<2x64xf32> to vector<2x64xbf16>
    %cst_64 = arith.constant dense<0.000000e+00> : vector<2x256xf32>
    %251 = tpu.matmul %250, %3, %cst_64 {dimension_numbers = #tpu.dot_dimension_numbers<[1], [0], [0], [1], [0, 0, 1, 1], [], []>} : vector<2x64xbf16>, vector<64x256xbf16>, vector<2x256xf32> -> vector<2x256xf32>
    %252 = arith.addf %249, %251 : vector<2x256xf32>
    %253 = vector.extract_strided_slice %252 {offsets = [0, 0], sizes = [2, 128], strides = [1, 1]} : vector<2x256xf32> to vector<2x128xf32>
    %254 = arith.negf %253 : vector<2x128xf32>
    %255 = math.exp %254 : vector<2x128xf32>
    %cst_65 = arith.constant 1.000000e+00 : f32
    %256 = vector.broadcast %cst_65 : f32 to vector<2x128xf32>
    %257 = arith.addf %256, %255 : vector<2x128xf32>
    %258 = arith.divf %256, %257 : vector<2x128xf32>
    %259 = vector.extract_strided_slice %252 {offsets = [0, 128], sizes = [2, 128], strides = [1, 1]} : vector<2x256xf32> to vector<2x128xf32>
    %260 = vector.extract_strided_slice %258 {offsets = [0, 0], sizes = [2, 64], strides = [1, 1]} : vector<2x128xf32> to vector<2x64xf32>
    %261 = vector.extract_strided_slice %258 {offsets = [0, 64], sizes = [2, 64], strides = [1, 1]} : vector<2x128xf32> to vector<2x64xf32>
    %262 = vector.extract_strided_slice %259 {offsets = [0, 0], sizes = [2, 64], strides = [1, 1]} : vector<2x128xf32> to vector<2x64xf32>
    %263 = math.tanh %262 : vector<2x64xf32>
    %264 = vector.extract_strided_slice %259 {offsets = [0, 64], sizes = [2, 64], strides = [1, 1]} : vector<2x128xf32> to vector<2x64xf32>
    %265 = arith.negf %264 : vector<2x64xf32>
    %266 = math.exp %265 : vector<2x64xf32>
    %cst_66 = arith.constant 1.000000e+00 : f32
    %267 = vector.broadcast %cst_66 : f32 to vector<2x64xf32>
    %268 = arith.addf %267, %266 : vector<2x64xf32>
    %269 = arith.divf %267, %268 : vector<2x64xf32>
    %270 = arith.mulf %261, %246 : vector<2x64xf32>
    %271 = arith.mulf %260, %263 : vector<2x64xf32>
    %272 = arith.addf %270, %271 : vector<2x64xf32>
    %273 = math.tanh %272 : vector<2x64xf32>
    %274 = arith.mulf %269, %273 : vector<2x64xf32>
    %275 = arith.index_cast %c6_i32 : i32 to index
    %c0_67 = arith.constant 0 : index
    %c0_68 = arith.constant 0 : index
    %276 = vector.load %arg22[%275, %c0_67, %c0_68] : memref<8x2x64xf32, #tpu.memory_space<vmem>>, vector<1x2x64xf32>
    %277 = vector.shape_cast %276 : vector<1x2x64xf32> to vector<2x64xf32>
    %278 = vector.shape_cast %274 : vector<2x64xf32> to vector<1x2x64xf32>
    tpu.vector_store %arg22[%275, %c0_67, %c0_68], %278 {strides = array<i32>} : memref<8x2x64xf32, #tpu.memory_space<vmem>>, vector<1x2x64xf32>,
    %c7_i32 = arith.constant 7 : i32
    %279 = arith.index_cast %c7_i32 : i32 to index
    %c0_69 = arith.constant 0 : index
    %c0_70 = arith.constant 0 : index
    %280 = vector.load %arg2[%279, %c0_69, %c0_70] : memref<8x2x1xf32, #tpu.memory_space<vmem>>, vector<1x2x1xf32>
    %281 = vector.shape_cast %280 : vector<1x2x1xf32> to vector<2x1xf32>
    %282 = vector.broadcast %281 : vector<2x1xf32> to vector<2x64xf32>
    %283 = arith.mulf %274, %282 : vector<2x64xf32>
    %284 = vector.broadcast %281 : vector<2x1xf32> to vector<2x64xf32>
    %285 = arith.mulf %272, %284 : vector<2x64xf32>
    %286 = arith.index_cast %c7_i32 : i32 to index
    %c0_71 = arith.constant 0 : index
    %c0_72 = arith.constant 0 : index
    %287 = vector.load %arg1[%286, %c0_71, %c0_72] : memref<8x2x256xf32, #tpu.memory_space<vmem>>, vector<1x2x256xf32>
    %288 = vector.shape_cast %287 : vector<1x2x256xf32> to vector<2x256xf32>
    %289 = arith.truncf %283 : vector<2x64xf32> to vector<2x64xbf16>
    %cst_73 = arith.constant dense<0.000000e+00> : vector<2x256xf32>
    %290 = tpu.matmul %289, %3, %cst_73 {dimension_numbers = #tpu.dot_dimension_numbers<[1], [0], [0], [1], [0, 0, 1, 1], [], []>} : vector<2x64xbf16>, vector<64x256xbf16>, vector<2x256xf32> -> vector<2x256xf32>
    %291 = arith.addf %288, %290 : vector<2x256xf32>
    %292 = vector.extract_strided_slice %291 {offsets = [0, 0], sizes = [2, 128], strides = [1, 1]} : vector<2x256xf32> to vector<2x128xf32>
    %293 = arith.negf %292 : vector<2x128xf32>
    %294 = math.exp %293 : vector<2x128xf32>
    %cst_74 = arith.constant 1.000000e+00 : f32
    %295 = vector.broadcast %cst_74 : f32 to vector<2x128xf32>
    %296 = arith.addf %295, %294 : vector<2x128xf32>
    %297 = arith.divf %295, %296 : vector<2x128xf32>
    %298 = vector.extract_strided_slice %291 {offsets = [0, 128], sizes = [2, 128], strides = [1, 1]} : vector<2x256xf32> to vector<2x128xf32>
    %299 = vector.extract_strided_slice %297 {offsets = [0, 0], sizes = [2, 64], strides = [1, 1]} : vector<2x128xf32> to vector<2x64xf32>
    %300 = vector.extract_strided_slice %297 {offsets = [0, 64], sizes = [2, 64], strides = [1, 1]} : vector<2x128xf32> to vector<2x64xf32>
    %301 = vector.extract_strided_slice %298 {offsets = [0, 0], sizes = [2, 64], strides = [1, 1]} : vector<2x128xf32> to vector<2x64xf32>
    %302 = math.tanh %301 : vector<2x64xf32>
    %303 = vector.extract_strided_slice %298 {offsets = [0, 64], sizes = [2, 64], strides = [1, 1]} : vector<2x128xf32> to vector<2x64xf32>
    %304 = arith.negf %303 : vector<2x64xf32>
    %305 = math.exp %304 : vector<2x64xf32>
    %cst_75 = arith.constant 1.000000e+00 : f32
    %306 = vector.broadcast %cst_75 : f32 to vector<2x64xf32>
    %307 = arith.addf %306, %305 : vector<2x64xf32>
    %308 = arith.divf %306, %307 : vector<2x64xf32>
    %309 = arith.mulf %300, %285 : vector<2x64xf32>
    %310 = arith.mulf %299, %302 : vector<2x64xf32>
    %311 = arith.addf %309, %310 : vector<2x64xf32>
    %312 = math.tanh %311 : vector<2x64xf32>
    %313 = arith.mulf %308, %312 : vector<2x64xf32>
    %314 = arith.index_cast %c7_i32 : i32 to index
    %c0_76 = arith.constant 0 : index
    %c0_77 = arith.constant 0 : index
    %315 = vector.load %arg22[%314, %c0_76, %c0_77] : memref<8x2x64xf32, #tpu.memory_space<vmem>>, vector<1x2x64xf32>
    %316 = vector.shape_cast %315 : vector<1x2x64xf32> to vector<2x64xf32>
    %317 = vector.shape_cast %313 : vector<2x64xf32> to vector<1x2x64xf32>
    tpu.vector_store %arg22[%314, %c0_76, %c0_77], %317 {strides = array<i32>} : memref<8x2x64xf32, #tpu.memory_space<vmem>>, vector<1x2x64xf32>,
    %c8_i32 = arith.constant 8 : i32
    %c0_78 = arith.constant 0 : index
    %c0_79 = arith.constant 0 : index
    %318 = vector.load %arg20[%c0_78, %c0_79] : memref<2x64xf32, #tpu.memory_space<vmem>>, vector<2x64xf32>
    tpu.vector_store %arg20[%c0_78, %c0_79], %313 {strides = array<i32>} : memref<2x64xf32, #tpu.memory_space<vmem>>, vector<2x64xf32>,
    %c0_80 = arith.constant 0 : index
    %c0_81 = arith.constant 0 : index
    %319 = vector.load %arg21[%c0_80, %c0_81] : memref<2x64xf32, #tpu.memory_space<vmem>>, vector<2x64xf32>
    tpu.vector_store %arg21[%c0_80, %c0_81], %311 {strides = array<i32>} : memref<2x64xf32, #tpu.memory_space<vmem>>, vector<2x64xf32>,
    %c0_i32_82 = arith.constant 0 : i32
    %320 = arith.cmpi eq, %arg0, %c0_i32_82 : i32
    %321 = arith.extui %320 : i1 to i32
    %c0_i32_83 = arith.constant 0 : i32
    %322 = arith.cmpi ne, %321, %c0_i32_83 : i32
    scf.if %322 {
      %c0_117 = arith.constant 0 : index
      %c0_118 = arith.constant 0 : index
      %363 = vector.load %arg18[%c0_117, %c0_118] : memref<2x64xf32, #tpu.memory_space<vmem>>, vector<2x64xf32>
      tpu.vector_store %arg18[%c0_117, %c0_118], %313 {strides = array<i32>} : memref<2x64xf32, #tpu.memory_space<vmem>>, vector<2x64xf32>,
      %c0_119 = arith.constant 0 : index
      %c0_120 = arith.constant 0 : index
      %364 = vector.load %arg19[%c0_119, %c0_120] : memref<2x64xf32, #tpu.memory_space<vmem>>, vector<2x64xf32>
      tpu.vector_store %arg19[%c0_119, %c0_120], %311 {strides = array<i32>} : memref<2x64xf32, #tpu.memory_space<vmem>>, vector<2x64xf32>,
    } else {
    }
    %c0_84 = arith.constant 0 : index
    %c0_85 = arith.constant 0 : index
    %c0_86 = arith.constant 0 : index
    %323 = vector.load %arg22[%c0_84, %c0_85, %c0_86] : memref<8x2x64xf32, #tpu.memory_space<vmem>>, vector<8x2x64xf32>
    %324 = vector.shape_cast %323 : vector<8x2x64xf32> to vector<16x64xf32>
    %325 = arith.truncf %324 : vector<16x64xf32> to vector<16x64xbf16>
    %c0_87 = arith.constant 0 : index
    %c0_88 = arith.constant 0 : index
    %326 = vector.load %arg6[%c0_87, %c0_88] : memref<64x512xbf16, #tpu.memory_space<vmem>>, vector<64x512xbf16>
    %cst_89 = arith.constant dense<0.000000e+00> : vector<16x512xf32>
    %327 = tpu.matmul %325, %326, %cst_89 {dimension_numbers = #tpu.dot_dimension_numbers<[1], [0], [0], [1], [0, 0, 1, 1], [], []>} : vector<16x64xbf16>, vector<64x512xbf16>, vector<16x512xf32> -> vector<16x512xf32>
    %c0_90 = arith.constant 0 : index
    %c0_91 = arith.constant 0 : index
    %328 = vector.load %arg8[%c0_90, %c0_91] : memref<1x512xf32, #tpu.memory_space<vmem>>, vector<1x512xf32>
    %329 = vector.broadcast %328 : vector<1x512xf32> to vector<16x512xf32>
    %330 = arith.addf %327, %329 : vector<16x512xf32>
    %331 = math.tanh %330 : vector<16x512xf32>
    %c0_92 = arith.constant 0 : index
    %c0_93 = arith.constant 0 : index
    %332 = vector.load %arg7[%c0_92, %c0_93] : memref<64x512xbf16, #tpu.memory_space<vmem>>, vector<64x512xbf16>
    %cst_94 = arith.constant dense<0.000000e+00> : vector<16x512xf32>
    %333 = tpu.matmul %325, %332, %cst_94 {dimension_numbers = #tpu.dot_dimension_numbers<[1], [0], [0], [1], [0, 0, 1, 1], [], []>} : vector<16x64xbf16>, vector<64x512xbf16>, vector<16x512xf32> -> vector<16x512xf32>
    %c0_95 = arith.constant 0 : index
    %c0_96 = arith.constant 0 : index
    %334 = vector.load %arg9[%c0_95, %c0_96] : memref<1x512xf32, #tpu.memory_space<vmem>>, vector<1x512xf32>
    %335 = vector.broadcast %334 : vector<1x512xf32> to vector<16x512xf32>
    %336 = arith.addf %333, %335 : vector<16x512xf32>
    %337 = math.tanh %336 : vector<16x512xf32>
    %338 = arith.truncf %331 : vector<16x512xf32> to vector<16x512xbf16>
    %c0_97 = arith.constant 0 : index
    %c0_98 = arith.constant 0 : index
    %339 = vector.load %arg10[%c0_97, %c0_98] : memref<512x512xbf16, #tpu.memory_space<vmem>>, vector<512x512xbf16>
    %cst_99 = arith.constant dense<0.000000e+00> : vector<16x512xf32>
    %340 = tpu.matmul %338, %339, %cst_99 {dimension_numbers = #tpu.dot_dimension_numbers<[1], [0], [0], [1], [0, 0, 1, 1], [], []>} : vector<16x512xbf16>, vector<512x512xbf16>, vector<16x512xf32> -> vector<16x512xf32>
    %c0_100 = arith.constant 0 : index
    %c0_101 = arith.constant 0 : index
    %341 = vector.load %arg12[%c0_100, %c0_101] : memref<1x512xf32, #tpu.memory_space<vmem>>, vector<1x512xf32>
    %342 = vector.broadcast %341 : vector<1x512xf32> to vector<16x512xf32>
    %343 = arith.addf %340, %342 : vector<16x512xf32>
    %344 = math.tanh %343 : vector<16x512xf32>
    %345 = arith.truncf %337 : vector<16x512xf32> to vector<16x512xbf16>
    %c0_102 = arith.constant 0 : index
    %c0_103 = arith.constant 0 : index
    %346 = vector.load %arg11[%c0_102, %c0_103] : memref<512x512xbf16, #tpu.memory_space<vmem>>, vector<512x512xbf16>
    %cst_104 = arith.constant dense<0.000000e+00> : vector<16x512xf32>
    %347 = tpu.matmul %345, %346, %cst_104 {dimension_numbers = #tpu.dot_dimension_numbers<[1], [0], [0], [1], [0, 0, 1, 1], [], []>} : vector<16x512xbf16>, vector<512x512xbf16>, vector<16x512xf32> -> vector<16x512xf32>
    %c0_105 = arith.constant 0 : index
    %c0_106 = arith.constant 0 : index
    %348 = vector.load %arg13[%c0_105, %c0_106] : memref<1x512xf32, #tpu.memory_space<vmem>>, vector<1x512xf32>
    %349 = vector.broadcast %348 : vector<1x512xf32> to vector<16x512xf32>
    %350 = arith.addf %347, %349 : vector<16x512xf32>
    %351 = math.tanh %350 : vector<16x512xf32>
    %352 = arith.truncf %344 : vector<16x512xf32> to vector<16x512xbf16>
    %c0_107 = arith.constant 0 : index
    %c0_108 = arith.constant 0 : index
    %353 = vector.load %arg14[%c0_107, %c0_108] : memref<512x128xbf16, #tpu.memory_space<vmem>>, vector<512x128xbf16>
    %cst_109 = arith.constant dense<0.000000e+00> : vector<16x128xf32>
    %354 = tpu.matmul %352, %353, %cst_109 {dimension_numbers = #tpu.dot_dimension_numbers<[1], [0], [0], [1], [0, 0, 1, 1], [], []>} : vector<16x512xbf16>, vector<512x128xbf16>, vector<16x128xf32> -> vector<16x128xf32>
    %355 = arith.truncf %351 : vector<16x512xf32> to vector<16x512xbf16>
    %c0_110 = arith.constant 0 : index
    %c0_111 = arith.constant 0 : index
    %356 = vector.load %arg15[%c0_110, %c0_111] : memref<512x128xbf16, #tpu.memory_space<vmem>>, vector<512x128xbf16>
    %cst_112 = arith.constant dense<0.000000e+00> : vector<16x128xf32>
    %357 = tpu.matmul %355, %356, %cst_112 {dimension_numbers = #tpu.dot_dimension_numbers<[1], [0], [0], [1], [0, 0, 1, 1], [], []>} : vector<16x512xbf16>, vector<512x128xbf16>, vector<16x128xf32> -> vector<16x128xf32>
    %358 = arith.addf %354, %357 : vector<16x128xf32>
    %c0_113 = arith.constant 0 : index
    %c0_114 = arith.constant 0 : index
    %359 = vector.load %arg16[%c0_113, %c0_114] : memref<1x128xf32, #tpu.memory_space<vmem>>, vector<1x128xf32>
    %360 = vector.broadcast %359 : vector<1x128xf32> to vector<16x128xf32>
    %361 = arith.addf %358, %360 : vector<16x128xf32>
    %c0_115 = arith.constant 0 : index
    %c0_116 = arith.constant 0 : index
    %362 = vector.load %arg17[%c0_115, %c0_116] : memref<16x128xf32, #tpu.memory_space<vmem>>, vector<16x128xf32>
    tpu.vector_store %arg17[%c0_115, %c0_116], %361 {strides = array<i32>} : memref<16x128xf32, #tpu.memory_space<vmem>>, vector<16x128xf32>,
    return
  }
  func.func @transform_0(%arg0: i32) -> (i32, i32, i32) {
    %c0_i32 = arith.constant 0 : i32
    %c0_i32_0 = arith.constant 0 : i32
    %c0_i32_1 = arith.constant 0 : i32
    return %arg0, %c0_i32, %c0_i32_0 : i32, i32, i32
  }
  func.func @transform_1(%arg0: i32) -> (i32, i32, i32) {
    %c0_i32 = arith.constant 0 : i32
    %c0_i32_0 = arith.constant 0 : i32
    %c0_i32_1 = arith.constant 0 : i32
    return %arg0, %c0_i32, %c0_i32_0 : i32, i32, i32
  }
  func.func @transform_2(%arg0: i32) -> (i32, i32) {
    %c0_i32 = arith.constant 0 : i32
    %c0_i32_0 = arith.constant 0 : i32
    %c0_i32_1 = arith.constant 0 : i32
    return %c0_i32, %c0_i32_0 : i32, i32
  }
  func.func @transform_3(%arg0: i32) -> (i32, i32) {
    %c0_i32 = arith.constant 0 : i32
    %c0_i32_0 = arith.constant 0 : i32
    %c0_i32_1 = arith.constant 0 : i32
    return %c0_i32, %c0_i32_0 : i32, i32
  }
  func.func @transform_4(%arg0: i32) -> (i32, i32) {
    %c0_i32 = arith.constant 0 : i32
    %c0_i32_0 = arith.constant 0 : i32
    %c0_i32_1 = arith.constant 0 : i32
    return %c0_i32, %c0_i32_0 : i32, i32
  }
  func.func @transform_5(%arg0: i32) -> (i32, i32) {
    %c0_i32 = arith.constant 0 : i32
    %c0_i32_0 = arith.constant 0 : i32
    %c0_i32_1 = arith.constant 0 : i32
    return %c0_i32, %c0_i32_0 : i32, i32
  }
  func.func @transform_6(%arg0: i32) -> (i32, i32) {
    %c0_i32 = arith.constant 0 : i32
    %c0_i32_0 = arith.constant 0 : i32
    %c0_i32_1 = arith.constant 0 : i32
    return %c0_i32, %c0_i32_0 : i32, i32
  }
  func.func @transform_7(%arg0: i32) -> (i32, i32) {
    %c0_i32 = arith.constant 0 : i32
    %c0_i32_0 = arith.constant 0 : i32
    %c0_i32_1 = arith.constant 0 : i32
    return %c0_i32, %c0_i32_0 : i32, i32
  }
  func.func @transform_8(%arg0: i32) -> (i32, i32) {
    %c0_i32 = arith.constant 0 : i32
    %c0_i32_0 = arith.constant 0 : i32
    %c0_i32_1 = arith.constant 0 : i32
    return %c0_i32, %c0_i32_0 : i32, i32
  }
  func.func @transform_9(%arg0: i32) -> (i32, i32) {
    %c0_i32 = arith.constant 0 : i32
    %c0_i32_0 = arith.constant 0 : i32
    %c0_i32_1 = arith.constant 0 : i32
    return %c0_i32, %c0_i32_0 : i32, i32
  }
  func.func @transform_10(%arg0: i32) -> (i32, i32) {
    %c0_i32 = arith.constant 0 : i32
    %c0_i32_0 = arith.constant 0 : i32
    %c0_i32_1 = arith.constant 0 : i32
    return %c0_i32, %c0_i32_0 : i32, i32
  }
  func.func @transform_11(%arg0: i32) -> (i32, i32) {
    %c0_i32 = arith.constant 0 : i32
    %c0_i32_0 = arith.constant 0 : i32
    %c0_i32_1 = arith.constant 0 : i32
    return %c0_i32, %c0_i32_0 : i32, i32
  }
  func.func @transform_12(%arg0: i32) -> (i32, i32) {
    %c0_i32 = arith.constant 0 : i32
    %c0_i32_0 = arith.constant 0 : i32
    %c0_i32_1 = arith.constant 0 : i32
    return %c0_i32, %c0_i32_0 : i32, i32
  }
  func.func @transform_13(%arg0: i32) -> (i32, i32) {
    %c0_i32 = arith.constant 0 : i32
    %c0_i32_0 = arith.constant 0 : i32
    %c0_i32_1 = arith.constant 0 : i32
    return %c0_i32, %c0_i32_0 : i32, i32
  }
  func.func @transform_14(%arg0: i32) -> (i32, i32) {
    %c0_i32 = arith.constant 0 : i32
    %c0_i32_0 = arith.constant 0 : i32
    %c0_i32_1 = arith.constant 0 : i32
    return %c0_i32, %c0_i32_0 : i32, i32
  }
  func.func @transform_15(%arg0: i32) -> (i32, i32) {
    %c0_i32 = arith.constant 0 : i32
    %c0_i32_0 = arith.constant 0 : i32
    %c0_i32_1 = arith.constant 0 : i32
    return %c0_i32, %c0_i32_0 : i32, i32
  }
  func.func @transform_16(%arg0: i32) -> (i32, i32) {
    %c0_i32 = arith.constant 0 : i32
    %c0_i32_0 = arith.constant 0 : i32
    return %arg0, %c0_i32 : i32, i32
  }
  func.func @transform_17(%arg0: i32) -> (i32, i32) {
    %c0_i32 = arith.constant 0 : i32
    %c0_i32_0 = arith.constant 0 : i32
    %c0_i32_1 = arith.constant 0 : i32
    return %c0_i32, %c0_i32_0 : i32, i32
  }
  func.func @transform_18(%arg0: i32) -> (i32, i32) {
    %c0_i32 = arith.constant 0 : i32
    %c0_i32_0 = arith.constant 0 : i32
    %c0_i32_1 = arith.constant 0 : i32
    return %c0_i32, %c0_i32_0 : i32, i32
  }
}

</mosaic_0001>

<llo_original>
// kernel: lstm_mlp_forward.1
$region0: #{lstm_mlp_forward.1}
  #allocation0 [shape = 'u32[]', space=smem, size = 0x4, offset = 0x4, fixed_abs, tag = 'smem constant byte address 0x4 - core index']
  #allocation1 [shape = 'u32[72,128]{1,0:T(1,128)}', space=vmem, size = 0x9000, scoped, tag = 'internal scratch']
  #allocation2 [shape = 'f32[2,64]{1,0:T(2,128)}', space=vmem, size = 0x400, scoped, tag = 'scratch operand']
  #allocation3 [shape = 'f32[2,64]{1,0:T(2,128)}', space=vmem, size = 0x400, scoped, tag = 'scratch operand']
  #allocation4 [shape = 'f32[8,2,64]{2,1,0:T(2,128)}', space=vmem, size = 0x2000, scoped, tag = 'scratch operand']
  %s0 = inlined_call_operand.vmem [shape: f32[8,2,256], index: 0, kind: input, shape index: {}]
  %s1 = inlined_call_operand.vmem [shape: f32[8,2,1], index: 1, kind: input, shape index: {}]
  %s2 = inlined_call_operand.vmem [shape: f32[2,64], index: 2, kind: input, shape index: {}]
  %s3 = inlined_call_operand.vmem [shape: f32[2,64], index: 3, kind: input, shape index: {}]
  %s4 = inlined_call_operand.hbm [shape: bf16[64,256], index: 4, kind: input, shape index: {}]
  %s5 = inlined_call_operand.vmem [shape: bf16[64,512], index: 5, kind: input, shape index: {}]
  %s6 = inlined_call_operand.hbm [shape: bf16[64,512], index: 6, kind: input, shape index: {}]
  %s7 = inlined_call_operand.vmem [shape: f32[1,512], index: 7, kind: input, shape index: {}]
  %s8 = inlined_call_operand.vmem [shape: f32[1,512], index: 8, kind: input, shape index: {}]
  %s9 = inlined_call_operand.hbm [shape: bf16[512,512], index: 9, kind: input, shape index: {}]
  %s10 = inlined_call_operand.hbm [shape: bf16[512,512], index: 10, kind: input, shape index: {}]
  %s11 = inlined_call_operand.vmem [shape: f32[1,512], index: 11, kind: input, shape index: {}]
  %s12 = inlined_call_operand.vmem [shape: f32[1,512], index: 12, kind: input, shape index: {}]
  %s13 = inlined_call_operand.hbm [shape: bf16[512,128], index: 13, kind: input, shape index: {}]
  %s14 = inlined_call_operand.hbm [shape: bf16[512,128], index: 14, kind: input, shape index: {}]
  %s15 = inlined_call_operand.vmem [shape: f32[1,128], index: 15, kind: input, shape index: {}]
  %s16 = inlined_call_operand.vmem [shape: f32[16,128], index: 16, kind: output, shape index: {0}]
  %s17 = inlined_call_operand.hbm [shape: f32[2,64], index: 17, kind: output, shape index: {1}]
  %s18 = inlined_call_operand.hbm [shape: f32[2,64], index: 18, kind: output, shape index: {2}]
  %19 = xla_tuple %s16, %s17, %s18
  %s20 = sld [smem:[#allocation0]]
  $region122: #{lstm_mlp_forward.1} parent=0
    _
  %s22 = ssub.s32 1, %s20
  %s23 = scalar_select 0, %s22, %s20
  $region1: #{lstm_mlp_forward.1} parent=0
    #allocation5 [shape = 'u8[32768]{0}', space=vmem, size = 0x8000, scoped, tag = 'input window, operand 4, single buffered']
    #allocation6 [shape = 's32[1]{0}', space=sflag, size = 0x4, scoped, tag = 'scoped memory for lstm_mlp_forward.1']
    #allocation7 [shape = 's32[1]{0}', space=sflag, size = 0x4, scoped, tag = 'scoped memory for lstm_mlp_forward.1']
    #allocation8 [shape = 'u8[65536]{0}', space=vmem, size = 0x10000, scoped, tag = 'input window, operand 6, single buffered']
    #allocation9 [shape = 's32[1]{0}', space=sflag, size = 0x4, scoped, tag = 'scoped memory for lstm_mlp_forward.1']
    #allocation10 [shape = 'u8[524288]{0}', space=vmem, size = 0x80000, scoped, tag = 'input window, operand 9, single buffered']
    #allocation11 [shape = 'u8[524288]{0}', space=vmem, size = 0x80000, scoped, tag = 'input window, operand 10, single buffered']
    #allocation12 [shape = 's32[1]{0}', space=sflag, size = 0x4, scoped, tag = 'scoped memory for lstm_mlp_forward.1']
    #allocation13 [shape = 'u8[131072]{0}', space=vmem, size = 0x20000, scoped, tag = 'input window, operand 13, single buffered']
    #allocation14 [shape = 'u8[131072]{0}', space=vmem, size = 0x20000, scoped, tag = 'input window, operand 14, single buffered']
    #allocation15 [shape = 's32[1]{0}', space=sflag, size = 0x4, scoped, tag = 'scoped memory for lstm_mlp_forward.1']
    #allocation16 [shape = 'u8[1024]{0}', space=vmem, size = 0x400, scoped, tag = 'output window, operand 1, single buffered']
    #allocation17 [shape = 'u8[1024]{0}', space=vmem, size = 0x400, scoped, tag = 'output window, operand 2, single buffered']
    #allocation18 [shape = 's32[1]{0}', space=sflag, size = 0x4, scoped, tag = 'scoped memory for lstm_mlp_forward.1']
    %24 = vsyncpa [#allocation6], 0
    %25 = vsyncpa [#allocation9], 0
    %26 = vsyncpa [#allocation12], 0
    %27 = vsyncpa [#allocation15], 0
    %28 = vsyncpa [#allocation7], 0
    %29 = vsyncpa [#allocation18], 0
    // Predicated region
    $region2: #{lstm_mlp_forward.1} parent=1 // pred_check
      _
    $region3: #{lstm_mlp_forward.1} parent=1 // pred_check_branch
      %31 = sbr.rel (0) target = $region5
    $region4: #{lstm_mlp_forward.1} parent=1 // pred_region
      _
    $region5: #{lstm_mlp_forward.1} parent=1 // pred_fallthru
      _
    // Predicated region
    $region6: #{lstm_mlp_forward.1} parent=1 // pred_check
      _
    $region7: #{lstm_mlp_forward.1} parent=1 // pred_check_branch
      %33 = sbr.rel (0) target = $region9
    $region8: #{lstm_mlp_forward.1} parent=1 // pred_region
      _
    $region9: #{lstm_mlp_forward.1} parent=1 // pred_fallthru
      _
    // Predicated region
    $region10: #{lstm_mlp_forward.1} parent=1 // pred_check
      _
    $region11: #{lstm_mlp_forward.1} parent=1 // pred_check_branch
      %35 = sbr.rel (0) target = $region13
    $region12: #{lstm_mlp_forward.1} parent=1 // pred_region
      _
    $region13: #{lstm_mlp_forward.1} parent=1 // pred_fallthru
      _
    // Predicated region
    $region14: #{lstm_mlp_forward.1} parent=1 // pred_check
      _
    $region15: #{lstm_mlp_forward.1} parent=1 // pred_check_branch
      %37 = sbr.rel (0) target = $region17
    $region16: #{lstm_mlp_forward.1} parent=1 // pred_region
      _
    $region17: #{lstm_mlp_forward.1} parent=1 // pred_fallthru
      _
    // Predicated region
    $region18: #{lstm_mlp_forward.1} parent=1 // pred_check
      _
    $region19: #{lstm_mlp_forward.1} parent=1 // pred_check_branch
      %39 = sbr.rel (0) target = $region21
    $region20: #{lstm_mlp_forward.1} parent=1 // pred_region
      %41 = vsyncadd [#allocation6], 0
      %s42 = sshll.u32 %s4, 4
      %s43 = int_to_ptr.hbm [resolvable:$true] %s42
      %s44 = sshll.u32 [#allocation5], 4
      %s45 = int_to_ptr.vmem [resolvable:$true] %s44
      %50 = dma.hbm_to_vmem [thread:$0]  %s43, 1024, %s45, [#allocation6], 128, 128, 8
    $region21: #{lstm_mlp_forward.1} parent=1 // pred_fallthru
      _
    // Predicated region
    $region22: #{lstm_mlp_forward.1} parent=1 // pred_check
      _
    $region23: #{lstm_mlp_forward.1} parent=1 // pred_check_branch
      %52 = sbr.rel (0) target = $region25
    $region24: #{lstm_mlp_forward.1} parent=1 // pred_region
      _
    $region25: #{lstm_mlp_forward.1} parent=1 // pred_fallthru
      _
    // Predicated region
    $region26: #{lstm_mlp_forward.1} parent=1 // pred_check
      _
    $region27: #{lstm_mlp_forward.1} parent=1 // pred_check_branch
      %54 = sbr.rel (0) target = $region29
    $region28: #{lstm_mlp_forward.1} parent=1 // pred_region
      %56 = vsyncadd [#allocation9], 0
      %s57 = sshll.u32 %s6, 4
      %s58 = int_to_ptr.hbm [resolvable:$true] %s57
      %s59 = sshll.u32 [#allocation8], 4
      %s60 = int_to_ptr.vmem [resolvable:$true] %s59
      %65 = dma.hbm_to_vmem [thread:$0]  %s58, 2048, %s60, [#allocation9], 256, 256, 16
    $region29: #{lstm_mlp_forward.1} parent=1 // pred_fallthru
      _
    // Predicated region
    $region30: #{lstm_mlp_forward.1} parent=1 // pred_check
      _
    $region31: #{lstm_mlp_forward.1} parent=1 // pred_check_branch
      %67 = sbr.rel (0) target = $region33
    $region32: #{lstm_mlp_forward.1} parent=1 // pred_region
      _
    $region33: #{lstm_mlp_forward.1} parent=1 // pred_fallthru
      _
    // Predicated region
    $region34: #{lstm_mlp_forward.1} parent=1 // pred_check
      _
    $region35: #{lstm_mlp_forward.1} parent=1 // pred_check_branch
      %69 = sbr.rel (0) target = $region37
    $region36: #{lstm_mlp_forward.1} parent=1 // pred_region
      _
    $region37: #{lstm_mlp_forward.1} parent=1 // pred_fallthru
      _
    // Predicated region
    $region38: #{lstm_mlp_forward.1} parent=1 // pred_check
      _
    $region39: #{lstm_mlp_forward.1} parent=1 // pred_check_branch
      %71 = sbr.rel (0) target = $region41
    $region40: #{lstm_mlp_forward.1} parent=1 // pred_region
      %73 = vsyncadd [#allocation9], 0
      %s74 = sshll.u32 %s9, 4
      %s75 = int_to_ptr.hbm [resolvable:$true] %s74
      %s76 = sshll.u32 [#allocation10], 4
      %s77 = int_to_ptr.vmem [resolvable:$true] %s76
      %82 = dma.hbm_to_vmem [thread:$0]  %s75, 16384, %s77, [#allocation9], 256, 256, 16
    $region41: #{lstm_mlp_forward.1} parent=1 // pred_fallthru
      _
    // Predicated region
    $region42: #{lstm_mlp_forward.1} parent=1 // pred_check
      _
    $region43: #{lstm_mlp_forward.1} parent=1 // pred_check_branch
      %84 = sbr.rel (0) target = $region45
    $region44: #{lstm_mlp_forward.1} parent=1 // pred_region
      %86 = vsyncadd [#allocation12], 0
      %s87 = sshll.u32 %s10, 4
      %s88 = int_to_ptr.hbm [resolvable:$true] %s87
      %s89 = sshll.u32 [#allocation11], 4
      %s90 = int_to_ptr.vmem [resolvable:$true] %s89
      %95 = dma.hbm_to_vmem [thread:$0]  %s88, 16384, %s90, [#allocation12], 256, 256, 16
    $region45: #{lstm_mlp_forward.1} parent=1 // pred_fallthru
      _
    // Predicated region
    $region46: #{lstm_mlp_forward.1} parent=1 // pred_check
      _
    $region47: #{lstm_mlp_forward.1} parent=1 // pred_check_branch
      %97 = sbr.rel (0) target = $region49
    $region48: #{lstm_mlp_forward.1} parent=1 // pred_region
      _
    $region49: #{lstm_mlp_forward.1} parent=1 // pred_fallthru
      _
    // Predicated region
    $region50: #{lstm_mlp_forward.1} parent=1 // pred_check
      _
    $region51: #{lstm_mlp_forward.1} parent=1 // pred_check_branch
      %99 = sbr.rel (0) target = $region53
    $region52: #{lstm_mlp_forward.1} parent=1 // pred_region
      _
    $region53: #{lstm_mlp_forward.1} parent=1 // pred_fallthru
      _
    // Predicated region
    $region54: #{lstm_mlp_forward.1} parent=1 // pred_check
      _
    $region55: #{lstm_mlp_forward.1} parent=1 // pred_check_branch
      %101 = sbr.rel (0) target = $region57
    $region56: #{lstm_mlp_forward.1} parent=1 // pred_region
      %103 = vsyncadd [#allocation12], 0
      %s104 = sshll.u32 %s13, 4
      %s105 = int_to_ptr.hbm [resolvable:$true] %s104
      %s106 = sshll.u32 [#allocation13], 4
      %s107 = int_to_ptr.vmem [resolvable:$true] %s106
      %112 = dma.hbm_to_vmem [thread:$0]  %s105, 4096, %s107, [#allocation12], 64, 64, 4
    $region57: #{lstm_mlp_forward.1} parent=1 // pred_fallthru
      _
    // Predicated region
    $region58: #{lstm_mlp_forward.1} parent=1 // pred_check
      _
    $region59: #{lstm_mlp_forward.1} parent=1 // pred_check_branch
      %114 = sbr.rel (0) target = $region61
    $region60: #{lstm_mlp_forward.1} parent=1 // pred_region
      %116 = vsyncadd [#allocation15], 0
      %s117 = sshll.u32 %s14, 4
      %s118 = int_to_ptr.hbm [resolvable:$true] %s117
      %s119 = sshll.u32 [#allocation14], 4
      %s120 = int_to_ptr.vmem [resolvable:$true] %s119
      %125 = dma.hbm_to_vmem [thread:$0]  %s118, 4096, %s120, [#allocation15], 64, 64, 4
    $region61: #{lstm_mlp_forward.1} parent=1 // pred_fallthru
      _
    // Predicated region
    $region62: #{lstm_mlp_forward.1} parent=1 // pred_check
      _
    $region63: #{lstm_mlp_forward.1} parent=1 // pred_check_branch
      %127 = sbr.rel (0) target = $region65
    $region64: #{lstm_mlp_forward.1} parent=1 // pred_region
      _
    $region65: #{lstm_mlp_forward.1} parent=1 // pred_fallthru
      _
    // Predicated region
    $region66: #{lstm_mlp_forward.1} parent=1 // pred_check
      _
    $region67: #{lstm_mlp_forward.1} parent=1 // pred_check_branch
      %129 = sbr.rel (0) target = $region69
    $region68: #{lstm_mlp_forward.1} parent=1 // pred_region
      %131 = dma.done [#allocation6], 1024
    $region69: #{lstm_mlp_forward.1} parent=1 // pred_fallthru
      _
    // Predicated region
    $region70: #{lstm_mlp_forward.1} parent=1 // pred_check
      _
    $region71: #{lstm_mlp_forward.1} parent=1 // pred_check_branch
      %133 = sbr.rel (0) target = $region73
    $region72: #{lstm_mlp_forward.1} parent=1 // pred_region
      %135 = dma.done [#allocation9], 2048
    $region73: #{lstm_mlp_forward.1} parent=1 // pred_fallthru
      _
    // Predicated region
    $region74: #{lstm_mlp_forward.1} parent=1 // pred_check
      _
    $region75: #{lstm_mlp_forward.1} parent=1 // pred_check_branch
      %137 = sbr.rel (0) target = $region77
    $region76: #{lstm_mlp_forward.1} parent=1 // pred_region
      %139 = dma.done [#allocation9], 16384
    $region77: #{lstm_mlp_forward.1} parent=1 // pred_fallthru
      _
    // Predicated region
    $region78: #{lstm_mlp_forward.1} parent=1 // pred_check
      _
    $region79: #{lstm_mlp_forward.1} parent=1 // pred_check_branch
      %141 = sbr.rel (0) target = $region81
    $region80: #{lstm_mlp_forward.1} parent=1 // pred_region
      %143 = dma.done [#allocation12], 16384
    $region81: #{lstm_mlp_forward.1} parent=1 // pred_fallthru
      _
    // Predicated region
    $region82: #{lstm_mlp_forward.1} parent=1 // pred_check
      _
    $region83: #{lstm_mlp_forward.1} parent=1 // pred_check_branch
      %145 = sbr.rel (0) target = $region85
    $region84: #{lstm_mlp_forward.1} parent=1 // pred_region
      %147 = dma.done [#allocation12], 4096
    $region85: #{lstm_mlp_forward.1} parent=1 // pred_fallthru
      _
    // Predicated region
    $region86: #{lstm_mlp_forward.1} parent=1 // pred_check
      _
    $region87: #{lstm_mlp_forward.1} parent=1 // pred_check_branch
      %149 = sbr.rel (0) target = $region89
    $region88: #{lstm_mlp_forward.1} parent=1 // pred_region
      %151 = dma.done [#allocation15], 4096
    $region89: #{lstm_mlp_forward.1} parent=1 // pred_fallthru
      _
    %p153 = scmp.eq.s32.totalorder 0, 0
    // Predicated region
    $region90: #{lstm_mlp_forward.1} parent=1 // pred_check
      %p154 = pneg %p153
    $region91: #{lstm_mlp_forward.1} parent=1 // pred_check_branch
      %156 = sbr.rel (%p154) target = $region93
    $region92: #{lstm_mlp_forward.1} parent=1 // pred_region
      %v157 = vld [vmem:[%s2] sm:$0x3]
      %vm158 = vcmask 517120
      %159 = vst.msk [vmem:[#allocation2] sm:$0x3] %vm158, %v157
      %v160 = vld [vmem:[%s3] sm:$0x3]
      %161 = vst.msk [vmem:[#allocation3] sm:$0x3] %vm158, %v160
    $region93: #{lstm_mlp_forward.1} parent=1 // pred_fallthru
      _
    %v162 = vld [vmem:[#allocation5] sm:$0xff]
    %v163 = vld [vmem:[#allocation5 + $0x8] sm:$0xff]
    %v164 = vld [vmem:[#allocation5 + $0x10] sm:$0xff]
    %v165 = vld [vmem:[#allocation5 + $0x18] sm:$0xff]
    %v166 = vld [vmem:[#allocation5 + $0x20] sm:$0xff]
    %v167 = vld [vmem:[#allocation5 + $0x28] sm:$0xff]
    %v168 = vld [vmem:[#allocation5 + $0x30] sm:$0xff]
    %v169 = vld [vmem:[#allocation5 + $0x38] sm:$0xff]
    %v170 = vld [vmem:[#allocation2] sm:$0x3]
    %v171 = vld [vmem:[#allocation3] sm:$0x3]
    %v172 = vld [vmem:[%s1] sm:$0x3]
    %174 = vset.pattern.permute.xlu0 0
    %175 = vperm.xlu0 %174, %v172
    %v176 = vpop.permute.xlu0 %175
    %v178 = vmul.f32 %v170, %v176
    %v179 = vmul.f32 %v171, %v176
    %v180 = vld [vmem:[%s0] sm:$0xf]
    %v181 = vpack.c.bf16 %v178, %v178
    %v190 = vunpack.c.l.b16 %v162
    %v191 = vunpack.c.h.b16 %v162
    %v192 = vunpack.c.l.b16 %v163
    %v193 = vunpack.c.h.b16 %v163
    %v194 = vunpack.c.l.b16 %v164
    %v195 = vunpack.c.h.b16 %v164
    %v196 = vunpack.c.l.b16 %v165
    %v197 = vunpack.c.h.b16 %v165
    %v198 = vunpack.c.l.b16 %v166
    %v199 = vunpack.c.h.b16 %v166
    %v200 = vunpack.c.l.b16 %v167
    %v201 = vunpack.c.h.b16 %v167
    %v202 = vunpack.c.l.b16 %v168
    %v203 = vunpack.c.h.b16 %v168
    %v204 = vunpack.c.l.b16 %v169
    %v205 = vunpack.c.h.b16 %v169
    %v206 = vpack.c.b16 %v192, %v190
    %v207 = vpack.c.b16 %v193, %v191
    %v208 = vpack.c.b16 %v196, %v194
    %v209 = vpack.c.b16 %v197, %v195
    %v210 = vpack.c.b16 %v200, %v198
    %v211 = vpack.c.b16 %v201, %v199
    %v212 = vpack.c.b16 %v204, %v202
    %v213 = vpack.c.b16 %v205, %v203
    %vm222 = vcmask 523264
    %v224 = vsel %vm222, %v181, 0
    %226 = vmatpush.bf16.msra.mxu0 0
    %227 = vmatpush.bf16.msra.mxu0 0
    %228 = vmatpush.bf16.msra.mxu0 0
    %229 = vmatpush.bf16.msra.mxu0 0
    %230 = vmatpush.bf16.msra.mxu0 %v212
    %231 = vmatpush.bf16.msra.mxu0 %v210
    %232 = vmatpush.bf16.msra.mxu0 %v208
    %233 = vmatpush.bf16.msra.mxu0 %v206
    %234 = vmatmul.bf16.gmra.mxu0 %v224
    %v235 = vpop.f32.mrf.mxu0
    %v236 = vadd.f32 0.0, %v235
    %v237 = vpop.f32.mrf.mxu0
    %238 = vdwg.mxu0
    %239 = vmatpush.bf16.msra.mxu0 0
    %240 = vmatpush.bf16.msra.mxu0 0
    %241 = vmatpush.bf16.msra.mxu0 0
    %242 = vmatpush.bf16.msra.mxu0 0
    %243 = vmatpush.bf16.msra.mxu0 %v213
    %244 = vmatpush.bf16.msra.mxu0 %v211
    %245 = vmatpush.bf16.msra.mxu0 %v209
    %246 = vmatpush.bf16.msra.mxu0 %v207
    %247 = vmatmul.bf16.gmra.mxu0 %v224
    %v248 = vpop.f32.mrf.mxu0
    %v249 = vadd.f32 0.0, %v248
    %v250 = vpop.f32.mrf.mxu0
    %251 = vdwg.mxu0
    %v254 = vrot.slane %v249, 6
    %vm255 = vcmask 1041408
    %v256 = vsel %vm255, %v236, %v254
    %v258 = vadd.f32 %v180, %v256
    %v259 = vxor.u32 %v258, 2147483648
    %v260 = vmul.f32 %v259, 1.442695
    %v261 = vpow.pop %v260
    %v262 = vadd.f32 %v261, 1.0
    %v263 = vrcp.pop %v262
    %v264 = vmul.f32 %v262, %v263
    %v265 = vsub.f32 1.0, %v264
    %v266 = vmul.f32 %v263, %v265
    %v267 = vadd.f32 %v263, %v266
    %vm268 = vweird.f32 %v262
    %vm269 = vweird.f32 %v263
    %vm270 = vmor %vm268, %vm269
    %v271 = vsel %vm270, %v263, %v267
    %v272 = vand.u32 2147483647, %v262
    %vm273 = vcmp.eq.f32.partialorder %v272, 8.507059e+37
    %v274 = vand.u32 %v262, 2147483648
    %v275 = vor.u32 1.1754944e-38, %v274
    %v276 = vsel %vm273, %v275, %v271
    %v277 = vmul.f32 1.0, %v276
    %v279 = vrot.slane %v258, 2
    %v281 = vtanh.pop %v279
    %282 = vrot.lane.b32.xlu0 %v258, 64
    %v283 = vpop.permute.xlu0 %282
    %v284 = vrot.slane %v283, 2
    %v286 = vxor.u32 %v284, 2147483648
    %v287 = vmul.f32 %v286, 1.442695
    %v288 = vpow.pop %v287
    %v289 = vadd.f32 %v288, 1.0
    %v290 = vrcp.pop %v289
    %v291 = vmul.f32 %v289, %v290
    %v292 = vsub.f32 1.0, %v291
    %v293 = vmul.f32 %v290, %v292
    %v294 = vadd.f32 %v290, %v293
    %vm295 = vweird.f32 %v289
    %vm296 = vweird.f32 %v290
    %vm297 = vmor %vm295, %vm296
    %v298 = vsel %vm297, %v290, %v294
    %v299 = vand.u32 2147483647, %v289
    %vm300 = vcmp.eq.f32.partialorder %v299, 8.507059e+37
    %v301 = vand.u32 %v289, 2147483648
    %v302 = vor.u32 1.1754944e-38, %v301
    %v303 = vsel %vm300, %v302, %v298
    %v304 = vmul.f32 1.0, %v303
    %306 = vrot.lane.b32.xlu0 %v179, 64
    %v307 = vpop.permute.xlu0 %306
    %v309 = vmul.f32 %v277, %v307
    %v310 = vmul.f32 %v277, %v281
    %312 = vrot.lane.b32.xlu0 %v310, 64
    %v313 = vpop.permute.xlu0 %312
    %v315 = vadd.f32 %v309, %v313
    %v316 = vtanh.pop %v315
    %318 = vrot.lane.b32.xlu0 %v316, 64
    %v319 = vpop.permute.xlu0 %318
    %v321 = vmul.f32 %v304, %v319
    %vm322 = vcmask 517120
    %323 = vst.msk [vmem:[#allocation4] sm:$0x3] %vm322, %v321
    %s324 = scalar_lea.vmem %s1, 2
    %v325 = vld [vmem:[%s324] sm:$0x3]
    %327 = vset.pattern.permute.xlu0 0
    %328 = vperm.xlu0 %327, %v325
    %v329 = vpop.permute.xlu0 %328
    %v331 = vmul.f32 %v321, %v329
    %v332 = vmul.f32 %v315, %v329
    %s333 = scalar_lea.vmem %s0, 4
    %v334 = vld [vmem:[%s333] sm:$0xf]
    %v335 = vpack.c.bf16 %v331, %v331
    %v337 = vsel %vm222, %v335, 0
    %339 = vmatpush.bf16.msra.mxu0 0
    %340 = vmatpush.bf16.msra.mxu0 0
    %341 = vmatpush.bf16.msra.mxu0 0
    %342 = vmatpush.bf16.msra.mxu0 0
    %343 = vmatpush.bf16.msra.mxu0 %v212
    %344 = vmatpush.bf16.msra.mxu0 %v210
    %345 = vmatpush.bf16.msra.mxu0 %v208
    %346 = vmatpush.bf16.msra.mxu0 %v206
    %347 = vmatmul.bf16.gmra.mxu0 %v337
    %v348 = vpop.f32.mrf.mxu0
    %v349 = vadd.f32 0.0, %v348
    %v350 = vpop.f32.mrf.mxu0
    %351 = vdwg.mxu0
    %352 = vmatpush.bf16.msra.mxu0 0
    %353 = vmatpush.bf16.msra.mxu0 0
    %354 = vmatpush.bf16.msra.mxu0 0
    %355 = vmatpush.bf16.msra.mxu0 0
    %356 = vmatpush.bf16.msra.mxu0 %v213
    %357 = vmatpush.bf16.msra.mxu0 %v211
    %358 = vmatpush.bf16.msra.mxu0 %v209
    %359 = vmatpush.bf16.msra.mxu0 %v207
    %360 = vmatmul.bf16.gmra.mxu0 %v337
    %v361 = vpop.f32.mrf.mxu0
    %v362 = vadd.f32 0.0, %v361
    %v363 = vpop.f32.mrf.mxu0
    %364 = vdwg.mxu0
    %v367 = vrot.slane %v362, 6
    %v368 = vsel %vm255, %v349, %v367
    %v370 = vadd.f32 %v334, %v368
    %v371 = vxor.u32 %v370, 2147483648
    %v372 = vmul.f32 %v371, 1.442695
    %v373 = vpow.pop %v372
    %v374 = vadd.f32 %v373, 1.0
    %v375 = vrcp.pop %v374
    %v376 = vmul.f32 %v374, %v375
    %v377 = vsub.f32 1.0, %v376
    %v378 = vmul.f32 %v375, %v377
    %v379 = vadd.f32 %v375, %v378
    %vm380 = vweird.f32 %v374
    %vm381 = vweird.f32 %v375
    %vm382 = vmor %vm380, %vm381
    %v383 = vsel %vm382, %v375, %v379
    %v384 = vand.u32 2147483647, %v374
    %vm385 = vcmp.eq.f32.partialorder %v384, 8.507059e+37
    %v386 = vand.u32 %v374, 2147483648
    %v387 = vor.u32 1.1754944e-38, %v386
    %v388 = vsel %vm385, %v387, %v383
    %v389 = vmul.f32 1.0, %v388
    %v391 = vrot.slane %v370, 2
    %v393 = vtanh.pop %v391
    %394 = vrot.lane.b32.xlu0 %v370, 64
    %v395 = vpop.permute.xlu0 %394
    %v396 = vrot.slane %v395, 2
    %v398 = vxor.u32 %v396, 2147483648
    %v399 = vmul.f32 %v398, 1.442695
    %v400 = vpow.pop %v399
    %v401 = vadd.f32 %v400, 1.0
    %v402 = vrcp.pop %v401
    %v403 = vmul.f32 %v401, %v402
    %v404 = vsub.f32 1.0, %v403
    %v405 = vmul.f32 %v402, %v404
    %v406 = vadd.f32 %v402, %v405
    %vm407 = vweird.f32 %v401
    %vm408 = vweird.f32 %v402
    %vm409 = vmor %vm407, %vm408
    %v410 = vsel %vm409, %v402, %v406
    %v411 = vand.u32 2147483647, %v401
    %vm412 = vcmp.eq.f32.partialorder %v411, 8.507059e+37
    %v413 = vand.u32 %v401, 2147483648
    %v414 = vor.u32 1.1754944e-38, %v413
    %v415 = vsel %vm412, %v414, %v410
    %v416 = vmul.f32 1.0, %v415
    %v417 = vmul.f32 %v389, %v332
    %v418 = vmul.f32 %v389, %v393
    %420 = vrot.lane.b32.xlu0 %v418, 64
    %v421 = vpop.permute.xlu0 %420
    %v423 = vadd.f32 %v417, %v421
    %v424 = vtanh.pop %v423
    %426 = vrot.lane.b32.xlu0 %v424, 64
    %v427 = vpop.permute.xlu0 %426
    %v429 = vmul.f32 %v416, %v427
    %s430 = scalar_lea.vmem [#allocation4], 2
    %431 = vst.msk [vmem:[%s430] sm:$0x3] %vm322, %v429
    %s432 = scalar_lea.vmem %s1, 4
    %v433 = vld [vmem:[%s432] sm:$0x3]
    %435 = vset.pattern.permute.xlu0 0
    %436 = vperm.xlu0 %435, %v433
    %v437 = vpop.permute.xlu0 %436
    %v439 = vmul.f32 %v429, %v437
    %v440 = vmul.f32 %v423, %v437
    %s441 = scalar_lea.vmem %s0, 8
    %v442 = vld [vmem:[%s441] sm:$0xf]
    %v443 = vpack.c.bf16 %v439, %v439
    %v445 = vsel %vm222, %v443, 0
    %447 = vmatpush.bf16.msra.mxu0 0
    %448 = vmatpush.bf16.msra.mxu0 0
    %449 = vmatpush.bf16.msra.mxu0 0
    %450 = vmatpush.bf16.msra.mxu0 0
    %451 = vmatpush.bf16.msra.mxu0 %v212
    %452 = vmatpush.bf16.msra.mxu0 %v210
    %453 = vmatpush.bf16.msra.mxu0 %v208
    %454 = vmatpush.bf16.msra.mxu0 %v206
    %455 = vmatmul.bf16.gmra.mxu0 %v445
    %v456 = vpop.f32.mrf.mxu0
    %v457 = vadd.f32 0.0, %v456
    %v458 = vpop.f32.mrf.mxu0
    %459 = vdwg.mxu0
    %460 = vmatpush.bf16.msra.mxu0 0
    %461 = vmatpush.bf16.msra.mxu0 0
    %462 = vmatpush.bf16.msra.mxu0 0
    %463 = vmatpush.bf16.msra.mxu0 0
    %464 = vmatpush.bf16.msra.mxu0 %v213
    %465 = vmatpush.bf16.msra.mxu0 %v211
    %466 = vmatpush.bf16.msra.mxu0 %v209
    %467 = vmatpush.bf16.msra.mxu0 %v207
    %468 = vmatmul.bf16.gmra.mxu0 %v445
    %v469 = vpop.f32.mrf.mxu0
    %v470 = vadd.f32 0.0, %v469
    %v471 = vpop.f32.mrf.mxu0
    %472 = vdwg.mxu0
    %v475 = vrot.slane %v470, 6
    %v476 = vsel %vm255, %v457, %v475
    %v478 = vadd.f32 %v442, %v476
    %v479 = vxor.u32 %v478, 2147483648
    %v480 = vmul.f32 %v479, 1.442695
    %v481 = vpow.pop %v480
    %v482 = vadd.f32 %v481, 1.0
    %v483 = vrcp.pop %v482
    %v484 = vmul.f32 %v482, %v483
    %v485 = vsub.f32 1.0, %v484
    %v486 = vmul.f32 %v483, %v485
    %v487 = vadd.f32 %v483, %v486
    %vm488 = vweird.f32 %v482
    %vm489 = vweird.f32 %v483
    %vm490 = vmor %vm488, %vm489
    %v491 = vsel %vm490, %v483, %v487
    %v492 = vand.u32 2147483647, %v482
    %vm493 = vcmp.eq.f32.partialorder %v492, 8.507059e+37
    %v494 = vand.u32 %v482, 2147483648
    %v495 = vor.u32 1.1754944e-38, %v494
    %v496 = vsel %vm493, %v495, %v491
    %v497 = vmul.f32 1.0, %v496
    %v499 = vrot.slane %v478, 2
    %v501 = vtanh.pop %v499
    %502 = vrot.lane.b32.xlu0 %v478, 64
    %v503 = vpop.permute.xlu0 %502
    %v504 = vrot.slane %v503, 2
    %v506 = vxor.u32 %v504, 2147483648
    %v507 = vmul.f32 %v506, 1.442695
    %v508 = vpow.pop %v507
    %v509 = vadd.f32 %v508, 1.0
    %v510 = vrcp.pop %v509
    %v511 = vmul.f32 %v509, %v510
    %v512 = vsub.f32 1.0, %v511
    %v513 = vmul.f32 %v510, %v512
    %v514 = vadd.f32 %v510, %v513
    %vm515 = vweird.f32 %v509
    %vm516 = vweird.f32 %v510
    %vm517 = vmor %vm515, %vm516
    %v518 = vsel %vm517, %v510, %v514
    %v519 = vand.u32 2147483647, %v509
    %vm520 = vcmp.eq.f32.partialorder %v519, 8.507059e+37
    %v521 = vand.u32 %v509, 2147483648
    %v522 = vor.u32 1.1754944e-38, %v521
    %v523 = vsel %vm520, %v522, %v518
    %v524 = vmul.f32 1.0, %v523
    %v525 = vmul.f32 %v497, %v440
    %v526 = vmul.f32 %v497, %v501
    %528 = vrot.lane.b32.xlu0 %v526, 64
    %v529 = vpop.permute.xlu0 %528
    %v531 = vadd.f32 %v525, %v529
    %v532 = vtanh.pop %v531
    %534 = vrot.lane.b32.xlu0 %v532, 64
    %v535 = vpop.permute.xlu0 %534
    %v537 = vmul.f32 %v524, %v535
    %s538 = scalar_lea.vmem [#allocation4], 4
    %539 = vst.msk [vmem:[%s538] sm:$0x3] %vm322, %v537
    %s540 = scalar_lea.vmem %s1, 6
    %v541 = vld [vmem:[%s540] sm:$0x3]
    %543 = vset.pattern.permute.xlu0 0
    %544 = vperm.xlu0 %543, %v541
    %v545 = vpop.permute.xlu0 %544
    %v547 = vmul.f32 %v537, %v545
    %v548 = vmul.f32 %v531, %v545
    %s549 = scalar_lea.vmem %s0, 12
    %v550 = vld [vmem:[%s549] sm:$0xf]
    %v551 = vpack.c.bf16 %v547, %v547
    %v553 = vsel %vm222, %v551, 0
    %555 = vmatpush.bf16.msra.mxu0 0
    %556 = vmatpush.bf16.msra.mxu0 0
    %557 = vmatpush.bf16.msra.mxu0 0
    %558 = vmatpush.bf16.msra.mxu0 0
    %559 = vmatpush.bf16.msra.mxu0 %v212
    %560 = vmatpush.bf16.msra.mxu0 %v210
    %561 = vmatpush.bf16.msra.mxu0 %v208
    %562 = vmatpush.bf16.msra.mxu0 %v206
    %563 = vmatmul.bf16.gmra.mxu0 %v553
    %v564 = vpop.f32.mrf.mxu0
    %v565 = vadd.f32 0.0, %v564
    %v566 = vpop.f32.mrf.mxu0
    %567 = vdwg.mxu0
    %568 = vmatpush.bf16.msra.mxu0 0
    %569 = vmatpush.bf16.msra.mxu0 0
    %570 = vmatpush.bf16.msra.mxu0 0
    %571 = vmatpush.bf16.msra.mxu0 0
    %572 = vmatpush.bf16.msra.mxu0 %v213
    %573 = vmatpush.bf16.msra.mxu0 %v211
    %574 = vmatpush.bf16.msra.mxu0 %v209
    %575 = vmatpush.bf16.msra.mxu0 %v207
    %576 = vmatmul.bf16.gmra.mxu0 %v553
    %v577 = vpop.f32.mrf.mxu0
    %v578 = vadd.f32 0.0, %v577
    %v579 = vpop.f32.mrf.mxu0
    %580 = vdwg.mxu0
    %v583 = vrot.slane %v578, 6
    %v584 = vsel %vm255, %v565, %v583
    %v586 = vadd.f32 %v550, %v584
    %v587 = vxor.u32 %v586, 2147483648
    %v588 = vmul.f32 %v587, 1.442695
    %v589 = vpow.pop %v588
    %v590 = vadd.f32 %v589, 1.0
    %v591 = vrcp.pop %v590
    %v592 = vmul.f32 %v590, %v591
    %v593 = vsub.f32 1.0, %v592
    %v594 = vmul.f32 %v591, %v593
    %v595 = vadd.f32 %v591, %v594
    %vm596 = vweird.f32 %v590
    %vm597 = vweird.f32 %v591
    %vm598 = vmor %vm596, %vm597
    %v599 = vsel %vm598, %v591, %v595
    %v600 = vand.u32 2147483647, %v590
    %vm601 = vcmp.eq.f32.partialorder %v600, 8.507059e+37
    %v602 = vand.u32 %v590, 2147483648
    %v603 = vor.u32 1.1754944e-38, %v602
    %v604 = vsel %vm601, %v603, %v599
    %v605 = vmul.f32 1.0, %v604
    %v607 = vrot.slane %v586, 2
    %v609 = vtanh.pop %v607
    %610 = vrot.lane.b32.xlu0 %v586, 64
    %v611 = vpop.permute.xlu0 %610
    %v612 = vrot.slane %v611, 2
    %v614 = vxor.u32 %v612, 2147483648
    %v615 = vmul.f32 %v614, 1.442695
    %v616 = vpow.pop %v615
    %v617 = vadd.f32 %v616, 1.0
    %v618 = vrcp.pop %v617
    %v619 = vmul.f32 %v617, %v618
    %v620 = vsub.f32 1.0, %v619
    %v621 = vmul.f32 %v618, %v620
    %v622 = vadd.f32 %v618, %v621
    %vm623 = vweird.f32 %v617
    %vm624 = vweird.f32 %v618
    %vm625 = vmor %vm623, %vm624
    %v626 = vsel %vm625, %v618, %v622
    %v627 = vand.u32 2147483647, %v617
    %vm628 = vcmp.eq.f32.partialorder %v627, 8.507059e+37
    %v629 = vand.u32 %v617, 2147483648
    %v630 = vor.u32 1.1754944e-38, %v629
    %v631 = vsel %vm628, %v630, %v626
    %v632 = vmul.f32 1.0, %v631
    %v633 = vmul.f32 %v605, %v548
    %v634 = vmul.f32 %v605, %v609
    %636 = vrot.lane.b32.xlu0 %v634, 64
    %v637 = vpop.permute.xlu0 %636
    %v639 = vadd.f32 %v633, %v637
    %v640 = vtanh.pop %v639
    %642 = vrot.lane.b32.xlu0 %v640, 64
    %v643 = vpop.permute.xlu0 %642
    %v645 = vmul.f32 %v632, %v643
    %s646 = scalar_lea.vmem [#allocation4], 6
    %647 = vst.msk [vmem:[%s646] sm:$0x3] %vm322, %v645
    %s648 = scalar_lea.vmem %s1, 8
    %v649 = vld [vmem:[%s648] sm:$0x3]
    %651 = vset.pattern.permute.xlu0 0
    %652 = vperm.xlu0 %651, %v649
    %v653 = vpop.permute.xlu0 %652
    %v655 = vmul.f32 %v645, %v653
    %v656 = vmul.f32 %v639, %v653
    %s657 = scalar_lea.vmem %s0, 16
    %v658 = vld [vmem:[%s657] sm:$0xf]
    %v659 = vpack.c.bf16 %v655, %v655
    %v661 = vsel %vm222, %v659, 0
    %663 = vmatpush.bf16.msra.mxu0 0
    %664 = vmatpush.bf16.msra.mxu0 0
    %665 = vmatpush.bf16.msra.mxu0 0
    %666 = vmatpush.bf16.msra.mxu0 0
    %667 = vmatpush.bf16.msra.mxu0 %v212
    %668 = vmatpush.bf16.msra.mxu0 %v210
    %669 = vmatpush.bf16.msra.mxu0 %v208
    %670 = vmatpush.bf16.msra.mxu0 %v206
    %671 = vmatmul.bf16.gmra.mxu0 %v661
    %v672 = vpop.f32.mrf.mxu0
    %v673 = vadd.f32 0.0, %v672
    %v674 = vpop.f32.mrf.mxu0
    %675 = vdwg.mxu0
    %676 = vmatpush.bf16.msra.mxu0 0
    %677 = vmatpush.bf16.msra.mxu0 0
    %678 = vmatpush.bf16.msra.mxu0 0
    %679 = vmatpush.bf16.msra.mxu0 0
    %680 = vmatpush.bf16.msra.mxu0 %v213
    %681 = vmatpush.bf16.msra.mxu0 %v211
    %682 = vmatpush.bf16.msra.mxu0 %v209
    %683 = vmatpush.bf16.msra.mxu0 %v207
    %684 = vmatmul.bf16.gmra.mxu0 %v661
    %v685 = vpop.f32.mrf.mxu0
    %v686 = vadd.f32 0.0, %v685
    %v687 = vpop.f32.mrf.mxu0
    %688 = vdwg.mxu0
    %v691 = vrot.slane %v686, 6
    %v692 = vsel %vm255, %v673, %v691
    %v694 = vadd.f32 %v658, %v692
    %v695 = vxor.u32 %v694, 2147483648
    %v696 = vmul.f32 %v695, 1.442695
    %v697 = vpow.pop %v696
    %v698 = vadd.f32 %v697, 1.0
    %v699 = vrcp.pop %v698
    %v700 = vmul.f32 %v698, %v699
    %v701 = vsub.f32 1.0, %v700
    %v702 = vmul.f32 %v699, %v701
    %v703 = vadd.f32 %v699, %v702
    %vm704 = vweird.f32 %v698
    %vm705 = vweird.f32 %v699
    %vm706 = vmor %vm704, %vm705
    %v707 = vsel %vm706, %v699, %v703
    %v708 = vand.u32 2147483647, %v698
    %vm709 = vcmp.eq.f32.partialorder %v708, 8.507059e+37
    %v710 = vand.u32 %v698, 2147483648
    %v711 = vor.u32 1.1754944e-38, %v710
    %v712 = vsel %vm709, %v711, %v707
    %v713 = vmul.f32 1.0, %v712
    %v715 = vrot.slane %v694, 2
    %v717 = vtanh.pop %v715
    %718 = vrot.lane.b32.xlu0 %v694, 64
    %v719 = vpop.permute.xlu0 %718
    %v720 = vrot.slane %v719, 2
    %v722 = vxor.u32 %v720, 2147483648
    %v723 = vmul.f32 %v722, 1.442695
    %v724 = vpow.pop %v723
    %v725 = vadd.f32 %v724, 1.0
    %v726 = vrcp.pop %v725
    %v727 = vmul.f32 %v725, %v726
    %v728 = vsub.f32 1.0, %v727
    %v729 = vmul.f32 %v726, %v728
    %v730 = vadd.f32 %v726, %v729
    %vm731 = vweird.f32 %v725
    %vm732 = vweird.f32 %v726
    %vm733 = vmor %vm731, %vm732
    %v734 = vsel %vm733, %v726, %v730
    %v735 = vand.u32 2147483647, %v725
    %vm736 = vcmp.eq.f32.partialorder %v735, 8.507059e+37
    %v737 = vand.u32 %v725, 2147483648
    %v738 = vor.u32 1.1754944e-38, %v737
    %v739 = vsel %vm736, %v738, %v734
    %v740 = vmul.f32 1.0, %v739
    %v741 = vmul.f32 %v713, %v656
    %v742 = vmul.f32 %v713, %v717
    %744 = vrot.lane.b32.xlu0 %v742, 64
    %v745 = vpop.permute.xlu0 %744
    %v747 = vadd.f32 %v741, %v745
    %v748 = vtanh.pop %v747
    %750 = vrot.lane.b32.xlu0 %v748, 64
    %v751 = vpop.permute.xlu0 %750
    %v753 = vmul.f32 %v740, %v751
    %s754 = scalar_lea.vmem [#allocation4], 8
    %755 = vst.msk [vmem:[%s754] sm:$0x3] %vm322, %v753
    %s756 = scalar_lea.vmem %s1, 10
    %v757 = vld [vmem:[%s756] sm:$0x3]
    %759 = vset.pattern.permute.xlu0 0
    %760 = vperm.xlu0 %759, %v757
    %v761 = vpop.permute.xlu0 %760
    %v763 = vmul.f32 %v753, %v761
    %v764 = vmul.f32 %v747, %v761
    %s765 = scalar_lea.vmem %s0, 20
    %v766 = vld [vmem:[%s765] sm:$0xf]
    %v767 = vpack.c.bf16 %v763, %v763
    %v769 = vsel %vm222, %v767, 0
    %771 = vmatpush.bf16.msra.mxu0 0
    %772 = vmatpush.bf16.msra.mxu0 0
    %773 = vmatpush.bf16.msra.mxu0 0
    %774 = vmatpush.bf16.msra.mxu0 0
    %775 = vmatpush.bf16.msra.mxu0 %v212
    %776 = vmatpush.bf16.msra.mxu0 %v210
    %777 = vmatpush.bf16.msra.mxu0 %v208
    %778 = vmatpush.bf16.msra.mxu0 %v206
    %779 = vmatmul.bf16.gmra.mxu0 %v769
    %v780 = vpop.f32.mrf.mxu0
    %v781 = vadd.f32 0.0, %v780
    %v782 = vpop.f32.mrf.mxu0
    %783 = vdwg.mxu0
    %784 = vmatpush.bf16.msra.mxu0 0
    %785 = vmatpush.bf16.msra.mxu0 0
    %786 = vmatpush.bf16.msra.mxu0 0
    %787 = vmatpush.bf16.msra.mxu0 0
    %788 = vmatpush.bf16.msra.mxu0 %v213
    %789 = vmatpush.bf16.msra.mxu0 %v211
    %790 = vmatpush.bf16.msra.mxu0 %v209
    %791 = vmatpush.bf16.msra.mxu0 %v207
    %792 = vmatmul.bf16.gmra.mxu0 %v769
    %v793 = vpop.f32.mrf.mxu0
    %v794 = vadd.f32 0.0, %v793
    %v795 = vpop.f32.mrf.mxu0
    %796 = vdwg.mxu0
    %v799 = vrot.slane %v794, 6
    %v800 = vsel %vm255, %v781, %v799
    %v802 = vadd.f32 %v766, %v800
    %v803 = vxor.u32 %v802, 2147483648
    %v804 = vmul.f32 %v803, 1.442695
    %v805 = vpow.pop %v804
    %v806 = vadd.f32 %v805, 1.0
    %v807 = vrcp.pop %v806
    %v808 = vmul.f32 %v806, %v807
    %v809 = vsub.f32 1.0, %v808
    %v810 = vmul.f32 %v807, %v809
    %v811 = vadd.f32 %v807, %v810
    %vm812 = vweird.f32 %v806
    %vm813 = vweird.f32 %v807
    %vm814 = vmor %vm812, %vm813
    %v815 = vsel %vm814, %v807, %v811
    %v816 = vand.u32 2147483647, %v806
    %vm817 = vcmp.eq.f32.partialorder %v816, 8.507059e+37
    %v818 = vand.u32 %v806, 2147483648
    %v819 = vor.u32 1.1754944e-38, %v818
    %v820 = vsel %vm817, %v819, %v815
    %v821 = vmul.f32 1.0, %v820
    %v823 = vrot.slane %v802, 2
    %v825 = vtanh.pop %v823
    %826 = vrot.lane.b32.xlu0 %v802, 64
    %v827 = vpop.permute.xlu0 %826
    %v828 = vrot.slane %v827, 2
    %v830 = vxor.u32 %v828, 2147483648
    %v831 = vmul.f32 %v830, 1.442695
    %v832 = vpow.pop %v831
    %v833 = vadd.f32 %v832, 1.0
    %v834 = vrcp.pop %v833
    %v835 = vmul.f32 %v833, %v834
    %v836 = vsub.f32 1.0, %v835
    %v837 = vmul.f32 %v834, %v836
    %v838 = vadd.f32 %v834, %v837
    %vm839 = vweird.f32 %v833
    %vm840 = vweird.f32 %v834
    %vm841 = vmor %vm839, %vm840
    %v842 = vsel %vm841, %v834, %v838
    %v843 = vand.u32 2147483647, %v833
    %vm844 = vcmp.eq.f32.partialorder %v843, 8.507059e+37
    %v845 = vand.u32 %v833, 2147483648
    %v846 = vor.u32 1.1754944e-38, %v845
    %v847 = vsel %vm844, %v846, %v842
    %v848 = vmul.f32 1.0, %v847
    %v849 = vmul.f32 %v821, %v764
    %v850 = vmul.f32 %v821, %v825
    %852 = vrot.lane.b32.xlu0 %v850, 64
    %v853 = vpop.permute.xlu0 %852
    %v855 = vadd.f32 %v849, %v853
    %v856 = vtanh.pop %v855
    %858 = vrot.lane.b32.xlu0 %v856, 64
    %v859 = vpop.permute.xlu0 %858
    %v861 = vmul.f32 %v848, %v859
    %s862 = scalar_lea.vmem [#allocation4], 10
    %863 = vst.msk [vmem:[%s862] sm:$0x3] %vm322, %v861
    %s864 = scalar_lea.vmem %s1, 12
    %v865 = vld [vmem:[%s864] sm:$0x3]
    %867 = vset.pattern.permute.xlu0 0
    %868 = vperm.xlu0 %867, %v865
    %v869 = vpop.permute.xlu0 %868
    %v871 = vmul.f32 %v861, %v869
    %v872 = vmul.f32 %v855, %v869
    %s873 = scalar_lea.vmem %s0, 24
    %v874 = vld [vmem:[%s873] sm:$0xf]
    %v875 = vpack.c.bf16 %v871, %v871
    %v877 = vsel %vm222, %v875, 0
    %879 = vmatpush.bf16.msra.mxu0 0
    %880 = vmatpush.bf16.msra.mxu0 0
    %881 = vmatpush.bf16.msra.mxu0 0
    %882 = vmatpush.bf16.msra.mxu0 0
    %883 = vmatpush.bf16.msra.mxu0 %v212
    %884 = vmatpush.bf16.msra.mxu0 %v210
    %885 = vmatpush.bf16.msra.mxu0 %v208
    %886 = vmatpush.bf16.msra.mxu0 %v206
    %887 = vmatmul.bf16.gmra.mxu0 %v877
    %v888 = vpop.f32.mrf.mxu0
    %v889 = vadd.f32 0.0, %v888
    %v890 = vpop.f32.mrf.mxu0
    %891 = vdwg.mxu0
    %892 = vmatpush.bf16.msra.mxu0 0
    %893 = vmatpush.bf16.msra.mxu0 0
    %894 = vmatpush.bf16.msra.mxu0 0
    %895 = vmatpush.bf16.msra.mxu0 0
    %896 = vmatpush.bf16.msra.mxu0 %v213
    %897 = vmatpush.bf16.msra.mxu0 %v211
    %898 = vmatpush.bf16.msra.mxu0 %v209
    %899 = vmatpush.bf16.msra.mxu0 %v207
    %900 = vmatmul.bf16.gmra.mxu0 %v877
    %v901 = vpop.f32.mrf.mxu0
    %v902 = vadd.f32 0.0, %v901
    %v903 = vpop.f32.mrf.mxu0
    %904 = vdwg.mxu0
    %v907 = vrot.slane %v902, 6
    %v908 = vsel %vm255, %v889, %v907
    %v910 = vadd.f32 %v874, %v908
    %v911 = vxor.u32 %v910, 2147483648
    %v912 = vmul.f32 %v911, 1.442695
    %v913 = vpow.pop %v912
    %v914 = vadd.f32 %v913, 1.0
    %v915 = vrcp.pop %v914
    %v916 = vmul.f32 %v914, %v915
    %v917 = vsub.f32 1.0, %v916
    %v918 = vmul.f32 %v915, %v917
    %v919 = vadd.f32 %v915, %v918
    %vm920 = vweird.f32 %v914
    %vm921 = vweird.f32 %v915
    %vm922 = vmor %vm920, %vm921
    %v923 = vsel %vm922, %v915, %v919
    %v924 = vand.u32 2147483647, %v914
    %vm925 = vcmp.eq.f32.partialorder %v924, 8.507059e+37
    %v926 = vand.u32 %v914, 2147483648
    %v927 = vor.u32 1.1754944e-38, %v926
    %v928 = vsel %vm925, %v927, %v923
    %v929 = vmul.f32 1.0, %v928
    %v931 = vrot.slane %v910, 2
    %v933 = vtanh.pop %v931
    %934 = vrot.lane.b32.xlu0 %v910, 64
    %v935 = vpop.permute.xlu0 %934
    %v936 = vrot.slane %v935, 2
    %v938 = vxor.u32 %v936, 2147483648
    %v939 = vmul.f32 %v938, 1.442695
    %v940 = vpow.pop %v939
    %v941 = vadd.f32 %v940, 1.0
    %v942 = vrcp.pop %v941
    %v943 = vmul.f32 %v941, %v942
    %v944 = vsub.f32 1.0, %v943
    %v945 = vmul.f32 %v942, %v944
    %v946 = vadd.f32 %v942, %v945
    %vm947 = vweird.f32 %v941
    %vm948 = vweird.f32 %v942
    %vm949 = vmor %vm947, %vm948
    %v950 = vsel %vm949, %v942, %v946
    %v951 = vand.u32 2147483647, %v941
    %vm952 = vcmp.eq.f32.partialorder %v951, 8.507059e+37
    %v953 = vand.u32 %v941, 2147483648
    %v954 = vor.u32 1.1754944e-38, %v953
    %v955 = vsel %vm952, %v954, %v950
    %v956 = vmul.f32 1.0, %v955
    %v957 = vmul.f32 %v929, %v872
    %v958 = vmul.f32 %v929, %v933
    %960 = vrot.lane.b32.xlu0 %v958, 64
    %v961 = vpop.permute.xlu0 %960
    %v963 = vadd.f32 %v957, %v961
    %v964 = vtanh.pop %v963
    %966 = vrot.lane.b32.xlu0 %v964, 64
    %v967 = vpop.permute.xlu0 %966
    %v969 = vmul.f32 %v956, %v967
    %s970 = scalar_lea.vmem [#allocation4], 12
    %971 = vst.msk [vmem:[%s970] sm:$0x3] %vm322, %v969
    %s972 = scalar_lea.vmem %s1, 14
    %v973 = vld [vmem:[%s972] sm:$0x3]
    %975 = vset.pattern.permute.xlu0 0
    %976 = vperm.xlu0 %975, %v973
    %v977 = vpop.permute.xlu0 %976
    %v979 = vmul.f32 %v969, %v977
    %v980 = vmul.f32 %v963, %v977
    %s981 = scalar_lea.vmem %s0, 28
    %v982 = vld [vmem:[%s981] sm:$0xf]
    %v983 = vpack.c.bf16 %v979, %v979
    %v985 = vsel %vm222, %v983, 0
    %987 = vmatpush.bf16.msra.mxu0 0
    %988 = vmatpush.bf16.msra.mxu0 0
    %989 = vmatpush.bf16.msra.mxu0 0
    %990 = vmatpush.bf16.msra.mxu0 0
    %991 = vmatpush.bf16.msra.mxu0 %v212
    %992 = vmatpush.bf16.msra.mxu0 %v210
    %993 = vmatpush.bf16.msra.mxu0 %v208
    %994 = vmatpush.bf16.msra.mxu0 %v206
    %995 = vmatmul.bf16.gmra.mxu0 %v985
    %v996 = vpop.f32.mrf.mxu0
    %v997 = vadd.f32 0.0, %v996
    %v998 = vpop.f32.mrf.mxu0
    %999 = vdwg.mxu0
    %1000 = vmatpush.bf16.msra.mxu0 0
    %1001 = vmatpush.bf16.msra.mxu0 0
    %1002 = vmatpush.bf16.msra.mxu0 0
    %1003 = vmatpush.bf16.msra.mxu0 0
    %1004 = vmatpush.bf16.msra.mxu0 %v213
    %1005 = vmatpush.bf16.msra.mxu0 %v211
    %1006 = vmatpush.bf16.msra.mxu0 %v209
    %1007 = vmatpush.bf16.msra.mxu0 %v207
    %1008 = vmatmul.bf16.gmra.mxu0 %v985
    %v1009 = vpop.f32.mrf.mxu0
    %v1010 = vadd.f32 0.0, %v1009
    %v1011 = vpop.f32.mrf.mxu0
    %1012 = vdwg.mxu0
    %v1015 = vrot.slane %v1010, 6
    %v1016 = vsel %vm255, %v997, %v1015
    %v1018 = vadd.f32 %v982, %v1016
    %v1019 = vxor.u32 %v1018, 2147483648
    %v1020 = vmul.f32 %v1019, 1.442695
    %v1021 = vpow.pop %v1020
    %v1022 = vadd.f32 %v1021, 1.0
    %v1023 = vrcp.pop %v1022
    %v1024 = vmul.f32 %v1022, %v1023
    %v1025 = vsub.f32 1.0, %v1024
    %v1026 = vmul.f32 %v1023, %v1025
    %v1027 = vadd.f32 %v1023, %v1026
    %vm1028 = vweird.f32 %v1022
    %vm1029 = vweird.f32 %v1023
    %vm1030 = vmor %vm1028, %vm1029
    %v1031 = vsel %vm1030, %v1023, %v1027
    %v1032 = vand.u32 2147483647, %v1022
    %vm1033 = vcmp.eq.f32.partialorder %v1032, 8.507059e+37
    %v1034 = vand.u32 %v1022, 2147483648
    %v1035 = vor.u32 1.1754944e-38, %v1034
    %v1036 = vsel %vm1033, %v1035, %v1031
    %v1037 = vmul.f32 1.0, %v1036
    %v1039 = vrot.slane %v1018, 2
    %v1041 = vtanh.pop %v1039
    %1042 = vrot.lane.b32.xlu0 %v1018, 64
    %v1043 = vpop.permute.xlu0 %1042
    %v1044 = vrot.slane %v1043, 2
    %v1046 = vxor.u32 %v1044, 2147483648
    %v1047 = vmul.f32 %v1046, 1.442695
    %v1048 = vpow.pop %v1047
    %v1049 = vadd.f32 %v1048, 1.0
    %v1050 = vrcp.pop %v1049
    %v1051 = vmul.f32 %v1049, %v1050
    %v1052 = vsub.f32 1.0, %v1051
    %v1053 = vmul.f32 %v1050, %v1052
    %v1054 = vadd.f32 %v1050, %v1053
    %vm1055 = vweird.f32 %v1049
    %vm1056 = vweird.f32 %v1050
    %vm1057 = vmor %vm1055, %vm1056
    %v1058 = vsel %vm1057, %v1050, %v1054
    %v1059 = vand.u32 2147483647, %v1049
    %vm1060 = vcmp.eq.f32.partialorder %v1059, 8.507059e+37
    %v1061 = vand.u32 %v1049, 2147483648
    %v1062 = vor.u32 1.1754944e-38, %v1061
    %v1063 = vsel %vm1060, %v1062, %v1058
    %v1064 = vmul.f32 1.0, %v1063
    %v1065 = vmul.f32 %v1037, %v980
    %v1066 = vmul.f32 %v1037, %v1041
    %1068 = vrot.lane.b32.xlu0 %v1066, 64
    %v1069 = vpop.permute.xlu0 %1068
    %v1071 = vadd.f32 %v1065, %v1069
    %v1072 = vtanh.pop %v1071
    %1074 = vrot.lane.b32.xlu0 %v1072, 64
    %v1075 = vpop.permute.xlu0 %1074
    %v1077 = vmul.f32 %v1064, %v1075
    %s1078 = scalar_lea.vmem [#allocation4], 14
    %1079 = vst.msk [vmem:[%s1078] sm:$0x3] %vm322, %v1077
    %1080 = vst.msk [vmem:[#allocation2] sm:$0x3] %vm322, %v1077
    %1082 = vst [vmem:[#allocation1] ss:$4 sm:$0xff] %v1071
    %v1083 = vld.sshfl [vmem:[#allocation1] sm:$0xff pattern:$0x73625140]
    %1084 = vrot.lane.b32.xlu0 %v1083, 64
    %v1085 = vpop.permute.xlu0 %1084
    %1087 = vst.msk [vmem:[#allocation3] sm:$0x3] %vm322, %v1085
    // Predicated region
    $region94: #{lstm_mlp_forward.1} parent=1 // pred_check
      %p1088 = pneg %p153
    $region95: #{lstm_mlp_forward.1} parent=1 // pred_check_branch
      %1090 = sbr.rel (%p1088) target = $region97
    $region96: #{lstm_mlp_forward.1} parent=1 // pred_region
      %1091 = vst.msk [vmem:[#allocation16] sm:$0x3] %vm322, %v1077
      %1092 = vst [vmem:[#allocation1] ss:$4 sm:$0xff] %v1071
      %v1093 = vld.sshfl [vmem:[#allocation1] sm:$0xff pattern:$0x73625140]
      %1094 = vrot.lane.b32.xlu0 %v1093, 64
      %v1095 = vpop.permute.xlu0 %1094
      %1097 = vst.msk [vmem:[#allocation17] sm:$0x3] %vm322, %v1095
    $region97: #{lstm_mlp_forward.1} parent=1 // pred_fallthru
      _
    %v1098 = vld [vmem:[#allocation4] sm:$0x3]
    %v1099 = vld [vmem:[#allocation4 + $0x2] sm:$0x3]
    %v1100 = vld [vmem:[#allocation4 + $0x4] sm:$0x3]
    %v1101 = vld [vmem:[#allocation4 + $0x6] sm:$0x3]
    %v1102 = vld [vmem:[#allocation4 + $0x8] sm:$0x3]
    %v1103 = vld [vmem:[#allocation4 + $0xa] sm:$0x3]
    %v1104 = vld [vmem:[#allocation4 + $0xc] sm:$0x3]
    %v1105 = vld [vmem:[#allocation4 + $0xe] sm:$0x3]
    %1114 = vst [vmem:[#allocation1] ss:$4 sm:$0xff] %v1098
    %s1115 = scalar_lea.vmem [#allocation1], 1
    %1116 = vst [vmem:[%s1115] ss:$4 sm:$0xff] %v1099
    %s1117 = scalar_lea.vmem [#allocation1], 2
    %1118 = vst [vmem:[%s1117] ss:$4 sm:$0xff] %v1100
    %s1119 = scalar_lea.vmem [#allocation1], 3
    %1120 = vst [vmem:[%s1119] ss:$4 sm:$0xff] %v1101
    %s1121 = scalar_lea.vmem [#allocation1], 32
    %1122 = vst [vmem:[%s1121] ss:$4 sm:$0xff] %v1102
    %s1123 = scalar_lea.vmem [#allocation1], 33
    %1124 = vst [vmem:[%s1123] ss:$4 sm:$0xff] %v1103
    %s1125 = scalar_lea.vmem [#allocation1], 34
    %1126 = vst [vmem:[%s1125] ss:$4 sm:$0xff] %v1104
    %s1127 = scalar_lea.vmem [#allocation1], 35
    %1128 = vst [vmem:[%s1127] ss:$4 sm:$0xff] %v1105
    %v1129 = vld.sshfl [vmem:[#allocation1] sm:$0xff pattern:$0x73625140]
    %v1130 = vld.sshfl [vmem:[#allocation1 + $0x20] sm:$0xff pattern:$0x73625140]
    %v1133 = vpack.c.bf16 %v1130, %v1129
    %v1134 = vld [vmem:[%s5] sm:$0xff]
    %v1135 = vld [vmem:[%s5 + $0x8] sm:$0xff]
    %v1136 = vld [vmem:[%s5 + $0x10] sm:$0xff]
    %v1137 = vld [vmem:[%s5 + $0x18] sm:$0xff]
    %v1138 = vld [vmem:[%s5 + $0x20] sm:$0xff]
    %v1139 = vld [vmem:[%s5 + $0x28] sm:$0xff]
    %v1140 = vld [vmem:[%s5 + $0x30] sm:$0xff]
    %v1141 = vld [vmem:[%s5 + $0x38] sm:$0xff]
    %v1142 = vld [vmem:[%s5 + $0x40] sm:$0xff]
    %v1143 = vld [vmem:[%s5 + $0x48] sm:$0xff]
    %v1144 = vld [vmem:[%s5 + $0x50] sm:$0xff]
    %v1145 = vld [vmem:[%s5 + $0x58] sm:$0xff]
    %v1146 = vld [vmem:[%s5 + $0x60] sm:$0xff]
    %v1147 = vld [vmem:[%s5 + $0x68] sm:$0xff]
    %v1148 = vld [vmem:[%s5 + $0x70] sm:$0xff]
    %v1149 = vld [vmem:[%s5 + $0x78] sm:$0xff]
    %v1150 = vld [vmem:[%s7] sm:$0xf]
    %v1152 = vperm.slane %v1150, 0
    %v1153 = vperm.slane %v1150, 1
    %v1154 = vperm.slane %v1150, 2
    %v1155 = vperm.slane %v1150, 3
    %v1176 = vunpack.c.l.b16 %v1134
    %v1177 = vunpack.c.h.b16 %v1134
    %v1178 = vunpack.c.l.b16 %v1135
    %v1179 = vunpack.c.h.b16 %v1135
    %v1180 = vunpack.c.l.b16 %v1136
    %v1181 = vunpack.c.h.b16 %v1136
    %v1182 = vunpack.c.l.b16 %v1137
    %v1183 = vunpack.c.h.b16 %v1137
    %v1184 = vunpack.c.l.b16 %v1138
    %v1185 = vunpack.c.h.b16 %v1138
    %v1186 = vunpack.c.l.b16 %v1139
    %v1187 = vunpack.c.h.b16 %v1139
    %v1188 = vunpack.c.l.b16 %v1140
    %v1189 = vunpack.c.h.b16 %v1140
    %v1190 = vunpack.c.l.b16 %v1141
    %v1191 = vunpack.c.h.b16 %v1141
    %v1192 = vunpack.c.l.b16 %v1142
    %v1193 = vunpack.c.h.b16 %v1142
    %v1194 = vunpack.c.l.b16 %v1143
    %v1195 = vunpack.c.h.b16 %v1143
    %v1196 = vunpack.c.l.b16 %v1144
    %v1197 = vunpack.c.h.b16 %v1144
    %v1198 = vunpack.c.l.b16 %v1145
    %v1199 = vunpack.c.h.b16 %v1145
    %v1200 = vunpack.c.l.b16 %v1146
    %v1201 = vunpack.c.h.b16 %v1146
    %v1202 = vunpack.c.l.b16 %v1147
    %v1203 = vunpack.c.h.b16 %v1147
    %v1204 = vunpack.c.l.b16 %v1148
    %v1205 = vunpack.c.h.b16 %v1148
    %v1206 = vunpack.c.l.b16 %v1149
    %v1207 = vunpack.c.h.b16 %v1149
    %v1208 = vpack.c.b16 %v1180, %v1176
    %v1209 = vpack.c.b16 %v1181, %v1177
    %v1210 = vpack.c.b16 %v1182, %v1178
    %v1211 = vpack.c.b16 %v1183, %v1179
    %v1212 = vpack.c.b16 %v1188, %v1184
    %v1213 = vpack.c.b16 %v1189, %v1185
    %v1214 = vpack.c.b16 %v1190, %v1186
    %v1215 = vpack.c.b16 %v1191, %v1187
    %v1216 = vpack.c.b16 %v1196, %v1192
    %v1217 = vpack.c.b16 %v1197, %v1193
    %v1218 = vpack.c.b16 %v1198, %v1194
    %v1219 = vpack.c.b16 %v1199, %v1195
    %v1220 = vpack.c.b16 %v1204, %v1200
    %v1221 = vpack.c.b16 %v1205, %v1201
    %v1222 = vpack.c.b16 %v1206, %v1202
    %v1223 = vpack.c.b16 %v1207, %v1203
    %v1241 = vsel %vm222, %v1133, 0
    %1243 = vmatpush.bf16.msra.mxu0 0
    %1244 = vmatpush.bf16.msra.mxu0 0
    %1245 = vmatpush.bf16.msra.mxu0 0
    %1246 = vmatpush.bf16.msra.mxu0 0
    %1247 = vmatpush.bf16.msra.mxu0 %v1220
    %1248 = vmatpush.bf16.msra.mxu0 %v1216
    %1249 = vmatpush.bf16.msra.mxu0 %v1212
    %1250 = vmatpush.bf16.msra.mxu0 %v1208
    %1251 = vmatmul.bf16.gmra.mxu0 %v1241
    %v1252 = vpop.f32.mrf.mxu0
    %v1253 = vadd.f32 %v1152, %v1252
    %v1254 = vpop.f32.mrf.mxu0
    %v1255 = vadd.f32 %v1152, %v1254
    %1256 = vdwg.mxu0
    %1257 = vmatpush.bf16.msra.mxu0 0
    %1258 = vmatpush.bf16.msra.mxu0 0
    %1259 = vmatpush.bf16.msra.mxu0 0
    %1260 = vmatpush.bf16.msra.mxu0 0
    %1261 = vmatpush.bf16.msra.mxu0 %v1221
    %1262 = vmatpush.bf16.msra.mxu0 %v1217
    %1263 = vmatpush.bf16.msra.mxu0 %v1213
    %1264 = vmatpush.bf16.msra.mxu0 %v1209
    %1265 = vmatmul.bf16.gmra.mxu0 %v1241
    %v1266 = vpop.f32.mrf.mxu0
    %v1267 = vadd.f32 %v1153, %v1266
    %v1268 = vpop.f32.mrf.mxu0
    %v1269 = vadd.f32 %v1153, %v1268
    %1270 = vdwg.mxu0
    %1271 = vmatpush.bf16.msra.mxu0 0
    %1272 = vmatpush.bf16.msra.mxu0 0
    %1273 = vmatpush.bf16.msra.mxu0 0
    %1274 = vmatpush.bf16.msra.mxu0 0
    %1275 = vmatpush.bf16.msra.mxu0 %v1222
    %1276 = vmatpush.bf16.msra.mxu0 %v1218
    %1277 = vmatpush.bf16.msra.mxu0 %v1214
    %1278 = vmatpush.bf16.msra.mxu0 %v1210
    %1279 = vmatmul.bf16.gmra.mxu0 %v1241
    %v1280 = vpop.f32.mrf.mxu0
    %v1281 = vadd.f32 %v1154, %v1280
    %v1282 = vpop.f32.mrf.mxu0
    %v1283 = vadd.f32 %v1154, %v1282
    %1284 = vdwg.mxu0
    %1285 = vmatpush.bf16.msra.mxu0 0
    %1286 = vmatpush.bf16.msra.mxu0 0
    %1287 = vmatpush.bf16.msra.mxu0 0
    %1288 = vmatpush.bf16.msra.mxu0 0
    %1289 = vmatpush.bf16.msra.mxu0 %v1223
    %1290 = vmatpush.bf16.msra.mxu0 %v1219
    %1291 = vmatpush.bf16.msra.mxu0 %v1215
    %1292 = vmatpush.bf16.msra.mxu0 %v1211
    %1293 = vmatmul.bf16.gmra.mxu0 %v1241
    %v1294 = vpop.f32.mrf.mxu0
    %v1295 = vadd.f32 %v1155, %v1294
    %v1296 = vpop.f32.mrf.mxu0
    %v1297 = vadd.f32 %v1155, %v1296
    %1298 = vdwg.mxu0
    %v1299 = vtanh.pop %v1253
    %v1300 = vtanh.pop %v1267
    %v1301 = vtanh.pop %v1281
    %v1302 = vtanh.pop %v1295
    %v1303 = vtanh.pop %v1255
    %v1304 = vtanh.pop %v1269
    %v1305 = vtanh.pop %v1283
    %v1306 = vtanh.pop %v1297
    %v1307 = vld [vmem:[#allocation8] sm:$0xff]
    %v1308 = vld [vmem:[#allocation8 + $0x8] sm:$0xff]
    %v1309 = vld [vmem:[#allocation8 + $0x10] sm:$0xff]
    %v1310 = vld [vmem:[#allocation8 + $0x18] sm:$0xff]
    %v1311 = vld [vmem:[#allocation8 + $0x20] sm:$0xff]
    %v1312 = vld [vmem:[#allocation8 + $0x28] sm:$0xff]
    %v1313 = vld [vmem:[#allocation8 + $0x30] sm:$0xff]
    %v1314 = vld [vmem:[#allocation8 + $0x38] sm:$0xff]
    %v1315 = vld [vmem:[#allocation8 + $0x40] sm:$0xff]
    %v1316 = vld [vmem:[#allocation8 + $0x48] sm:$0xff]
    %v1317 = vld [vmem:[#allocation8 + $0x50] sm:$0xff]
    %v1318 = vld [vmem:[#allocation8 + $0x58] sm:$0xff]
    %v1319 = vld [vmem:[#allocation8 + $0x60] sm:$0xff]
    %v1320 = vld [vmem:[#allocation8 + $0x68] sm:$0xff]
    %v1321 = vld [vmem:[#allocation8 + $0x70] sm:$0xff]
    %v1322 = vld [vmem:[#allocation8 + $0x78] sm:$0xff]
    %v1323 = vld [vmem:[%s8] sm:$0xf]
    %v1325 = vperm.slane %v1323, 0
    %v1326 = vperm.slane %v1323, 1
    %v1327 = vperm.slane %v1323, 2
    %v1328 = vperm.slane %v1323, 3
    %v1349 = vunpack.c.l.b16 %v1307
    %v1350 = vunpack.c.h.b16 %v1307
    %v1351 = vunpack.c.l.b16 %v1308
    %v1352 = vunpack.c.h.b16 %v1308
    %v1353 = vunpack.c.l.b16 %v1309
    %v1354 = vunpack.c.h.b16 %v1309
    %v1355 = vunpack.c.l.b16 %v1310
    %v1356 = vunpack.c.h.b16 %v1310
    %v1357 = vunpack.c.l.b16 %v1311
    %v1358 = vunpack.c.h.b16 %v1311
    %v1359 = vunpack.c.l.b16 %v1312
    %v1360 = vunpack.c.h.b16 %v1312
    %v1361 = vunpack.c.l.b16 %v1313
    %v1362 = vunpack.c.h.b16 %v1313
    %v1363 = vunpack.c.l.b16 %v1314
    %v1364 = vunpack.c.h.b16 %v1314
    %v1365 = vunpack.c.l.b16 %v1315
    %v1366 = vunpack.c.h.b16 %v1315
    %v1367 = vunpack.c.l.b16 %v1316
    %v1368 = vunpack.c.h.b16 %v1316
    %v1369 = vunpack.c.l.b16 %v1317
    %v1370 = vunpack.c.h.b16 %v1317
    %v1371 = vunpack.c.l.b16 %v1318
    %v1372 = vunpack.c.h.b16 %v1318
    %v1373 = vunpack.c.l.b16 %v1319
    %v1374 = vunpack.c.h.b16 %v1319
    %v1375 = vunpack.c.l.b16 %v1320
    %v1376 = vunpack.c.h.b16 %v1320
    %v1377 = vunpack.c.l.b16 %v1321
    %v1378 = vunpack.c.h.b16 %v1321
    %v1379 = vunpack.c.l.b16 %v1322
    %v1380 = vunpack.c.h.b16 %v1322
    %v1381 = vpack.c.b16 %v1353, %v1349
    %v1382 = vpack.c.b16 %v1354, %v1350
    %v1383 = vpack.c.b16 %v1355, %v1351
    %v1384 = vpack.c.b16 %v1356, %v1352
    %v1385 = vpack.c.b16 %v1361, %v1357
    %v1386 = vpack.c.b16 %v1362, %v1358
    %v1387 = vpack.c.b16 %v1363, %v1359
    %v1388 = vpack.c.b16 %v1364, %v1360
    %v1389 = vpack.c.b16 %v1369, %v1365
    %v1390 = vpack.c.b16 %v1370, %v1366
    %v1391 = vpack.c.b16 %v1371, %v1367
    %v1392 = vpack.c.b16 %v1372, %v1368
    %v1393 = vpack.c.b16 %v1377, %v1373
    %v1394 = vpack.c.b16 %v1378, %v1374
    %v1395 = vpack.c.b16 %v1379, %v1375
    %v1396 = vpack.c.b16 %v1380, %v1376
    %1413 = vmatpush.bf16.msra.mxu0 0
    %1414 = vmatpush.bf16.msra.mxu0 0
    %1415 = vmatpush.bf16.msra.mxu0 0
    %1416 = vmatpush.bf16.msra.mxu0 0
    %1417 = vmatpush.bf16.msra.mxu0 %v1393
    %1418 = vmatpush.bf16.msra.mxu0 %v1389
    %1419 = vmatpush.bf16.msra.mxu0 %v1385
    %1420 = vmatpush.bf16.msra.mxu0 %v1381
    %1421 = vmatmul.bf16.gmra.mxu0 %v1241
    %v1422 = vpop.f32.mrf.mxu0
    %v1423 = vadd.f32 %v1325, %v1422
    %v1424 = vpop.f32.mrf.mxu0
    %v1425 = vadd.f32 %v1325, %v1424
    %1426 = vdwg.mxu0
    %1427 = vmatpush.bf16.msra.mxu0 0
    %1428 = vmatpush.bf16.msra.mxu0 0
    %1429 = vmatpush.bf16.msra.mxu0 0
    %1430 = vmatpush.bf16.msra.mxu0 0
    %1431 = vmatpush.bf16.msra.mxu0 %v1394
    %1432 = vmatpush.bf16.msra.mxu0 %v1390
    %1433 = vmatpush.bf16.msra.mxu0 %v1386
    %1434 = vmatpush.bf16.msra.mxu0 %v1382
    %1435 = vmatmul.bf16.gmra.mxu0 %v1241
    %v1436 = vpop.f32.mrf.mxu0
    %v1437 = vadd.f32 %v1326, %v1436
    %v1438 = vpop.f32.mrf.mxu0
    %v1439 = vadd.f32 %v1326, %v1438
    %1440 = vdwg.mxu0
    %1441 = vmatpush.bf16.msra.mxu0 0
    %1442 = vmatpush.bf16.msra.mxu0 0
    %1443 = vmatpush.bf16.msra.mxu0 0
    %1444 = vmatpush.bf16.msra.mxu0 0
    %1445 = vmatpush.bf16.msra.mxu0 %v1395
    %1446 = vmatpush.bf16.msra.mxu0 %v1391
    %1447 = vmatpush.bf16.msra.mxu0 %v1387
    %1448 = vmatpush.bf16.msra.mxu0 %v1383
    %1449 = vmatmul.bf16.gmra.mxu0 %v1241
    %v1450 = vpop.f32.mrf.mxu0
    %v1451 = vadd.f32 %v1327, %v1450
    %v1452 = vpop.f32.mrf.mxu0
    %v1453 = vadd.f32 %v1327, %v1452
    %1454 = vdwg.mxu0
    %1455 = vmatpush.bf16.msra.mxu0 0
    %1456 = vmatpush.bf16.msra.mxu0 0
    %1457 = vmatpush.bf16.msra.mxu0 0
    %1458 = vmatpush.bf16.msra.mxu0 0
    %1459 = vmatpush.bf16.msra.mxu0 %v1396
    %1460 = vmatpush.bf16.msra.mxu0 %v1392
    %1461 = vmatpush.bf16.msra.mxu0 %v1388
    %1462 = vmatpush.bf16.msra.mxu0 %v1384
    %1463 = vmatmul.bf16.gmra.mxu0 %v1241
    %v1464 = vpop.f32.mrf.mxu0
    %v1465 = vadd.f32 %v1328, %v1464
    %v1466 = vpop.f32.mrf.mxu0
    %v1467 = vadd.f32 %v1328, %v1466
    %1468 = vdwg.mxu0
    %v1469 = vtanh.pop %v1423
    %v1470 = vtanh.pop %v1437
    %v1471 = vtanh.pop %v1451
    %v1472 = vtanh.pop %v1465
    %v1473 = vtanh.pop %v1425
    %v1474 = vtanh.pop %v1439
    %v1475 = vtanh.pop %v1453
    %v1476 = vtanh.pop %v1467
    %v1477 = vpack.c.bf16 %v1303, %v1299
    %v1478 = vpack.c.bf16 %v1304, %v1300
    %v1479 = vpack.c.bf16 %v1305, %v1301
    %v1480 = vpack.c.bf16 %v1306, %v1302
    %v1481 = vld [vmem:[#allocation10] sm:$0xff]
    %v1482 = vld [vmem:[#allocation10 + $0x8] sm:$0xff]
    %v1483 = vld [vmem:[#allocation10 + $0x10] sm:$0xff]
    %v1484 = vld [vmem:[#allocation10 + $0x18] sm:$0xff]
    %v1485 = vld [vmem:[#allocation10 + $0x20] sm:$0xff]
    %v1486 = vld [vmem:[#allocation10 + $0x28] sm:$0xff]
    %v1487 = vld [vmem:[#allocation10 + $0x30] sm:$0xff]
    %v1488 = vld [vmem:[#allocation10 + $0x38] sm:$0xff]
    %v1489 = vld [vmem:[#allocation10 + $0x40] sm:$0xff]
    %v1490 = vld [vmem:[#allocation10 + $0x48] sm:$0xff]
    %v1491 = vld [vmem:[#allocation10 + $0x50] sm:$0xff]
    %v1492 = vld [vmem:[#allocation10 + $0x58] sm:$0xff]
    %v1493 = vld [vmem:[#allocation10 + $0x60] sm:$0xff]
    %v1494 = vld [vmem:[#allocation10 + $0x68] sm:$0xff]
    %v1495 = vld [vmem:[#allocation10 + $0x70] sm:$0xff]
    %v1496 = vld [vmem:[#allocation10 + $0x78] sm:$0xff]
    %v1497 = vld [vmem:[#allocation10 + $0x80] sm:$0xff]
    %v1498 = vld [vmem:[#allocation10 + $0x88] sm:$0xff]
    %v1499 = vld [vmem:[#allocation10 + $0x90] sm:$0xff]
    %v1500 = vld [vmem:[#allocation10 + $0x98] sm:$0xff]
    %v1501 = vld [vmem:[#allocation10 + $0xa0] sm:$0xff]
    %v1502 = vld [vmem:[#allocation10 + $0xa8] sm:$0xff]
    %v1503 = vld [vmem:[#allocation10 + $0xb0] sm:$0xff]
    %v1504 = vld [vmem:[#allocation10 + $0xb8] sm:$0xff]
    %v1505 = vld [vmem:[#allocation10 + $0xc0] sm:$0xff]
    %v1506 = vld [vmem:[#allocation10 + $0xc8] sm:$0xff]
    %v1507 = vld [vmem:[#allocation10 + $0xd0] sm:$0xff]
    %v1508 = vld [vmem:[#allocation10 + $0xd8] sm:$0xff]
    %v1509 = vld [vmem:[#allocation10 + $0xe0] sm:$0xff]
    %v1510 = vld [vmem:[#allocation10 + $0xe8] sm:$0xff]
    %v1511 = vld [vmem:[#allocation10 + $0xf0] sm:$0xff]
    %v1512 = vld [vmem:[#allocation10 + $0xf8] sm:$0xff]
    %v1513 = vld [vmem:[#allocation10 + $0x100] sm:$0xff]
    %v1514 = vld [vmem:[#allocation10 + $0x108] sm:$0xff]
    %v1515 = vld [vmem:[#allocation10 + $0x110] sm:$0xff]
    %v1516 = vld [vmem:[#allocation10 + $0x118] sm:$0xff]
    %v1517 = vld [vmem:[#allocation10 + $0x120] sm:$0xff]
    %v1518 = vld [vmem:[#allocation10 + $0x128] sm:$0xff]
    %v1519 = vld [vmem:[#allocation10 + $0x130] sm:$0xff]
    %v1520 = vld [vmem:[#allocation10 + $0x138] sm:$0xff]
    %v1521 = vld [vmem:[#allocation10 + $0x140] sm:$0xff]
    %v1522 = vld [vmem:[#allocation10 + $0x148] sm:$0xff]
    %v1523 = vld [vmem:[#allocation10 + $0x150] sm:$0xff]
    %v1524 = vld [vmem:[#allocation10 + $0x158] sm:$0xff]
    %v1525 = vld [vmem:[#allocation10 + $0x160] sm:$0xff]
    %v1526 = vld [vmem:[#allocation10 + $0x168] sm:$0xff]
    %v1527 = vld [vmem:[#allocation10 + $0x170] sm:$0xff]
    %v1528 = vld [vmem:[#allocation10 + $0x178] sm:$0xff]
    %v1529 = vld [vmem:[#allocation10 + $0x180] sm:$0xff]
    %v1530 = vld [vmem:[#allocation10 + $0x188] sm:$0xff]
    %v1531 = vld [vmem:[#allocation10 + $0x190] sm:$0xff]
    %v1532 = vld [vmem:[#allocation10 + $0x198] sm:$0xff]
    %v1533 = vld [vmem:[#allocation10 + $0x1a0] sm:$0xff]
    %v1534 = vld [vmem:[#allocation10 + $0x1a8] sm:$0xff]
    %v1535 = vld [vmem:[#allocation10 + $0x1b0] sm:$0xff]
    %v1536 = vld [vmem:[#allocation10 + $0x1b8] sm:$0xff]
    %v1537 = vld [vmem:[#allocation10 + $0x1c0] sm:$0xff]
    %v1538 = vld [vmem:[#allocation10 + $0x1c8] sm:$0xff]
    %v1539 = vld [vmem:[#allocation10 + $0x1d0] sm:$0xff]
    %v1540 = vld [vmem:[#allocation10 + $0x1d8] sm:$0xff]
    %v1541 = vld [vmem:[#allocation10 + $0x1e0] sm:$0xff]
    %v1542 = vld [vmem:[#allocation10 + $0x1e8] sm:$0xff]
    %v1543 = vld [vmem:[#allocation10 + $0x1f0] sm:$0xff]
    %v1544 = vld [vmem:[#allocation10 + $0x1f8] sm:$0xff]
    %v1545 = vld [vmem:[#allocation10 + $0x200] sm:$0xff]
    %v1546 = vld [vmem:[#allocation10 + $0x208] sm:$0xff]
    %v1547 = vld [vmem:[#allocation10 + $0x210] sm:$0xff]
    %v1548 = vld [vmem:[#allocation10 + $0x218] sm:$0xff]
    %v1549 = vld [vmem:[#allocation10 + $0x220] sm:$0xff]
    %v1550 = vld [vmem:[#allocation10 + $0x228] sm:$0xff]
    %v1551 = vld [vmem:[#allocation10 + $0x230] sm:$0xff]
    %v1552 = vld [vmem:[#allocation10 + $0x238] sm:$0xff]
    %v1553 = vld [vmem:[#allocation10 + $0x240] sm:$0xff]
    %v1554 = vld [vmem:[#allocation10 + $0x248] sm:$0xff]
    %v1555 = vld [vmem:[#allocation10 + $0x250] sm:$0xff]
    %v1556 = vld [vmem:[#allocation10 + $0x258] sm:$0xff]
    %v1557 = vld [vmem:[#allocation10 + $0x260] sm:$0xff]
    %v1558 = vld [vmem:[#allocation10 + $0x268] sm:$0xff]
    %v1559 = vld [vmem:[#allocation10 + $0x270] sm:$0xff]
    %v1560 = vld [vmem:[#allocation10 + $0x278] sm:$0xff]
    %v1561 = vld [vmem:[#allocation10 + $0x280] sm:$0xff]
    %v1562 = vld [vmem:[#allocation10 + $0x288] sm:$0xff]
    %v1563 = vld [vmem:[#allocation10 + $0x290] sm:$0xff]
    %v1564 = vld [vmem:[#allocation10 + $0x298] sm:$0xff]
    %v1565 = vld [vmem:[#allocation10 + $0x2a0] sm:$0xff]
    %v1566 = vld [vmem:[#allocation10 + $0x2a8] sm:$0xff]
    %v1567 = vld [vmem:[#allocation10 + $0x2b0] sm:$0xff]
    %v1568 = vld [vmem:[#allocation10 + $0x2b8] sm:$0xff]
    %v1569 = vld [vmem:[#allocation10 + $0x2c0] sm:$0xff]
    %v1570 = vld [vmem:[#allocation10 + $0x2c8] sm:$0xff]
    %v1571 = vld [vmem:[#allocation10 + $0x2d0] sm:$0xff]
    %v1572 = vld [vmem:[#allocation10 + $0x2d8] sm:$0xff]
    %v1573 = vld [vmem:[#allocation10 + $0x2e0] sm:$0xff]
    %v1574 = vld [vmem:[#allocation10 + $0x2e8] sm:$0xff]
    %v1575 = vld [vmem:[#allocation10 + $0x2f0] sm:$0xff]
    %v1576 = vld [vmem:[#allocation10 + $0x2f8] sm:$0xff]
    %v1577 = vld [vmem:[#allocation10 + $0x300] sm:$0xff]
    %v1578 = vld [vmem:[#allocation10 + $0x308] sm:$0xff]
    %v1579 = vld [vmem:[#allocation10 + $0x310] sm:$0xff]
    %v1580 = vld [vmem:[#allocation10 + $0x318] sm:$0xff]
    %v1581 = vld [vmem:[#allocation10 + $0x320] sm:$0xff]
    %v1582 = vld [vmem:[#allocation10 + $0x328] sm:$0xff]
    %v1583 = vld [vmem:[#allocation10 + $0x330] sm:$0xff]
    %v1584 = vld [vmem:[#allocation10 + $0x338] sm:$0xff]
    %v1585 = vld [vmem:[#allocation10 + $0x340] sm:$0xff]
    %v1586 = vld [vmem:[#allocation10 + $0x348] sm:$0xff]
    %v1587 = vld [vmem:[#allocation10 + $0x350] sm:$0xff]
    %v1588 = vld [vmem:[#allocation10 + $0x358] sm:$0xff]
    %v1589 = vld [vmem:[#allocation10 + $0x360] sm:$0xff]
    %v1590 = vld [vmem:[#allocation10 + $0x368] sm:$0xff]
    %v1591 = vld [vmem:[#allocation10 + $0x370] sm:$0xff]
    %v1592 = vld [vmem:[#allocation10 + $0x378] sm:$0xff]
    %v1593 = vld [vmem:[#allocation10 + $0x380] sm:$0xff]
    %v1594 = vld [vmem:[#allocation10 + $0x388] sm:$0xff]
    %v1595 = vld [vmem:[#allocation10 + $0x390] sm:$0xff]
    %v1596 = vld [vmem:[#allocation10 + $0x398] sm:$0xff]
    %v1597 = vld [vmem:[#allocation10 + $0x3a0] sm:$0xff]
    %v1598 = vld [vmem:[#allocation10 + $0x3a8] sm:$0xff]
    %v1599 = vld [vmem:[#allocation10 + $0x3b0] sm:$0xff]
    %v1600 = vld [vmem:[#allocation10 + $0x3b8] sm:$0xff]
    %v1601 = vld [vmem:[#allocation10 + $0x3c0] sm:$0xff]
    %v1602 = vld [vmem:[#allocation10 + $0x3c8] sm:$0xff]
    %v1603 = vld [vmem:[#allocation10 + $0x3d0] sm:$0xff]
    %v1604 = vld [vmem:[#allocation10 + $0x3d8] sm:$0xff]
    %v1605 = vld [vmem:[#allocation10 + $0x3e0] sm:$0xff]
    %v1606 = vld [vmem:[#allocation10 + $0x3e8] sm:$0xff]
    %v1607 = vld [vmem:[#allocation10 + $0x3f0] sm:$0xff]
    %v1608 = vld [vmem:[#allocation10 + $0x3f8] sm:$0xff]
    %v1609 = vld [vmem:[%s11] sm:$0xf]
    %v1611 = vperm.slane %v1609, 0
    %v1612 = vperm.slane %v1609, 1
    %v1613 = vperm.slane %v1609, 2
    %v1614 = vperm.slane %v1609, 3
    %v1747 = vunpack.c.l.b16 %v1481
    %v1748 = vunpack.c.h.b16 %v1481
    %v1749 = vunpack.c.l.b16 %v1482
    %v1750 = vunpack.c.h.b16 %v1482
    %v1751 = vunpack.c.l.b16 %v1483
    %v1752 = vunpack.c.h.b16 %v1483
    %v1753 = vunpack.c.l.b16 %v1484
    %v1754 = vunpack.c.h.b16 %v1484
    %v1755 = vunpack.c.l.b16 %v1485
    %v1756 = vunpack.c.h.b16 %v1485
    %v1757 = vunpack.c.l.b16 %v1486
    %v1758 = vunpack.c.h.b16 %v1486
    %v1759 = vunpack.c.l.b16 %v1487
    %v1760 = vunpack.c.h.b16 %v1487
    %v1761 = vunpack.c.l.b16 %v1488
    %v1762 = vunpack.c.h.b16 %v1488
    %v1763 = vunpack.c.l.b16 %v1489
    %v1764 = vunpack.c.h.b16 %v1489
    %v1765 = vunpack.c.l.b16 %v1490
    %v1766 = vunpack.c.h.b16 %v1490
    %v1767 = vunpack.c.l.b16 %v1491
    %v1768 = vunpack.c.h.b16 %v1491
    %v1769 = vunpack.c.l.b16 %v1492
    %v1770 = vunpack.c.h.b16 %v1492
    %v1771 = vunpack.c.l.b16 %v1493
    %v1772 = vunpack.c.h.b16 %v1493
    %v1773 = vunpack.c.l.b16 %v1494
    %v1774 = vunpack.c.h.b16 %v1494
    %v1775 = vunpack.c.l.b16 %v1495
    %v1776 = vunpack.c.h.b16 %v1495
    %v1777 = vunpack.c.l.b16 %v1496
    %v1778 = vunpack.c.h.b16 %v1496
    %v1779 = vunpack.c.l.b16 %v1497
    %v1780 = vunpack.c.h.b16 %v1497
    %v1781 = vunpack.c.l.b16 %v1498
    %v1782 = vunpack.c.h.b16 %v1498
    %v1783 = vunpack.c.l.b16 %v1499
    %v1784 = vunpack.c.h.b16 %v1499
    %v1785 = vunpack.c.l.b16 %v1500
    %v1786 = vunpack.c.h.b16 %v1500
    %v1787 = vunpack.c.l.b16 %v1501
    %v1788 = vunpack.c.h.b16 %v1501
    %v1789 = vunpack.c.l.b16 %v1502
    %v1790 = vunpack.c.h.b16 %v1502
    %v1791 = vunpack.c.l.b16 %v1503
    %v1792 = vunpack.c.h.b16 %v1503
    %v1793 = vunpack.c.l.b16 %v1504
    %v1794 = vunpack.c.h.b16 %v1504
    %v1795 = vunpack.c.l.b16 %v1505
    %v1796 = vunpack.c.h.b16 %v1505
    %v1797 = vunpack.c.l.b16 %v1506
    %v1798 = vunpack.c.h.b16 %v1506
    %v1799 = vunpack.c.l.b16 %v1507
    %v1800 = vunpack.c.h.b16 %v1507
    %v1801 = vunpack.c.l.b16 %v1508
    %v1802 = vunpack.c.h.b16 %v1508
    %v1803 = vunpack.c.l.b16 %v1509
    %v1804 = vunpack.c.h.b16 %v1509
    %v1805 = vunpack.c.l.b16 %v1510
    %v1806 = vunpack.c.h.b16 %v1510
    %v1807 = vunpack.c.l.b16 %v1511
    %v1808 = vunpack.c.h.b16 %v1511
    %v1809 = vunpack.c.l.b16 %v1512
    %v1810 = vunpack.c.h.b16 %v1512
    %v1811 = vunpack.c.l.b16 %v1513
    %v1812 = vunpack.c.h.b16 %v1513
    %v1813 = vunpack.c.l.b16 %v1514
    %v1814 = vunpack.c.h.b16 %v1514
    %v1815 = vunpack.c.l.b16 %v1515
    %v1816 = vunpack.c.h.b16 %v1515
    %v1817 = vunpack.c.l.b16 %v1516
    %v1818 = vunpack.c.h.b16 %v1516
    %v1819 = vunpack.c.l.b16 %v1517
    %v1820 = vunpack.c.h.b16 %v1517
    %v1821 = vunpack.c.l.b16 %v1518
    %v1822 = vunpack.c.h.b16 %v1518
    %v1823 = vunpack.c.l.b16 %v1519
    %v1824 = vunpack.c.h.b16 %v1519
    %v1825 = vunpack.c.l.b16 %v1520
    %v1826 = vunpack.c.h.b16 %v1520
    %v1827 = vunpack.c.l.b16 %v1521
    %v1828 = vunpack.c.h.b16 %v1521
    %v1829 = vunpack.c.l.b16 %v1522
    %v1830 = vunpack.c.h.b16 %v1522
    %v1831 = vunpack.c.l.b16 %v1523
    %v1832 = vunpack.c.h.b16 %v1523
    %v1833 = vunpack.c.l.b16 %v1524
    %v1834 = vunpack.c.h.b16 %v1524
    %v1835 = vunpack.c.l.b16 %v1525
    %v1836 = vunpack.c.h.b16 %v1525
    %v1837 = vunpack.c.l.b16 %v1526
    %v1838 = vunpack.c.h.b16 %v1526
    %v1839 = vunpack.c.l.b16 %v1527
    %v1840 = vunpack.c.h.b16 %v1527
    %v1841 = vunpack.c.l.b16 %v1528
    %v1842 = vunpack.c.h.b16 %v1528
    %v1843 = vunpack.c.l.b16 %v1529
    %v1844 = vunpack.c.h.b16 %v1529
    %v1845 = vunpack.c.l.b16 %v1530
    %v1846 = vunpack.c.h.b16 %v1530
    %v1847 = vunpack.c.l.b16 %v1531
    %v1848 = vunpack.c.h.b16 %v1531
    %v1849 = vunpack.c.l.b16 %v1532
    %v1850 = vunpack.c.h.b16 %v1532
    %v1851 = vunpack.c.l.b16 %v1533
    %v1852 = vunpack.c.h.b16 %v1533
    %v1853 = vunpack.c.l.b16 %v1534
    %v1854 = vunpack.c.h.b16 %v1534
    %v1855 = vunpack.c.l.b16 %v1535
    %v1856 = vunpack.c.h.b16 %v1535
    %v1857 = vunpack.c.l.b16 %v1536
    %v1858 = vunpack.c.h.b16 %v1536
    %v1859 = vunpack.c.l.b16 %v1537
    %v1860 = vunpack.c.h.b16 %v1537
    %v1861 = vunpack.c.l.b16 %v1538
    %v1862 = vunpack.c.h.b16 %v1538
    %v1863 = vunpack.c.l.b16 %v1539
    %v1864 = vunpack.c.h.b16 %v1539
    %v1865 = vunpack.c.l.b16 %v1540
    %v1866 = vunpack.c.h.b16 %v1540
    %v1867 = vunpack.c.l.b16 %v1541
    %v1868 = vunpack.c.h.b16 %v1541
    %v1869 = vunpack.c.l.b16 %v1542
    %v1870 = vunpack.c.h.b16 %v1542
    %v1871 = vunpack.c.l.b16 %v1543
    %v1872 = vunpack.c.h.b16 %v1543
    %v1873 = vunpack.c.l.b16 %v1544
    %v1874 = vunpack.c.h.b16 %v1544
    %v1875 = vunpack.c.l.b16 %v1545
    %v1876 = vunpack.c.h.b16 %v1545
    %v1877 = vunpack.c.l.b16 %v1546
    %v1878 = vunpack.c.h.b16 %v1546
    %v1879 = vunpack.c.l.b16 %v1547
    %v1880 = vunpack.c.h.b16 %v1547
    %v1881 = vunpack.c.l.b16 %v1548
    %v1882 = vunpack.c.h.b16 %v1548
    %v1883 = vunpack.c.l.b16 %v1549
    %v1884 = vunpack.c.h.b16 %v1549
    %v1885 = vunpack.c.l.b16 %v1550
    %v1886 = vunpack.c.h.b16 %v1550
    %v1887 = vunpack.c.l.b16 %v1551
    %v1888 = vunpack.c.h.b16 %v1551
    %v1889 = vunpack.c.l.b16 %v1552
    %v1890 = vunpack.c.h.b16 %v1552
    %v1891 = vunpack.c.l.b16 %v1553
    %v1892 = vunpack.c.h.b16 %v1553
    %v1893 = vunpack.c.l.b16 %v1554
    %v1894 = vunpack.c.h.b16 %v1554
    %v1895 = vunpack.c.l.b16 %v1555
    %v1896 = vunpack.c.h.b16 %v1555
    %v1897 = vunpack.c.l.b16 %v1556
    %v1898 = vunpack.c.h.b16 %v1556
    %v1899 = vunpack.c.l.b16 %v1557
    %v1900 = vunpack.c.h.b16 %v1557
    %v1901 = vunpack.c.l.b16 %v1558
    %v1902 = vunpack.c.h.b16 %v1558
    %v1903 = vunpack.c.l.b16 %v1559
    %v1904 = vunpack.c.h.b16 %v1559
    %v1905 = vunpack.c.l.b16 %v1560
    %v1906 = vunpack.c.h.b16 %v1560
    %v1907 = vunpack.c.l.b16 %v1561
    %v1908 = vunpack.c.h.b16 %v1561
    %v1909 = vunpack.c.l.b16 %v1562
    %v1910 = vunpack.c.h.b16 %v1562
    %v1911 = vunpack.c.l.b16 %v1563
    %v1912 = vunpack.c.h.b16 %v1563
    %v1913 = vunpack.c.l.b16 %v1564
    %v1914 = vunpack.c.h.b16 %v1564
    %v1915 = vunpack.c.l.b16 %v1565
    %v1916 = vunpack.c.h.b16 %v1565
    %v1917 = vunpack.c.l.b16 %v1566
    %v1918 = vunpack.c.h.b16 %v1566
    %v1919 = vunpack.c.l.b16 %v1567
    %v1920 = vunpack.c.h.b16 %v1567
    %v1921 = vunpack.c.l.b16 %v1568
    %v1922 = vunpack.c.h.b16 %v1568
    %v1923 = vunpack.c.l.b16 %v1569
    %v1924 = vunpack.c.h.b16 %v1569
    %v1925 = vunpack.c.l.b16 %v1570
    %v1926 = vunpack.c.h.b16 %v1570
    %v1927 = vunpack.c.l.b16 %v1571
    %v1928 = vunpack.c.h.b16 %v1571
    %v1929 = vunpack.c.l.b16 %v1572
    %v1930 = vunpack.c.h.b16 %v1572
    %v1931 = vunpack.c.l.b16 %v1573
    %v1932 = vunpack.c.h.b16 %v1573
    %v1933 = vunpack.c.l.b16 %v1574
    %v1934 = vunpack.c.h.b16 %v1574
    %v1935 = vunpack.c.l.b16 %v1575
    %v1936 = vunpack.c.h.b16 %v1575
    %v1937 = vunpack.c.l.b16 %v1576
    %v1938 = vunpack.c.h.b16 %v1576
    %v1939 = vunpack.c.l.b16 %v1577
    %v1940 = vunpack.c.h.b16 %v1577
    %v1941 = vunpack.c.l.b16 %v1578
    %v1942 = vunpack.c.h.b16 %v1578
    %v1943 = vunpack.c.l.b16 %v1579
    %v1944 = vunpack.c.h.b16 %v1579
    %v1945 = vunpack.c.l.b16 %v1580
    %v1946 = vunpack.c.h.b16 %v1580
    %v1947 = vunpack.c.l.b16 %v1581
    %v1948 = vunpack.c.h.b16 %v1581
    %v1949 = vunpack.c.l.b16 %v1582
    %v1950 = vunpack.c.h.b16 %v1582
    %v1951 = vunpack.c.l.b16 %v1583
    %v1952 = vunpack.c.h.b16 %v1583
    %v1953 = vunpack.c.l.b16 %v1584
    %v1954 = vunpack.c.h.b16 %v1584
    %v1955 = vunpack.c.l.b16 %v1585
    %v1956 = vunpack.c.h.b16 %v1585
    %v1957 = vunpack.c.l.b16 %v1586
    %v1958 = vunpack.c.h.b16 %v1586
    %v1959 = vunpack.c.l.b16 %v1587
    %v1960 = vunpack.c.h.b16 %v1587
    %v1961 = vunpack.c.l.b16 %v1588
    %v1962 = vunpack.c.h.b16 %v1588
    %v1963 = vunpack.c.l.b16 %v1589
    %v1964 = vunpack.c.h.b16 %v1589
    %v1965 = vunpack.c.l.b16 %v1590
    %v1966 = vunpack.c.h.b16 %v1590
    %v1967 = vunpack.c.l.b16 %v1591
    %v1968 = vunpack.c.h.b16 %v1591
    %v1969 = vunpack.c.l.b16 %v1592
    %v1970 = vunpack.c.h.b16 %v1592
    %v1971 = vunpack.c.l.b16 %v1593
    %v1972 = vunpack.c.h.b16 %v1593
    %v1973 = vunpack.c.l.b16 %v1594
    %v1974 = vunpack.c.h.b16 %v1594
    %v1975 = vunpack.c.l.b16 %v1595
    %v1976 = vunpack.c.h.b16 %v1595
    %v1977 = vunpack.c.l.b16 %v1596
    %v1978 = vunpack.c.h.b16 %v1596
    %v1979 = vunpack.c.l.b16 %v1597
    %v1980 = vunpack.c.h.b16 %v1597
    %v1981 = vunpack.c.l.b16 %v1598
    %v1982 = vunpack.c.h.b16 %v1598
    %v1983 = vunpack.c.l.b16 %v1599
    %v1984 = vunpack.c.h.b16 %v1599
    %v1985 = vunpack.c.l.b16 %v1600
    %v1986 = vunpack.c.h.b16 %v1600
    %v1987 = vunpack.c.l.b16 %v1601
    %v1988 = vunpack.c.h.b16 %v1601
    %v1989 = vunpack.c.l.b16 %v1602
    %v1990 = vunpack.c.h.b16 %v1602
    %v1991 = vunpack.c.l.b16 %v1603
    %v1992 = vunpack.c.h.b16 %v1603
    %v1993 = vunpack.c.l.b16 %v1604
    %v1994 = vunpack.c.h.b16 %v1604
    %v1995 = vunpack.c.l.b16 %v1605
    %v1996 = vunpack.c.h.b16 %v1605
    %v1997 = vunpack.c.l.b16 %v1606
    %v1998 = vunpack.c.h.b16 %v1606
    %v1999 = vunpack.c.l.b16 %v1607
    %v2000 = vunpack.c.h.b16 %v1607
    %v2001 = vunpack.c.l.b16 %v1608
    %v2002 = vunpack.c.h.b16 %v1608
    %v2003 = vpack.c.b16 %v1751, %v1747
    %v2004 = vpack.c.b16 %v1752, %v1748
    %v2005 = vpack.c.b16 %v1753, %v1749
    %v2006 = vpack.c.b16 %v1754, %v1750
    %v2007 = vpack.c.b16 %v1759, %v1755
    %v2008 = vpack.c.b16 %v1760, %v1756
    %v2009 = vpack.c.b16 %v1761, %v1757
    %v2010 = vpack.c.b16 %v1762, %v1758
    %v2011 = vpack.c.b16 %v1767, %v1763
    %v2012 = vpack.c.b16 %v1768, %v1764
    %v2013 = vpack.c.b16 %v1769, %v1765
    %v2014 = vpack.c.b16 %v1770, %v1766
    %v2015 = vpack.c.b16 %v1775, %v1771
    %v2016 = vpack.c.b16 %v1776, %v1772
    %v2017 = vpack.c.b16 %v1777, %v1773
    %v2018 = vpack.c.b16 %v1778, %v1774
    %v2019 = vpack.c.b16 %v1783, %v1779
    %v2020 = vpack.c.b16 %v1784, %v1780
    %v2021 = vpack.c.b16 %v1785, %v1781
    %v2022 = vpack.c.b16 %v1786, %v1782
    %v2023 = vpack.c.b16 %v1791, %v1787
    %v2024 = vpack.c.b16 %v1792, %v1788
    %v2025 = vpack.c.b16 %v1793, %v1789
    %v2026 = vpack.c.b16 %v1794, %v1790
    %v2027 = vpack.c.b16 %v1799, %v1795
    %v2028 = vpack.c.b16 %v1800, %v1796
    %v2029 = vpack.c.b16 %v1801, %v1797
    %v2030 = vpack.c.b16 %v1802, %v1798
    %v2031 = vpack.c.b16 %v1807, %v1803
    %v2032 = vpack.c.b16 %v1808, %v1804
    %v2033 = vpack.c.b16 %v1809, %v1805
    %v2034 = vpack.c.b16 %v1810, %v1806
    %v2035 = vpack.c.b16 %v1815, %v1811
    %v2036 = vpack.c.b16 %v1816, %v1812
    %v2037 = vpack.c.b16 %v1817, %v1813
    %v2038 = vpack.c.b16 %v1818, %v1814
    %v2039 = vpack.c.b16 %v1823, %v1819
    %v2040 = vpack.c.b16 %v1824, %v1820
    %v2041 = vpack.c.b16 %v1825, %v1821
    %v2042 = vpack.c.b16 %v1826, %v1822
    %v2043 = vpack.c.b16 %v1831, %v1827
    %v2044 = vpack.c.b16 %v1832, %v1828
    %v2045 = vpack.c.b16 %v1833, %v1829
    %v2046 = vpack.c.b16 %v1834, %v1830
    %v2047 = vpack.c.b16 %v1839, %v1835
    %v2048 = vpack.c.b16 %v1840, %v1836
    %v2049 = vpack.c.b16 %v1841, %v1837
    %v2050 = vpack.c.b16 %v1842, %v1838
    %v2051 = vpack.c.b16 %v1847, %v1843
    %v2052 = vpack.c.b16 %v1848, %v1844
    %v2053 = vpack.c.b16 %v1849, %v1845
    %v2054 = vpack.c.b16 %v1850, %v1846
    %v2055 = vpack.c.b16 %v1855, %v1851
    %v2056 = vpack.c.b16 %v1856, %v1852
    %v2057 = vpack.c.b16 %v1857, %v1853
    %v2058 = vpack.c.b16 %v1858, %v1854
    %v2059 = vpack.c.b16 %v1863, %v1859
    %v2060 = vpack.c.b16 %v1864, %v1860
    %v2061 = vpack.c.b16 %v1865, %v1861
    %v2062 = vpack.c.b16 %v1866, %v1862
    %v2063 = vpack.c.b16 %v1871, %v1867
    %v2064 = vpack.c.b16 %v1872, %v1868
    %v2065 = vpack.c.b16 %v1873, %v1869
    %v2066 = vpack.c.b16 %v1874, %v1870
    %v2067 = vpack.c.b16 %v1879, %v1875
    %v2068 = vpack.c.b16 %v1880, %v1876
    %v2069 = vpack.c.b16 %v1881, %v1877
    %v2070 = vpack.c.b16 %v1882, %v1878
    %v2071 = vpack.c.b16 %v1887, %v1883
    %v2072 = vpack.c.b16 %v1888, %v1884
    %v2073 = vpack.c.b16 %v1889, %v1885
    %v2074 = vpack.c.b16 %v1890, %v1886
    %v2075 = vpack.c.b16 %v1895, %v1891
    %v2076 = vpack.c.b16 %v1896, %v1892
    %v2077 = vpack.c.b16 %v1897, %v1893
    %v2078 = vpack.c.b16 %v1898, %v1894
    %v2079 = vpack.c.b16 %v1903, %v1899
    %v2080 = vpack.c.b16 %v1904, %v1900
    %v2081 = vpack.c.b16 %v1905, %v1901
    %v2082 = vpack.c.b16 %v1906, %v1902
    %v2083 = vpack.c.b16 %v1911, %v1907
    %v2084 = vpack.c.b16 %v1912, %v1908
    %v2085 = vpack.c.b16 %v1913, %v1909
    %v2086 = vpack.c.b16 %v1914, %v1910
    %v2087 = vpack.c.b16 %v1919, %v1915
    %v2088 = vpack.c.b16 %v1920, %v1916
    %v2089 = vpack.c.b16 %v1921, %v1917
    %v2090 = vpack.c.b16 %v1922, %v1918
    %v2091 = vpack.c.b16 %v1927, %v1923
    %v2092 = vpack.c.b16 %v1928, %v1924
    %v2093 = vpack.c.b16 %v1929, %v1925
    %v2094 = vpack.c.b16 %v1930, %v1926
    %v2095 = vpack.c.b16 %v1935, %v1931
    %v2096 = vpack.c.b16 %v1936, %v1932
    %v2097 = vpack.c.b16 %v1937, %v1933
    %v2098 = vpack.c.b16 %v1938, %v1934
    %v2099 = vpack.c.b16 %v1943, %v1939
    %v2100 = vpack.c.b16 %v1944, %v1940
    %v2101 = vpack.c.b16 %v1945, %v1941
    %v2102 = vpack.c.b16 %v1946, %v1942
    %v2103 = vpack.c.b16 %v1951, %v1947
    %v2104 = vpack.c.b16 %v1952, %v1948
    %v2105 = vpack.c.b16 %v1953, %v1949
    %v2106 = vpack.c.b16 %v1954, %v1950
    %v2107 = vpack.c.b16 %v1959, %v1955
    %v2108 = vpack.c.b16 %v1960, %v1956
    %v2109 = vpack.c.b16 %v1961, %v1957
    %v2110 = vpack.c.b16 %v1962, %v1958
    %v2111 = vpack.c.b16 %v1967, %v1963
    %v2112 = vpack.c.b16 %v1968, %v1964
    %v2113 = vpack.c.b16 %v1969, %v1965
    %v2114 = vpack.c.b16 %v1970, %v1966
    %v2115 = vpack.c.b16 %v1975, %v1971
    %v2116 = vpack.c.b16 %v1976, %v1972
    %v2117 = vpack.c.b16 %v1977, %v1973
    %v2118 = vpack.c.b16 %v1978, %v1974
    %v2119 = vpack.c.b16 %v1983, %v1979
    %v2120 = vpack.c.b16 %v1984, %v1980
    %v2121 = vpack.c.b16 %v1985, %v1981
    %v2122 = vpack.c.b16 %v1986, %v1982
    %v2123 = vpack.c.b16 %v1991, %v1987
    %v2124 = vpack.c.b16 %v1992, %v1988
    %v2125 = vpack.c.b16 %v1993, %v1989
    %v2126 = vpack.c.b16 %v1994, %v1990
    %v2127 = vpack.c.b16 %v1999, %v1995
    %v2128 = vpack.c.b16 %v2000, %v1996
    %v2129 = vpack.c.b16 %v2001, %v1997
    %v2130 = vpack.c.b16 %v2002, %v1998
    %2259 = vmatpush.bf16.msra.mxu0 %v2031
    %2260 = vmatpush.bf16.msra.mxu0 %v2027
    %2261 = vmatpush.bf16.msra.mxu0 %v2023
    %2262 = vmatpush.bf16.msra.mxu0 %v2019
    %2263 = vmatpush.bf16.msra.mxu0 %v2015
    %2264 = vmatpush.bf16.msra.mxu0 %v2011
    %2265 = vmatpush.bf16.msra.mxu0 %v2007
    %2266 = vmatpush.bf16.msra.mxu0 %v2003
    %2267 = vmatmul.bf16.gmra.mxu0 %v1477
    %v2268 = vpop.f32.mrf.mxu0
    %v2269 = vadd.f32 %v1611, %v2268
    %v2270 = vpop.f32.mrf.mxu0
    %v2271 = vadd.f32 %v1611, %v2270
    %2272 = vdwg.mxu0
    %2273 = vmatpush.bf16.msra.mxu0 %v2063
    %2274 = vmatpush.bf16.msra.mxu0 %v2059
    %2275 = vmatpush.bf16.msra.mxu0 %v2055
    %2276 = vmatpush.bf16.msra.mxu0 %v2051
    %2277 = vmatpush.bf16.msra.mxu0 %v2047
    %2278 = vmatpush.bf16.msra.mxu0 %v2043
    %2279 = vmatpush.bf16.msra.mxu0 %v2039
    %2280 = vmatpush.bf16.msra.mxu0 %v2035
    %2281 = vmatmul.bf16.gmra.mxu0 %v1478
    %v2282 = vpop.f32.mrf.mxu0
    %v2283 = vadd.f32 %v2269, %v2282
    %v2284 = vpop.f32.mrf.mxu0
    %v2285 = vadd.f32 %v2271, %v2284
    %2286 = vdwg.mxu0
    %2287 = vmatpush.bf16.msra.mxu0 %v2095
    %2288 = vmatpush.bf16.msra.mxu0 %v2091
    %2289 = vmatpush.bf16.msra.mxu0 %v2087
    %2290 = vmatpush.bf16.msra.mxu0 %v2083
    %2291 = vmatpush.bf16.msra.mxu0 %v2079
    %2292 = vmatpush.bf16.msra.mxu0 %v2075
    %2293 = vmatpush.bf16.msra.mxu0 %v2071
    %2294 = vmatpush.bf16.msra.mxu0 %v2067
    %2295 = vmatmul.bf16.gmra.mxu0 %v1479
    %v2296 = vpop.f32.mrf.mxu0
    %v2297 = vadd.f32 %v2283, %v2296
    %v2298 = vpop.f32.mrf.mxu0
    %v2299 = vadd.f32 %v2285, %v2298
    %2300 = vdwg.mxu0
    %2301 = vmatpush.bf16.msra.mxu0 %v2127
    %2302 = vmatpush.bf16.msra.mxu0 %v2123
    %2303 = vmatpush.bf16.msra.mxu0 %v2119
    %2304 = vmatpush.bf16.msra.mxu0 %v2115
    %2305 = vmatpush.bf16.msra.mxu0 %v2111
    %2306 = vmatpush.bf16.msra.mxu0 %v2107
    %2307 = vmatpush.bf16.msra.mxu0 %v2103
    %2308 = vmatpush.bf16.msra.mxu0 %v2099
    %2309 = vmatmul.bf16.gmra.mxu0 %v1480
    %v2310 = vpop.f32.mrf.mxu0
    %v2311 = vadd.f32 %v2297, %v2310
    %v2312 = vpop.f32.mrf.mxu0
    %v2313 = vadd.f32 %v2299, %v2312
    %2314 = vdwg.mxu0
    %2315 = vmatpush.bf16.msra.mxu0 %v2032
    %2316 = vmatpush.bf16.msra.mxu0 %v2028
    %2317 = vmatpush.bf16.msra.mxu0 %v2024
    %2318 = vmatpush.bf16.msra.mxu0 %v2020
    %2319 = vmatpush.bf16.msra.mxu0 %v2016
    %2320 = vmatpush.bf16.msra.mxu0 %v2012
    %2321 = vmatpush.bf16.msra.mxu0 %v2008
    %2322 = vmatpush.bf16.msra.mxu0 %v2004
    %2323 = vmatmul.bf16.gmra.mxu0 %v1477
    %v2324 = vpop.f32.mrf.mxu0
    %v2325 = vadd.f32 %v1612, %v2324
    %v2326 = vpop.f32.mrf.mxu0
    %v2327 = vadd.f32 %v1612, %v2326
    %2328 = vdwg.mxu0
    %2329 = vmatpush.bf16.msra.mxu0 %v2064
    %2330 = vmatpush.bf16.msra.mxu0 %v2060
    %2331 = vmatpush.bf16.msra.mxu0 %v2056
    %2332 = vmatpush.bf16.msra.mxu0 %v2052
    %2333 = vmatpush.bf16.msra.mxu0 %v2048
    %2334 = vmatpush.bf16.msra.mxu0 %v2044
    %2335 = vmatpush.bf16.msra.mxu0 %v2040
    %2336 = vmatpush.bf16.msra.mxu0 %v2036
    %2337 = vmatmul.bf16.gmra.mxu0 %v1478
    %v2338 = vpop.f32.mrf.mxu0
    %v2339 = vadd.f32 %v2325, %v2338
    %v2340 = vpop.f32.mrf.mxu0
    %v2341 = vadd.f32 %v2327, %v2340
    %2342 = vdwg.mxu0
    %2343 = vmatpush.bf16.msra.mxu0 %v2096
    %2344 = vmatpush.bf16.msra.mxu0 %v2092
    %2345 = vmatpush.bf16.msra.mxu0 %v2088
    %2346 = vmatpush.bf16.msra.mxu0 %v2084
    %2347 = vmatpush.bf16.msra.mxu0 %v2080
    %2348 = vmatpush.bf16.msra.mxu0 %v2076
    %2349 = vmatpush.bf16.msra.mxu0 %v2072
    %2350 = vmatpush.bf16.msra.mxu0 %v2068
    %2351 = vmatmul.bf16.gmra.mxu0 %v1479
    %v2352 = vpop.f32.mrf.mxu0
    %v2353 = vadd.f32 %v2339, %v2352
    %v2354 = vpop.f32.mrf.mxu0
    %v2355 = vadd.f32 %v2341, %v2354
    %2356 = vdwg.mxu0
    %2357 = vmatpush.bf16.msra.mxu0 %v2128
    %2358 = vmatpush.bf16.msra.mxu0 %v2124
    %2359 = vmatpush.bf16.msra.mxu0 %v2120
    %2360 = vmatpush.bf16.msra.mxu0 %v2116
    %2361 = vmatpush.bf16.msra.mxu0 %v2112
    %2362 = vmatpush.bf16.msra.mxu0 %v2108
    %2363 = vmatpush.bf16.msra.mxu0 %v2104
    %2364 = vmatpush.bf16.msra.mxu0 %v2100
    %2365 = vmatmul.bf16.gmra.mxu0 %v1480
    %v2366 = vpop.f32.mrf.mxu0
    %v2367 = vadd.f32 %v2353, %v2366
    %v2368 = vpop.f32.mrf.mxu0
    %v2369 = vadd.f32 %v2355, %v2368
    %2370 = vdwg.mxu0
    %2371 = vmatpush.bf16.msra.mxu0 %v2033
    %2372 = vmatpush.bf16.msra.mxu0 %v2029
    %2373 = vmatpush.bf16.msra.mxu0 %v2025
    %2374 = vmatpush.bf16.msra.mxu0 %v2021
    %2375 = vmatpush.bf16.msra.mxu0 %v2017
    %2376 = vmatpush.bf16.msra.mxu0 %v2013
    %2377 = vmatpush.bf16.msra.mxu0 %v2009
    %2378 = vmatpush.bf16.msra.mxu0 %v2005
    %2379 = vmatmul.bf16.gmra.mxu0 %v1477
    %v2380 = vpop.f32.mrf.mxu0
    %v2381 = vadd.f32 %v1613, %v2380
    %v2382 = vpop.f32.mrf.mxu0
    %v2383 = vadd.f32 %v1613, %v2382
    %2384 = vdwg.mxu0
    %2385 = vmatpush.bf16.msra.mxu0 %v2065
    %2386 = vmatpush.bf16.msra.mxu0 %v2061
    %2387 = vmatpush.bf16.msra.mxu0 %v2057
    %2388 = vmatpush.bf16.msra.mxu0 %v2053
    %2389 = vmatpush.bf16.msra.mxu0 %v2049
    %2390 = vmatpush.bf16.msra.mxu0 %v2045
    %2391 = vmatpush.bf16.msra.mxu0 %v2041
    %2392 = vmatpush.bf16.msra.mxu0 %v2037
    %2393 = vmatmul.bf16.gmra.mxu0 %v1478
    %v2394 = vpop.f32.mrf.mxu0
    %v2395 = vadd.f32 %v2381, %v2394
    %v2396 = vpop.f32.mrf.mxu0
    %v2397 = vadd.f32 %v2383, %v2396
    %2398 = vdwg.mxu0
    %2399 = vmatpush.bf16.msra.mxu0 %v2097
    %2400 = vmatpush.bf16.msra.mxu0 %v2093
    %2401 = vmatpush.bf16.msra.mxu0 %v2089
    %2402 = vmatpush.bf16.msra.mxu0 %v2085
    %2403 = vmatpush.bf16.msra.mxu0 %v2081
    %2404 = vmatpush.bf16.msra.mxu0 %v2077
    %2405 = vmatpush.bf16.msra.mxu0 %v2073
    %2406 = vmatpush.bf16.msra.mxu0 %v2069
    %2407 = vmatmul.bf16.gmra.mxu0 %v1479
    %v2408 = vpop.f32.mrf.mxu0
    %v2409 = vadd.f32 %v2395, %v2408
    %v2410 = vpop.f32.mrf.mxu0
    %v2411 = vadd.f32 %v2397, %v2410
    %2412 = vdwg.mxu0
    %2413 = vmatpush.bf16.msra.mxu0 %v2129
    %2414 = vmatpush.bf16.msra.mxu0 %v2125
    %2415 = vmatpush.bf16.msra.mxu0 %v2121
    %2416 = vmatpush.bf16.msra.mxu0 %v2117
    %2417 = vmatpush.bf16.msra.mxu0 %v2113
    %2418 = vmatpush.bf16.msra.mxu0 %v2109
    %2419 = vmatpush.bf16.msra.mxu0 %v2105
    %2420 = vmatpush.bf16.msra.mxu0 %v2101
    %2421 = vmatmul.bf16.gmra.mxu0 %v1480
    %v2422 = vpop.f32.mrf.mxu0
    %v2423 = vadd.f32 %v2409, %v2422
    %v2424 = vpop.f32.mrf.mxu0
    %v2425 = vadd.f32 %v2411, %v2424
    %2426 = vdwg.mxu0
    %2427 = vmatpush.bf16.msra.mxu0 %v2034
    %2428 = vmatpush.bf16.msra.mxu0 %v2030
    %2429 = vmatpush.bf16.msra.mxu0 %v2026
    %2430 = vmatpush.bf16.msra.mxu0 %v2022
    %2431 = vmatpush.bf16.msra.mxu0 %v2018
    %2432 = vmatpush.bf16.msra.mxu0 %v2014
    %2433 = vmatpush.bf16.msra.mxu0 %v2010
    %2434 = vmatpush.bf16.msra.mxu0 %v2006
    %2435 = vmatmul.bf16.gmra.mxu0 %v1477
    %v2436 = vpop.f32.mrf.mxu0
    %v2437 = vadd.f32 %v1614, %v2436
    %v2438 = vpop.f32.mrf.mxu0
    %v2439 = vadd.f32 %v1614, %v2438
    %2440 = vdwg.mxu0
    %2441 = vmatpush.bf16.msra.mxu0 %v2066
    %2442 = vmatpush.bf16.msra.mxu0 %v2062
    %2443 = vmatpush.bf16.msra.mxu0 %v2058
    %2444 = vmatpush.bf16.msra.mxu0 %v2054
    %2445 = vmatpush.bf16.msra.mxu0 %v2050
    %2446 = vmatpush.bf16.msra.mxu0 %v2046
    %2447 = vmatpush.bf16.msra.mxu0 %v2042
    %2448 = vmatpush.bf16.msra.mxu0 %v2038
    %2449 = vmatmul.bf16.gmra.mxu0 %v1478
    %v2450 = vpop.f32.mrf.mxu0
    %v2451 = vadd.f32 %v2437, %v2450
    %v2452 = vpop.f32.mrf.mxu0
    %v2453 = vadd.f32 %v2439, %v2452
    %2454 = vdwg.mxu0
    %2455 = vmatpush.bf16.msra.mxu0 %v2098
    %2456 = vmatpush.bf16.msra.mxu0 %v2094
    %2457 = vmatpush.bf16.msra.mxu0 %v2090
    %2458 = vmatpush.bf16.msra.mxu0 %v2086
    %2459 = vmatpush.bf16.msra.mxu0 %v2082
    %2460 = vmatpush.bf16.msra.mxu0 %v2078
    %2461 = vmatpush.bf16.msra.mxu0 %v2074
    %2462 = vmatpush.bf16.msra.mxu0 %v2070
    %2463 = vmatmul.bf16.gmra.mxu0 %v1479
    %v2464 = vpop.f32.mrf.mxu0
    %v2465 = vadd.f32 %v2451, %v2464
    %v2466 = vpop.f32.mrf.mxu0
    %v2467 = vadd.f32 %v2453, %v2466
    %2468 = vdwg.mxu0
    %2469 = vmatpush.bf16.msra.mxu0 %v2130
    %2470 = vmatpush.bf16.msra.mxu0 %v2126
    %2471 = vmatpush.bf16.msra.mxu0 %v2122
    %2472 = vmatpush.bf16.msra.mxu0 %v2118
    %2473 = vmatpush.bf16.msra.mxu0 %v2114
    %2474 = vmatpush.bf16.msra.mxu0 %v2110
    %2475 = vmatpush.bf16.msra.mxu0 %v2106
    %2476 = vmatpush.bf16.msra.mxu0 %v2102
    %2477 = vmatmul.bf16.gmra.mxu0 %v1480
    %v2478 = vpop.f32.mrf.mxu0
    %v2479 = vadd.f32 %v2465, %v2478
    %v2480 = vpop.f32.mrf.mxu0
    %v2481 = vadd.f32 %v2467, %v2480
    %2482 = vdwg.mxu0
    %v2483 = vtanh.pop %v2311
    %v2484 = vtanh.pop %v2367
    %v2485 = vtanh.pop %v2423
    %v2486 = vtanh.pop %v2479
    %v2487 = vtanh.pop %v2313
    %v2488 = vtanh.pop %v2369
    %v2489 = vtanh.pop %v2425
    %v2490 = vtanh.pop %v2481
    %v2491 = vpack.c.bf16 %v1473, %v1469
    %v2492 = vpack.c.bf16 %v1474, %v1470
    %v2493 = vpack.c.bf16 %v1475, %v1471
    %v2494 = vpack.c.bf16 %v1476, %v1472
    %v2495 = vld [vmem:[#allocation11] sm:$0xff]
    %v2496 = vld [vmem:[#allocation11 + $0x8] sm:$0xff]
    %v2497 = vld [vmem:[#allocation11 + $0x10] sm:$0xff]
    %v2498 = vld [vmem:[#allocation11 + $0x18] sm:$0xff]
    %v2499 = vld [vmem:[#allocation11 + $0x20] sm:$0xff]
    %v2500 = vld [vmem:[#allocation11 + $0x28] sm:$0xff]
    %v2501 = vld [vmem:[#allocation11 + $0x30] sm:$0xff]
    %v2502 = vld [vmem:[#allocation11 + $0x38] sm:$0xff]
    %v2503 = vld [vmem:[#allocation11 + $0x40] sm:$0xff]
    %v2504 = vld [vmem:[#allocation11 + $0x48] sm:$0xff]
    %v2505 = vld [vmem:[#allocation11 + $0x50] sm:$0xff]
    %v2506 = vld [vmem:[#allocation11 + $0x58] sm:$0xff]
    %v2507 = vld [vmem:[#allocation11 + $0x60] sm:$0xff]
    %v2508 = vld [vmem:[#allocation11 + $0x68] sm:$0xff]
    %v2509 = vld [vmem:[#allocation11 + $0x70] sm:$0xff]
    %v2510 = vld [vmem:[#allocation11 + $0x78] sm:$0xff]
    %v2511 = vld [vmem:[#allocation11 + $0x80] sm:$0xff]
    %v2512 = vld [vmem:[#allocation11 + $0x88] sm:$0xff]
    %v2513 = vld [vmem:[#allocation11 + $0x90] sm:$0xff]
    %v2514 = vld [vmem:[#allocation11 + $0x98] sm:$0xff]
    %v2515 = vld [vmem:[#allocation11 + $0xa0] sm:$0xff]
    %v2516 = vld [vmem:[#allocation11 + $0xa8] sm:$0xff]
    %v2517 = vld [vmem:[#allocation11 + $0xb0] sm:$0xff]
    %v2518 = vld [vmem:[#allocation11 + $0xb8] sm:$0xff]
    %v2519 = vld [vmem:[#allocation11 + $0xc0] sm:$0xff]
    %v2520 = vld [vmem:[#allocation11 + $0xc8] sm:$0xff]
    %v2521 = vld [vmem:[#allocation11 + $0xd0] sm:$0xff]
    %v2522 = vld [vmem:[#allocation11 + $0xd8] sm:$0xff]
    %v2523 = vld [vmem:[#allocation11 + $0xe0] sm:$0xff]
    %v2524 = vld [vmem:[#allocation11 + $0xe8] sm:$0xff]
    %v2525 = vld [vmem:[#allocation11 + $0xf0] sm:$0xff]
    %v2526 = vld [vmem:[#allocation11 + $0xf8] sm:$0xff]
    %v2527 = vld [vmem:[#allocation11 + $0x100] sm:$0xff]
    %v2528 = vld [vmem:[#allocation11 + $0x108] sm:$0xff]
    %v2529 = vld [vmem:[#allocation11 + $0x110] sm:$0xff]
    %v2530 = vld [vmem:[#allocation11 + $0x118] sm:$0xff]
    %v2531 = vld [vmem:[#allocation11 + $0x120] sm:$0xff]
    %v2532 = vld [vmem:[#allocation11 + $0x128] sm:$0xff]
    %v2533 = vld [vmem:[#allocation11 + $0x130] sm:$0xff]
    %v2534 = vld [vmem:[#allocation11 + $0x138] sm:$0xff]
    %v2535 = vld [vmem:[#allocation11 + $0x140] sm:$0xff]
    %v2536 = vld [vmem:[#allocation11 + $0x148] sm:$0xff]
    %v2537 = vld [vmem:[#allocation11 + $0x150] sm:$0xff]
    %v2538 = vld [vmem:[#allocation11 + $0x158] sm:$0xff]
    %v2539 = vld [vmem:[#allocation11 + $0x160] sm:$0xff]
    %v2540 = vld [vmem:[#allocation11 + $0x168] sm:$0xff]
    %v2541 = vld [vmem:[#allocation11 + $0x170] sm:$0xff]
    %v2542 = vld [vmem:[#allocation11 + $0x178] sm:$0xff]
    %v2543 = vld [vmem:[#allocation11 + $0x180] sm:$0xff]
    %v2544 = vld [vmem:[#allocation11 + $0x188] sm:$0xff]
    %v2545 = vld [vmem:[#allocation11 + $0x190] sm:$0xff]
    %v2546 = vld [vmem:[#allocation11 + $0x198] sm:$0xff]
    %v2547 = vld [vmem:[#allocation11 + $0x1a0] sm:$0xff]
    %v2548 = vld [vmem:[#allocation11 + $0x1a8] sm:$0xff]
    %v2549 = vld [vmem:[#allocation11 + $0x1b0] sm:$0xff]
    %v2550 = vld [vmem:[#allocation11 + $0x1b8] sm:$0xff]
    %v2551 = vld [vmem:[#allocation11 + $0x1c0] sm:$0xff]
    %v2552 = vld [vmem:[#allocation11 + $0x1c8] sm:$0xff]
    %v2553 = vld [vmem:[#allocation11 + $0x1d0] sm:$0xff]
    %v2554 = vld [vmem:[#allocation11 + $0x1d8] sm:$0xff]
    %v2555 = vld [vmem:[#allocation11 + $0x1e0] sm:$0xff]
    %v2556 = vld [vmem:[#allocation11 + $0x1e8] sm:$0xff]
    %v2557 = vld [vmem:[#allocation11 + $0x1f0] sm:$0xff]
    %v2558 = vld [vmem:[#allocation11 + $0x1f8] sm:$0xff]
    %v2559 = vld [vmem:[#allocation11 + $0x200] sm:$0xff]
    %v2560 = vld [vmem:[#allocation11 + $0x208] sm:$0xff]
    %v2561 = vld [vmem:[#allocation11 + $0x210] sm:$0xff]
    %v2562 = vld [vmem:[#allocation11 + $0x218] sm:$0xff]
    %v2563 = vld [vmem:[#allocation11 + $0x220] sm:$0xff]
    %v2564 = vld [vmem:[#allocation11 + $0x228] sm:$0xff]
    %v2565 = vld [vmem:[#allocation11 + $0x230] sm:$0xff]
    %v2566 = vld [vmem:[#allocation11 + $0x238] sm:$0xff]
    %v2567 = vld [vmem:[#allocation11 + $0x240] sm:$0xff]
    %v2568 = vld [vmem:[#allocation11 + $0x248] sm:$0xff]
    %v2569 = vld [vmem:[#allocation11 + $0x250] sm:$0xff]
    %v2570 = vld [vmem:[#allocation11 + $0x258] sm:$0xff]
    %v2571 = vld [vmem:[#allocation11 + $0x260] sm:$0xff]
    %v2572 = vld [vmem:[#allocation11 + $0x268] sm:$0xff]
    %v2573 = vld [vmem:[#allocation11 + $0x270] sm:$0xff]
    %v2574 = vld [vmem:[#allocation11 + $0x278] sm:$0xff]
    %v2575 = vld [vmem:[#allocation11 + $0x280] sm:$0xff]
    %v2576 = vld [vmem:[#allocation11 + $0x288] sm:$0xff]
    %v2577 = vld [vmem:[#allocation11 + $0x290] sm:$0xff]
    %v2578 = vld [vmem:[#allocation11 + $0x298] sm:$0xff]
    %v2579 = vld [vmem:[#allocation11 + $0x2a0] sm:$0xff]
    %v2580 = vld [vmem:[#allocation11 + $0x2a8] sm:$0xff]
    %v2581 = vld [vmem:[#allocation11 + $0x2b0] sm:$0xff]
    %v2582 = vld [vmem:[#allocation11 + $0x2b8] sm:$0xff]
    %v2583 = vld [vmem:[#allocation11 + $0x2c0] sm:$0xff]
    %v2584 = vld [vmem:[#allocation11 + $0x2c8] sm:$0xff]
    %v2585 = vld [vmem:[#allocation11 + $0x2d0] sm:$0xff]
    %v2586 = vld [vmem:[#allocation11 + $0x2d8] sm:$0xff]
    %v2587 = vld [vmem:[#allocation11 + $0x2e0] sm:$0xff]
    %v2588 = vld [vmem:[#allocation11 + $0x2e8] sm:$0xff]
    %v2589 = vld [vmem:[#allocation11 + $0x2f0] sm:$0xff]
    %v2590 = vld [vmem:[#allocation11 + $0x2f8] sm:$0xff]
    %v2591 = vld [vmem:[#allocation11 + $0x300] sm:$0xff]
    %v2592 = vld [vmem:[#allocation11 + $0x308] sm:$0xff]
    %v2593 = vld [vmem:[#allocation11 + $0x310] sm:$0xff]
    %v2594 = vld [vmem:[#allocation11 + $0x318] sm:$0xff]
    %v2595 = vld [vmem:[#allocation11 + $0x320] sm:$0xff]
    %v2596 = vld [vmem:[#allocation11 + $0x328] sm:$0xff]
    %v2597 = vld [vmem:[#allocation11 + $0x330] sm:$0xff]
    %v2598 = vld [vmem:[#allocation11 + $0x338] sm:$0xff]
    %v2599 = vld [vmem:[#allocation11 + $0x340] sm:$0xff]
    %v2600 = vld [vmem:[#allocation11 + $0x348] sm:$0xff]
    %v2601 = vld [vmem:[#allocation11 + $0x350] sm:$0xff]
    %v2602 = vld [vmem:[#allocation11 + $0x358] sm:$0xff]
    %v2603 = vld [vmem:[#allocation11 + $0x360] sm:$0xff]
    %v2604 = vld [vmem:[#allocation11 + $0x368] sm:$0xff]
    %v2605 = vld [vmem:[#allocation11 + $0x370] sm:$0xff]
    %v2606 = vld [vmem:[#allocation11 + $0x378] sm:$0xff]
    %v2607 = vld [vmem:[#allocation11 + $0x380] sm:$0xff]
    %v2608 = vld [vmem:[#allocation11 + $0x388] sm:$0xff]
    %v2609 = vld [vmem:[#allocation11 + $0x390] sm:$0xff]
    %v2610 = vld [vmem:[#allocation11 + $0x398] sm:$0xff]
    %v2611 = vld [vmem:[#allocation11 + $0x3a0] sm:$0xff]
    %v2612 = vld [vmem:[#allocation11 + $0x3a8] sm:$0xff]
    %v2613 = vld [vmem:[#allocation11 + $0x3b0] sm:$0xff]
    %v2614 = vld [vmem:[#allocation11 + $0x3b8] sm:$0xff]
    %v2615 = vld [vmem:[#allocation11 + $0x3c0] sm:$0xff]
    %v2616 = vld [vmem:[#allocation11 + $0x3c8] sm:$0xff]
    %v2617 = vld [vmem:[#allocation11 + $0x3d0] sm:$0xff]
    %v2618 = vld [vmem:[#allocation11 + $0x3d8] sm:$0xff]
    %v2619 = vld [vmem:[#allocation11 + $0x3e0] sm:$0xff]
    %v2620 = vld [vmem:[#allocation11 + $0x3e8] sm:$0xff]
    %v2621 = vld [vmem:[#allocation11 + $0x3f0] sm:$0xff]
    %v2622 = vld [vmem:[#allocation11 + $0x3f8] sm:$0xff]
    %v2623 = vld [vmem:[%s12] sm:$0xf]
    %v2625 = vperm.slane %v2623, 0
    %v2626 = vperm.slane %v2623, 1
    %v2627 = vperm.slane %v2623, 2
    %v2628 = vperm.slane %v2623, 3
    %v2761 = vunpack.c.l.b16 %v2495
    %v2762 = vunpack.c.h.b16 %v2495
    %v2763 = vunpack.c.l.b16 %v2496
    %v2764 = vunpack.c.h.b16 %v2496
    %v2765 = vunpack.c.l.b16 %v2497
    %v2766 = vunpack.c.h.b16 %v2497
    %v2767 = vunpack.c.l.b16 %v2498
    %v2768 = vunpack.c.h.b16 %v2498
    %v2769 = vunpack.c.l.b16 %v2499
    %v2770 = vunpack.c.h.b16 %v2499
    %v2771 = vunpack.c.l.b16 %v2500
    %v2772 = vunpack.c.h.b16 %v2500
    %v2773 = vunpack.c.l.b16 %v2501
    %v2774 = vunpack.c.h.b16 %v2501
    %v2775 = vunpack.c.l.b16 %v2502
    %v2776 = vunpack.c.h.b16 %v2502
    %v2777 = vunpack.c.l.b16 %v2503
    %v2778 = vunpack.c.h.b16 %v2503
    %v2779 = vunpack.c.l.b16 %v2504
    %v2780 = vunpack.c.h.b16 %v2504
    %v2781 = vunpack.c.l.b16 %v2505
    %v2782 = vunpack.c.h.b16 %v2505
    %v2783 = vunpack.c.l.b16 %v2506
    %v2784 = vunpack.c.h.b16 %v2506
    %v2785 = vunpack.c.l.b16 %v2507
    %v2786 = vunpack.c.h.b16 %v2507
    %v2787 = vunpack.c.l.b16 %v2508
    %v2788 = vunpack.c.h.b16 %v2508
    %v2789 = vunpack.c.l.b16 %v2509
    %v2790 = vunpack.c.h.b16 %v2509
    %v2791 = vunpack.c.l.b16 %v2510
    %v2792 = vunpack.c.h.b16 %v2510
    %v2793 = vunpack.c.l.b16 %v2511
    %v2794 = vunpack.c.h.b16 %v2511
    %v2795 = vunpack.c.l.b16 %v2512
    %v2796 = vunpack.c.h.b16 %v2512
    %v2797 = vunpack.c.l.b16 %v2513
    %v2798 = vunpack.c.h.b16 %v2513
    %v2799 = vunpack.c.l.b16 %v2514
    %v2800 = vunpack.c.h.b16 %v2514
    %v2801 = vunpack.c.l.b16 %v2515
    %v2802 = vunpack.c.h.b16 %v2515
    %v2803 = vunpack.c.l.b16 %v2516
    %v2804 = vunpack.c.h.b16 %v2516
    %v2805 = vunpack.c.l.b16 %v2517
    %v2806 = vunpack.c.h.b16 %v2517
    %v2807 = vunpack.c.l.b16 %v2518
    %v2808 = vunpack.c.h.b16 %v2518
    %v2809 = vunpack.c.l.b16 %v2519
    %v2810 = vunpack.c.h.b16 %v2519
    %v2811 = vunpack.c.l.b16 %v2520
    %v2812 = vunpack.c.h.b16 %v2520
    %v2813 = vunpack.c.l.b16 %v2521
    %v2814 = vunpack.c.h.b16 %v2521
    %v2815 = vunpack.c.l.b16 %v2522
    %v2816 = vunpack.c.h.b16 %v2522
    %v2817 = vunpack.c.l.b16 %v2523
    %v2818 = vunpack.c.h.b16 %v2523
    %v2819 = vunpack.c.l.b16 %v2524
    %v2820 = vunpack.c.h.b16 %v2524
    %v2821 = vunpack.c.l.b16 %v2525
    %v2822 = vunpack.c.h.b16 %v2525
    %v2823 = vunpack.c.l.b16 %v2526
    %v2824 = vunpack.c.h.b16 %v2526
    %v2825 = vunpack.c.l.b16 %v2527
    %v2826 = vunpack.c.h.b16 %v2527
    %v2827 = vunpack.c.l.b16 %v2528
    %v2828 = vunpack.c.h.b16 %v2528
    %v2829 = vunpack.c.l.b16 %v2529
    %v2830 = vunpack.c.h.b16 %v2529
    %v2831 = vunpack.c.l.b16 %v2530
    %v2832 = vunpack.c.h.b16 %v2530
    %v2833 = vunpack.c.l.b16 %v2531
    %v2834 = vunpack.c.h.b16 %v2531
    %v2835 = vunpack.c.l.b16 %v2532
    %v2836 = vunpack.c.h.b16 %v2532
    %v2837 = vunpack.c.l.b16 %v2533
    %v2838 = vunpack.c.h.b16 %v2533
    %v2839 = vunpack.c.l.b16 %v2534
    %v2840 = vunpack.c.h.b16 %v2534
    %v2841 = vunpack.c.l.b16 %v2535
    %v2842 = vunpack.c.h.b16 %v2535
    %v2843 = vunpack.c.l.b16 %v2536
    %v2844 = vunpack.c.h.b16 %v2536
    %v2845 = vunpack.c.l.b16 %v2537
    %v2846 = vunpack.c.h.b16 %v2537
    %v2847 = vunpack.c.l.b16 %v2538
    %v2848 = vunpack.c.h.b16 %v2538
    %v2849 = vunpack.c.l.b16 %v2539
    %v2850 = vunpack.c.h.b16 %v2539
    %v2851 = vunpack.c.l.b16 %v2540
    %v2852 = vunpack.c.h.b16 %v2540
    %v2853 = vunpack.c.l.b16 %v2541
    %v2854 = vunpack.c.h.b16 %v2541
    %v2855 = vunpack.c.l.b16 %v2542
    %v2856 = vunpack.c.h.b16 %v2542
    %v2857 = vunpack.c.l.b16 %v2543
    %v2858 = vunpack.c.h.b16 %v2543
    %v2859 = vunpack.c.l.b16 %v2544
    %v2860 = vunpack.c.h.b16 %v2544
    %v2861 = vunpack.c.l.b16 %v2545
    %v2862 = vunpack.c.h.b16 %v2545
    %v2863 = vunpack.c.l.b16 %v2546
    %v2864 = vunpack.c.h.b16 %v2546
    %v2865 = vunpack.c.l.b16 %v2547
    %v2866 = vunpack.c.h.b16 %v2547
    %v2867 = vunpack.c.l.b16 %v2548
    %v2868 = vunpack.c.h.b16 %v2548
    %v2869 = vunpack.c.l.b16 %v2549
    %v2870 = vunpack.c.h.b16 %v2549
    %v2871 = vunpack.c.l.b16 %v2550
    %v2872 = vunpack.c.h.b16 %v2550
    %v2873 = vunpack.c.l.b16 %v2551
    %v2874 = vunpack.c.h.b16 %v2551
    %v2875 = vunpack.c.l.b16 %v2552
    %v2876 = vunpack.c.h.b16 %v2552
    %v2877 = vunpack.c.l.b16 %v2553
    %v2878 = vunpack.c.h.b16 %v2553
    %v2879 = vunpack.c.l.b16 %v2554
    %v2880 = vunpack.c.h.b16 %v2554
    %v2881 = vunpack.c.l.b16 %v2555
    %v2882 = vunpack.c.h.b16 %v2555
    %v2883 = vunpack.c.l.b16 %v2556
    %v2884 = vunpack.c.h.b16 %v2556
    %v2885 = vunpack.c.l.b16 %v2557
    %v2886 = vunpack.c.h.b16 %v2557
    %v2887 = vunpack.c.l.b16 %v2558
    %v2888 = vunpack.c.h.b16 %v2558
    %v2889 = vunpack.c.l.b16 %v2559
    %v2890 = vunpack.c.h.b16 %v2559
    %v2891 = vunpack.c.l.b16 %v2560
    %v2892 = vunpack.c.h.b16 %v2560
    %v2893 = vunpack.c.l.b16 %v2561
    %v2894 = vunpack.c.h.b16 %v2561
    %v2895 = vunpack.c.l.b16 %v2562
    %v2896 = vunpack.c.h.b16 %v2562
    %v2897 = vunpack.c.l.b16 %v2563
    %v2898 = vunpack.c.h.b16 %v2563
    %v2899 = vunpack.c.l.b16 %v2564
    %v2900 = vunpack.c.h.b16 %v2564
    %v2901 = vunpack.c.l.b16 %v2565
    %v2902 = vunpack.c.h.b16 %v2565
    %v2903 = vunpack.c.l.b16 %v2566
    %v2904 = vunpack.c.h.b16 %v2566
    %v2905 = vunpack.c.l.b16 %v2567
    %v2906 = vunpack.c.h.b16 %v2567
    %v2907 = vunpack.c.l.b16 %v2568
    %v2908 = vunpack.c.h.b16 %v2568
    %v2909 = vunpack.c.l.b16 %v2569
    %v2910 = vunpack.c.h.b16 %v2569
    %v2911 = vunpack.c.l.b16 %v2570
    %v2912 = vunpack.c.h.b16 %v2570
    %v2913 = vunpack.c.l.b16 %v2571
    %v2914 = vunpack.c.h.b16 %v2571
    %v2915 = vunpack.c.l.b16 %v2572
    %v2916 = vunpack.c.h.b16 %v2572
    %v2917 = vunpack.c.l.b16 %v2573
    %v2918 = vunpack.c.h.b16 %v2573
    %v2919 = vunpack.c.l.b16 %v2574
    %v2920 = vunpack.c.h.b16 %v2574
    %v2921 = vunpack.c.l.b16 %v2575
    %v2922 = vunpack.c.h.b16 %v2575
    %v2923 = vunpack.c.l.b16 %v2576
    %v2924 = vunpack.c.h.b16 %v2576
    %v2925 = vunpack.c.l.b16 %v2577
    %v2926 = vunpack.c.h.b16 %v2577
    %v2927 = vunpack.c.l.b16 %v2578
    %v2928 = vunpack.c.h.b16 %v2578
    %v2929 = vunpack.c.l.b16 %v2579
    %v2930 = vunpack.c.h.b16 %v2579
    %v2931 = vunpack.c.l.b16 %v2580
    %v2932 = vunpack.c.h.b16 %v2580
    %v2933 = vunpack.c.l.b16 %v2581
    %v2934 = vunpack.c.h.b16 %v2581
    %v2935 = vunpack.c.l.b16 %v2582
    %v2936 = vunpack.c.h.b16 %v2582
    %v2937 = vunpack.c.l.b16 %v2583
    %v2938 = vunpack.c.h.b16 %v2583
    %v2939 = vunpack.c.l.b16 %v2584
    %v2940 = vunpack.c.h.b16 %v2584
    %v2941 = vunpack.c.l.b16 %v2585
    %v2942 = vunpack.c.h.b16 %v2585
    %v2943 = vunpack.c.l.b16 %v2586
    %v2944 = vunpack.c.h.b16 %v2586
    %v2945 = vunpack.c.l.b16 %v2587
    %v2946 = vunpack.c.h.b16 %v2587
    %v2947 = vunpack.c.l.b16 %v2588
    %v2948 = vunpack.c.h.b16 %v2588
    %v2949 = vunpack.c.l.b16 %v2589
    %v2950 = vunpack.c.h.b16 %v2589
    %v2951 = vunpack.c.l.b16 %v2590
    %v2952 = vunpack.c.h.b16 %v2590
    %v2953 = vunpack.c.l.b16 %v2591
    %v2954 = vunpack.c.h.b16 %v2591
    %v2955 = vunpack.c.l.b16 %v2592
    %v2956 = vunpack.c.h.b16 %v2592
    %v2957 = vunpack.c.l.b16 %v2593
    %v2958 = vunpack.c.h.b16 %v2593
    %v2959 = vunpack.c.l.b16 %v2594
    %v2960 = vunpack.c.h.b16 %v2594
    %v2961 = vunpack.c.l.b16 %v2595
    %v2962 = vunpack.c.h.b16 %v2595
    %v2963 = vunpack.c.l.b16 %v2596
    %v2964 = vunpack.c.h.b16 %v2596
    %v2965 = vunpack.c.l.b16 %v2597
    %v2966 = vunpack.c.h.b16 %v2597
    %v2967 = vunpack.c.l.b16 %v2598
    %v2968 = vunpack.c.h.b16 %v2598
    %v2969 = vunpack.c.l.b16 %v2599
    %v2970 = vunpack.c.h.b16 %v2599
    %v2971 = vunpack.c.l.b16 %v2600
    %v2972 = vunpack.c.h.b16 %v2600
    %v2973 = vunpack.c.l.b16 %v2601
    %v2974 = vunpack.c.h.b16 %v2601
    %v2975 = vunpack.c.l.b16 %v2602
    %v2976 = vunpack.c.h.b16 %v2602
    %v2977 = vunpack.c.l.b16 %v2603
    %v2978 = vunpack.c.h.b16 %v2603
    %v2979 = vunpack.c.l.b16 %v2604
    %v2980 = vunpack.c.h.b16 %v2604
    %v2981 = vunpack.c.l.b16 %v2605
    %v2982 = vunpack.c.h.b16 %v2605
    %v2983 = vunpack.c.l.b16 %v2606
    %v2984 = vunpack.c.h.b16 %v2606
    %v2985 = vunpack.c.l.b16 %v2607
    %v2986 = vunpack.c.h.b16 %v2607
    %v2987 = vunpack.c.l.b16 %v2608
    %v2988 = vunpack.c.h.b16 %v2608
    %v2989 = vunpack.c.l.b16 %v2609
    %v2990 = vunpack.c.h.b16 %v2609
    %v2991 = vunpack.c.l.b16 %v2610
    %v2992 = vunpack.c.h.b16 %v2610
    %v2993 = vunpack.c.l.b16 %v2611
    %v2994 = vunpack.c.h.b16 %v2611
    %v2995 = vunpack.c.l.b16 %v2612
    %v2996 = vunpack.c.h.b16 %v2612
    %v2997 = vunpack.c.l.b16 %v2613
    %v2998 = vunpack.c.h.b16 %v2613
    %v2999 = vunpack.c.l.b16 %v2614
    %v3000 = vunpack.c.h.b16 %v2614
    %v3001 = vunpack.c.l.b16 %v2615
    %v3002 = vunpack.c.h.b16 %v2615
    %v3003 = vunpack.c.l.b16 %v2616
    %v3004 = vunpack.c.h.b16 %v2616
    %v3005 = vunpack.c.l.b16 %v2617
    %v3006 = vunpack.c.h.b16 %v2617
    %v3007 = vunpack.c.l.b16 %v2618
    %v3008 = vunpack.c.h.b16 %v2618
    %v3009 = vunpack.c.l.b16 %v2619
    %v3010 = vunpack.c.h.b16 %v2619
    %v3011 = vunpack.c.l.b16 %v2620
    %v3012 = vunpack.c.h.b16 %v2620
    %v3013 = vunpack.c.l.b16 %v2621
    %v3014 = vunpack.c.h.b16 %v2621
    %v3015 = vunpack.c.l.b16 %v2622
    %v3016 = vunpack.c.h.b16 %v2622
    %v3017 = vpack.c.b16 %v2765, %v2761
    %v3018 = vpack.c.b16 %v2766, %v2762
    %v3019 = vpack.c.b16 %v2767, %v2763
    %v3020 = vpack.c.b16 %v2768, %v2764
    %v3021 = vpack.c.b16 %v2773, %v2769
    %v3022 = vpack.c.b16 %v2774, %v2770
    %v3023 = vpack.c.b16 %v2775, %v2771
    %v3024 = vpack.c.b16 %v2776, %v2772
    %v3025 = vpack.c.b16 %v2781, %v2777
    %v3026 = vpack.c.b16 %v2782, %v2778
    %v3027 = vpack.c.b16 %v2783, %v2779
    %v3028 = vpack.c.b16 %v2784, %v2780
    %v3029 = vpack.c.b16 %v2789, %v2785
    %v3030 = vpack.c.b16 %v2790, %v2786
    %v3031 = vpack.c.b16 %v2791, %v2787
    %v3032 = vpack.c.b16 %v2792, %v2788
    %v3033 = vpack.c.b16 %v2797, %v2793
    %v3034 = vpack.c.b16 %v2798, %v2794
    %v3035 = vpack.c.b16 %v2799, %v2795
    %v3036 = vpack.c.b16 %v2800, %v2796
    %v3037 = vpack.c.b16 %v2805, %v2801
    %v3038 = vpack.c.b16 %v2806, %v2802
    %v3039 = vpack.c.b16 %v2807, %v2803
    %v3040 = vpack.c.b16 %v2808, %v2804
    %v3041 = vpack.c.b16 %v2813, %v2809
    %v3042 = vpack.c.b16 %v2814, %v2810
    %v3043 = vpack.c.b16 %v2815, %v2811
    %v3044 = vpack.c.b16 %v2816, %v2812
    %v3045 = vpack.c.b16 %v2821, %v2817
    %v3046 = vpack.c.b16 %v2822, %v2818
    %v3047 = vpack.c.b16 %v2823, %v2819
    %v3048 = vpack.c.b16 %v2824, %v2820
    %v3049 = vpack.c.b16 %v2829, %v2825
    %v3050 = vpack.c.b16 %v2830, %v2826
    %v3051 = vpack.c.b16 %v2831, %v2827
    %v3052 = vpack.c.b16 %v2832, %v2828
    %v3053 = vpack.c.b16 %v2837, %v2833
    %v3054 = vpack.c.b16 %v2838, %v2834
    %v3055 = vpack.c.b16 %v2839, %v2835
    %v3056 = vpack.c.b16 %v2840, %v2836
    %v3057 = vpack.c.b16 %v2845, %v2841
    %v3058 = vpack.c.b16 %v2846, %v2842
    %v3059 = vpack.c.b16 %v2847, %v2843
    %v3060 = vpack.c.b16 %v2848, %v2844
    %v3061 = vpack.c.b16 %v2853, %v2849
    %v3062 = vpack.c.b16 %v2854, %v2850
    %v3063 = vpack.c.b16 %v2855, %v2851
    %v3064 = vpack.c.b16 %v2856, %v2852
    %v3065 = vpack.c.b16 %v2861, %v2857
    %v3066 = vpack.c.b16 %v2862, %v2858
    %v3067 = vpack.c.b16 %v2863, %v2859
    %v3068 = vpack.c.b16 %v2864, %v2860
    %v3069 = vpack.c.b16 %v2869, %v2865
    %v3070 = vpack.c.b16 %v2870, %v2866
    %v3071 = vpack.c.b16 %v2871, %v2867
    %v3072 = vpack.c.b16 %v2872, %v2868
    %v3073 = vpack.c.b16 %v2877, %v2873
    %v3074 = vpack.c.b16 %v2878, %v2874
    %v3075 = vpack.c.b16 %v2879, %v2875
    %v3076 = vpack.c.b16 %v2880, %v2876
    %v3077 = vpack.c.b16 %v2885, %v2881
    %v3078 = vpack.c.b16 %v2886, %v2882
    %v3079 = vpack.c.b16 %v2887, %v2883
    %v3080 = vpack.c.b16 %v2888, %v2884
    %v3081 = vpack.c.b16 %v2893, %v2889
    %v3082 = vpack.c.b16 %v2894, %v2890
    %v3083 = vpack.c.b16 %v2895, %v2891
    %v3084 = vpack.c.b16 %v2896, %v2892
    %v3085 = vpack.c.b16 %v2901, %v2897
    %v3086 = vpack.c.b16 %v2902, %v2898
    %v3087 = vpack.c.b16 %v2903, %v2899
    %v3088 = vpack.c.b16 %v2904, %v2900
    %v3089 = vpack.c.b16 %v2909, %v2905
    %v3090 = vpack.c.b16 %v2910, %v2906
    %v3091 = vpack.c.b16 %v2911, %v2907
    %v3092 = vpack.c.b16 %v2912, %v2908
    %v3093 = vpack.c.b16 %v2917, %v2913
    %v3094 = vpack.c.b16 %v2918, %v2914
    %v3095 = vpack.c.b16 %v2919, %v2915
    %v3096 = vpack.c.b16 %v2920, %v2916
    %v3097 = vpack.c.b16 %v2925, %v2921
    %v3098 = vpack.c.b16 %v2926, %v2922
    %v3099 = vpack.c.b16 %v2927, %v2923
    %v3100 = vpack.c.b16 %v2928, %v2924
    %v3101 = vpack.c.b16 %v2933, %v2929
    %v3102 = vpack.c.b16 %v2934, %v2930
    %v3103 = vpack.c.b16 %v2935, %v2931
    %v3104 = vpack.c.b16 %v2936, %v2932
    %v3105 = vpack.c.b16 %v2941, %v2937
    %v3106 = vpack.c.b16 %v2942, %v2938
    %v3107 = vpack.c.b16 %v2943, %v2939
    %v3108 = vpack.c.b16 %v2944, %v2940
    %v3109 = vpack.c.b16 %v2949, %v2945
    %v3110 = vpack.c.b16 %v2950, %v2946
    %v3111 = vpack.c.b16 %v2951, %v2947
    %v3112 = vpack.c.b16 %v2952, %v2948
    %v3113 = vpack.c.b16 %v2957, %v2953
    %v3114 = vpack.c.b16 %v2958, %v2954
    %v3115 = vpack.c.b16 %v2959, %v2955
    %v3116 = vpack.c.b16 %v2960, %v2956
    %v3117 = vpack.c.b16 %v2965, %v2961
    %v3118 = vpack.c.b16 %v2966, %v2962
    %v3119 = vpack.c.b16 %v2967, %v2963
    %v3120 = vpack.c.b16 %v2968, %v2964
    %v3121 = vpack.c.b16 %v2973, %v2969
    %v3122 = vpack.c.b16 %v2974, %v2970
    %v3123 = vpack.c.b16 %v2975, %v2971
    %v3124 = vpack.c.b16 %v2976, %v2972
    %v3125 = vpack.c.b16 %v2981, %v2977
    %v3126 = vpack.c.b16 %v2982, %v2978
    %v3127 = vpack.c.b16 %v2983, %v2979
    %v3128 = vpack.c.b16 %v2984, %v2980
    %v3129 = vpack.c.b16 %v2989, %v2985
    %v3130 = vpack.c.b16 %v2990, %v2986
    %v3131 = vpack.c.b16 %v2991, %v2987
    %v3132 = vpack.c.b16 %v2992, %v2988
    %v3133 = vpack.c.b16 %v2997, %v2993
    %v3134 = vpack.c.b16 %v2998, %v2994
    %v3135 = vpack.c.b16 %v2999, %v2995
    %v3136 = vpack.c.b16 %v3000, %v2996
    %v3137 = vpack.c.b16 %v3005, %v3001
    %v3138 = vpack.c.b16 %v3006, %v3002
    %v3139 = vpack.c.b16 %v3007, %v3003
    %v3140 = vpack.c.b16 %v3008, %v3004
    %v3141 = vpack.c.b16 %v3013, %v3009
    %v3142 = vpack.c.b16 %v3014, %v3010
    %v3143 = vpack.c.b16 %v3015, %v3011
    %v3144 = vpack.c.b16 %v3016, %v3012
    %3273 = vmatpush.bf16.msra.mxu0 %v3045
    %3274 = vmatpush.bf16.msra.mxu0 %v3041
    %3275 = vmatpush.bf16.msra.mxu0 %v3037
    %3276 = vmatpush.bf16.msra.mxu0 %v3033
    %3277 = vmatpush.bf16.msra.mxu0 %v3029
    %3278 = vmatpush.bf16.msra.mxu0 %v3025
    %3279 = vmatpush.bf16.msra.mxu0 %v3021
    %3280 = vmatpush.bf16.msra.mxu0 %v3017
    %3281 = vmatmul.bf16.gmra.mxu0 %v2491
    %v3282 = vpop.f32.mrf.mxu0
    %v3283 = vadd.f32 %v2625, %v3282
    %v3284 = vpop.f32.mrf.mxu0
    %v3285 = vadd.f32 %v2625, %v3284
    %3286 = vdwg.mxu0
    %3287 = vmatpush.bf16.msra.mxu0 %v3077
    %3288 = vmatpush.bf16.msra.mxu0 %v3073
    %3289 = vmatpush.bf16.msra.mxu0 %v3069
    %3290 = vmatpush.bf16.msra.mxu0 %v3065
    %3291 = vmatpush.bf16.msra.mxu0 %v3061
    %3292 = vmatpush.bf16.msra.mxu0 %v3057
    %3293 = vmatpush.bf16.msra.mxu0 %v3053
    %3294 = vmatpush.bf16.msra.mxu0 %v3049
    %3295 = vmatmul.bf16.gmra.mxu0 %v2492
    %v3296 = vpop.f32.mrf.mxu0
    %v3297 = vadd.f32 %v3283, %v3296
    %v3298 = vpop.f32.mrf.mxu0
    %v3299 = vadd.f32 %v3285, %v3298
    %3300 = vdwg.mxu0
    %3301 = vmatpush.bf16.msra.mxu0 %v3109
    %3302 = vmatpush.bf16.msra.mxu0 %v3105
    %3303 = vmatpush.bf16.msra.mxu0 %v3101
    %3304 = vmatpush.bf16.msra.mxu0 %v3097
    %3305 = vmatpush.bf16.msra.mxu0 %v3093
    %3306 = vmatpush.bf16.msra.mxu0 %v3089
    %3307 = vmatpush.bf16.msra.mxu0 %v3085
    %3308 = vmatpush.bf16.msra.mxu0 %v3081
    %3309 = vmatmul.bf16.gmra.mxu0 %v2493
    %v3310 = vpop.f32.mrf.mxu0
    %v3311 = vadd.f32 %v3297, %v3310
    %v3312 = vpop.f32.mrf.mxu0
    %v3313 = vadd.f32 %v3299, %v3312
    %3314 = vdwg.mxu0
    %3315 = vmatpush.bf16.msra.mxu0 %v3141
    %3316 = vmatpush.bf16.msra.mxu0 %v3137
    %3317 = vmatpush.bf16.msra.mxu0 %v3133
    %3318 = vmatpush.bf16.msra.mxu0 %v3129
    %3319 = vmatpush.bf16.msra.mxu0 %v3125
    %3320 = vmatpush.bf16.msra.mxu0 %v3121
    %3321 = vmatpush.bf16.msra.mxu0 %v3117
    %3322 = vmatpush.bf16.msra.mxu0 %v3113
    %3323 = vmatmul.bf16.gmra.mxu0 %v2494
    %v3324 = vpop.f32.mrf.mxu0
    %v3325 = vadd.f32 %v3311, %v3324
    %v3326 = vpop.f32.mrf.mxu0
    %v3327 = vadd.f32 %v3313, %v3326
    %3328 = vdwg.mxu0
    %3329 = vmatpush.bf16.msra.mxu0 %v3046
    %3330 = vmatpush.bf16.msra.mxu0 %v3042
    %3331 = vmatpush.bf16.msra.mxu0 %v3038
    %3332 = vmatpush.bf16.msra.mxu0 %v3034
    %3333 = vmatpush.bf16.msra.mxu0 %v3030
    %3334 = vmatpush.bf16.msra.mxu0 %v3026
    %3335 = vmatpush.bf16.msra.mxu0 %v3022
    %3336 = vmatpush.bf16.msra.mxu0 %v3018
    %3337 = vmatmul.bf16.gmra.mxu0 %v2491
    %v3338 = vpop.f32.mrf.mxu0
    %v3339 = vadd.f32 %v2626, %v3338
    %v3340 = vpop.f32.mrf.mxu0
    %v3341 = vadd.f32 %v2626, %v3340
    %3342 = vdwg.mxu0
    %3343 = vmatpush.bf16.msra.mxu0 %v3078
    %3344 = vmatpush.bf16.msra.mxu0 %v3074
    %3345 = vmatpush.bf16.msra.mxu0 %v3070
    %3346 = vmatpush.bf16.msra.mxu0 %v3066
    %3347 = vmatpush.bf16.msra.mxu0 %v3062
    %3348 = vmatpush.bf16.msra.mxu0 %v3058
    %3349 = vmatpush.bf16.msra.mxu0 %v3054
    %3350 = vmatpush.bf16.msra.mxu0 %v3050
    %3351 = vmatmul.bf16.gmra.mxu0 %v2492
    %v3352 = vpop.f32.mrf.mxu0
    %v3353 = vadd.f32 %v3339, %v3352
    %v3354 = vpop.f32.mrf.mxu0
    %v3355 = vadd.f32 %v3341, %v3354
    %3356 = vdwg.mxu0
    %3357 = vmatpush.bf16.msra.mxu0 %v3110
    %3358 = vmatpush.bf16.msra.mxu0 %v3106
    %3359 = vmatpush.bf16.msra.mxu0 %v3102
    %3360 = vmatpush.bf16.msra.mxu0 %v3098
    %3361 = vmatpush.bf16.msra.mxu0 %v3094
    %3362 = vmatpush.bf16.msra.mxu0 %v3090
    %3363 = vmatpush.bf16.msra.mxu0 %v3086
    %3364 = vmatpush.bf16.msra.mxu0 %v3082
    %3365 = vmatmul.bf16.gmra.mxu0 %v2493
    %v3366 = vpop.f32.mrf.mxu0
    %v3367 = vadd.f32 %v3353, %v3366
    %v3368 = vpop.f32.mrf.mxu0
    %v3369 = vadd.f32 %v3355, %v3368
    %3370 = vdwg.mxu0
    %3371 = vmatpush.bf16.msra.mxu0 %v3142
    %3372 = vmatpush.bf16.msra.mxu0 %v3138
    %3373 = vmatpush.bf16.msra.mxu0 %v3134
    %3374 = vmatpush.bf16.msra.mxu0 %v3130
    %3375 = vmatpush.bf16.msra.mxu0 %v3126
    %3376 = vmatpush.bf16.msra.mxu0 %v3122
    %3377 = vmatpush.bf16.msra.mxu0 %v3118
    %3378 = vmatpush.bf16.msra.mxu0 %v3114
    %3379 = vmatmul.bf16.gmra.mxu0 %v2494
    %v3380 = vpop.f32.mrf.mxu0
    %v3381 = vadd.f32 %v3367, %v3380
    %v3382 = vpop.f32.mrf.mxu0
    %v3383 = vadd.f32 %v3369, %v3382
    %3384 = vdwg.mxu0
    %3385 = vmatpush.bf16.msra.mxu0 %v3047
    %3386 = vmatpush.bf16.msra.mxu0 %v3043
    %3387 = vmatpush.bf16.msra.mxu0 %v3039
    %3388 = vmatpush.bf16.msra.mxu0 %v3035
    %3389 = vmatpush.bf16.msra.mxu0 %v3031
    %3390 = vmatpush.bf16.msra.mxu0 %v3027
    %3391 = vmatpush.bf16.msra.mxu0 %v3023
    %3392 = vmatpush.bf16.msra.mxu0 %v3019
    %3393 = vmatmul.bf16.gmra.mxu0 %v2491
    %v3394 = vpop.f32.mrf.mxu0
    %v3395 = vadd.f32 %v2627, %v3394
    %v3396 = vpop.f32.mrf.mxu0
    %v3397 = vadd.f32 %v2627, %v3396
    %3398 = vdwg.mxu0
    %3399 = vmatpush.bf16.msra.mxu0 %v3079
    %3400 = vmatpush.bf16.msra.mxu0 %v3075
    %3401 = vmatpush.bf16.msra.mxu0 %v3071
    %3402 = vmatpush.bf16.msra.mxu0 %v3067
    %3403 = vmatpush.bf16.msra.mxu0 %v3063
    %3404 = vmatpush.bf16.msra.mxu0 %v3059
    %3405 = vmatpush.bf16.msra.mxu0 %v3055
    %3406 = vmatpush.bf16.msra.mxu0 %v3051
    %3407 = vmatmul.bf16.gmra.mxu0 %v2492
    %v3408 = vpop.f32.mrf.mxu0
    %v3409 = vadd.f32 %v3395, %v3408
    %v3410 = vpop.f32.mrf.mxu0
    %v3411 = vadd.f32 %v3397, %v3410
    %3412 = vdwg.mxu0
    %3413 = vmatpush.bf16.msra.mxu0 %v3111
    %3414 = vmatpush.bf16.msra.mxu0 %v3107
    %3415 = vmatpush.bf16.msra.mxu0 %v3103
    %3416 = vmatpush.bf16.msra.mxu0 %v3099
    %3417 = vmatpush.bf16.msra.mxu0 %v3095
    %3418 = vmatpush.bf16.msra.mxu0 %v3091
    %3419 = vmatpush.bf16.msra.mxu0 %v3087
    %3420 = vmatpush.bf16.msra.mxu0 %v3083
    %3421 = vmatmul.bf16.gmra.mxu0 %v2493
    %v3422 = vpop.f32.mrf.mxu0
    %v3423 = vadd.f32 %v3409, %v3422
    %v3424 = vpop.f32.mrf.mxu0
    %v3425 = vadd.f32 %v3411, %v3424
    %3426 = vdwg.mxu0
    %3427 = vmatpush.bf16.msra.mxu0 %v3143
    %3428 = vmatpush.bf16.msra.mxu0 %v3139
    %3429 = vmatpush.bf16.msra.mxu0 %v3135
    %3430 = vmatpush.bf16.msra.mxu0 %v3131
    %3431 = vmatpush.bf16.msra.mxu0 %v3127
    %3432 = vmatpush.bf16.msra.mxu0 %v3123
    %3433 = vmatpush.bf16.msra.mxu0 %v3119
    %3434 = vmatpush.bf16.msra.mxu0 %v3115
    %3435 = vmatmul.bf16.gmra.mxu0 %v2494
    %v3436 = vpop.f32.mrf.mxu0
    %v3437 = vadd.f32 %v3423, %v3436
    %v3438 = vpop.f32.mrf.mxu0
    %v3439 = vadd.f32 %v3425, %v3438
    %3440 = vdwg.mxu0
    %3441 = vmatpush.bf16.msra.mxu0 %v3048
    %3442 = vmatpush.bf16.msra.mxu0 %v3044
    %3443 = vmatpush.bf16.msra.mxu0 %v3040
    %3444 = vmatpush.bf16.msra.mxu0 %v3036
    %3445 = vmatpush.bf16.msra.mxu0 %v3032
    %3446 = vmatpush.bf16.msra.mxu0 %v3028
    %3447 = vmatpush.bf16.msra.mxu0 %v3024
    %3448 = vmatpush.bf16.msra.mxu0 %v3020
    %3449 = vmatmul.bf16.gmra.mxu0 %v2491
    %v3450 = vpop.f32.mrf.mxu0
    %v3451 = vadd.f32 %v2628, %v3450
    %v3452 = vpop.f32.mrf.mxu0
    %v3453 = vadd.f32 %v2628, %v3452
    %3454 = vdwg.mxu0
    %3455 = vmatpush.bf16.msra.mxu0 %v3080
    %3456 = vmatpush.bf16.msra.mxu0 %v3076
    %3457 = vmatpush.bf16.msra.mxu0 %v3072
    %3458 = vmatpush.bf16.msra.mxu0 %v3068
    %3459 = vmatpush.bf16.msra.mxu0 %v3064
    %3460 = vmatpush.bf16.msra.mxu0 %v3060
    %3461 = vmatpush.bf16.msra.mxu0 %v3056
    %3462 = vmatpush.bf16.msra.mxu0 %v3052
    %3463 = vmatmul.bf16.gmra.mxu0 %v2492
    %v3464 = vpop.f32.mrf.mxu0
    %v3465 = vadd.f32 %v3451, %v3464
    %v3466 = vpop.f32.mrf.mxu0
    %v3467 = vadd.f32 %v3453, %v3466
    %3468 = vdwg.mxu0
    %3469 = vmatpush.bf16.msra.mxu0 %v3112
    %3470 = vmatpush.bf16.msra.mxu0 %v3108
    %3471 = vmatpush.bf16.msra.mxu0 %v3104
    %3472 = vmatpush.bf16.msra.mxu0 %v3100
    %3473 = vmatpush.bf16.msra.mxu0 %v3096
    %3474 = vmatpush.bf16.msra.mxu0 %v3092
    %3475 = vmatpush.bf16.msra.mxu0 %v3088
    %3476 = vmatpush.bf16.msra.mxu0 %v3084
    %3477 = vmatmul.bf16.gmra.mxu0 %v2493
    %v3478 = vpop.f32.mrf.mxu0
    %v3479 = vadd.f32 %v3465, %v3478
    %v3480 = vpop.f32.mrf.mxu0
    %v3481 = vadd.f32 %v3467, %v3480
    %3482 = vdwg.mxu0
    %3483 = vmatpush.bf16.msra.mxu0 %v3144
    %3484 = vmatpush.bf16.msra.mxu0 %v3140
    %3485 = vmatpush.bf16.msra.mxu0 %v3136
    %3486 = vmatpush.bf16.msra.mxu0 %v3132
    %3487 = vmatpush.bf16.msra.mxu0 %v3128
    %3488 = vmatpush.bf16.msra.mxu0 %v3124
    %3489 = vmatpush.bf16.msra.mxu0 %v3120
    %3490 = vmatpush.bf16.msra.mxu0 %v3116
    %3491 = vmatmul.bf16.gmra.mxu0 %v2494
    %v3492 = vpop.f32.mrf.mxu0
    %v3493 = vadd.f32 %v3479, %v3492
    %v3494 = vpop.f32.mrf.mxu0
    %v3495 = vadd.f32 %v3481, %v3494
    %3496 = vdwg.mxu0
    %v3497 = vtanh.pop %v3325
    %v3498 = vtanh.pop %v3381
    %v3499 = vtanh.pop %v3437
    %v3500 = vtanh.pop %v3493
    %v3501 = vtanh.pop %v3327
    %v3502 = vtanh.pop %v3383
    %v3503 = vtanh.pop %v3439
    %v3504 = vtanh.pop %v3495
    %v3505 = vpack.c.bf16 %v2487, %v2483
    %v3506 = vpack.c.bf16 %v2488, %v2484
    %v3507 = vpack.c.bf16 %v2489, %v2485
    %v3508 = vpack.c.bf16 %v2490, %v2486
    %v3509 = vld [vmem:[#allocation13] sm:$0xf]
    %v3510 = vld [vmem:[#allocation13 + $0x4] sm:$0xf]
    %v3511 = vld [vmem:[#allocation13 + $0x8] sm:$0xf]
    %v3512 = vld [vmem:[#allocation13 + $0xc] sm:$0xf]
    %v3513 = vld [vmem:[#allocation13 + $0x10] sm:$0xf]
    %v3514 = vld [vmem:[#allocation13 + $0x14] sm:$0xf]
    %v3515 = vld [vmem:[#allocation13 + $0x18] sm:$0xf]
    %v3516 = vld [vmem:[#allocation13 + $0x1c] sm:$0xf]
    %v3517 = vld [vmem:[#allocation13 + $0x20] sm:$0xf]
    %v3518 = vld [vmem:[#allocation13 + $0x24] sm:$0xf]
    %v3519 = vld [vmem:[#allocation13 + $0x28] sm:$0xf]
    %v3520 = vld [vmem:[#allocation13 + $0x2c] sm:$0xf]
    %v3521 = vld [vmem:[#allocation13 + $0x30] sm:$0xf]
    %v3522 = vld [vmem:[#allocation13 + $0x34] sm:$0xf]
    %v3523 = vld [vmem:[#allocation13 + $0x38] sm:$0xf]
    %v3524 = vld [vmem:[#allocation13 + $0x3c] sm:$0xf]
    %v3525 = vld [vmem:[#allocation13 + $0x40] sm:$0xf]
    %v3526 = vld [vmem:[#allocation13 + $0x44] sm:$0xf]
    %v3527 = vld [vmem:[#allocation13 + $0x48] sm:$0xf]
    %v3528 = vld [vmem:[#allocation13 + $0x4c] sm:$0xf]
    %v3529 = vld [vmem:[#allocation13 + $0x50] sm:$0xf]
    %v3530 = vld [vmem:[#allocation13 + $0x54] sm:$0xf]
    %v3531 = vld [vmem:[#allocation13 + $0x58] sm:$0xf]
    %v3532 = vld [vmem:[#allocation13 + $0x5c] sm:$0xf]
    %v3533 = vld [vmem:[#allocation13 + $0x60] sm:$0xf]
    %v3534 = vld [vmem:[#allocation13 + $0x64] sm:$0xf]
    %v3535 = vld [vmem:[#allocation13 + $0x68] sm:$0xf]
    %v3536 = vld [vmem:[#allocation13 + $0x6c] sm:$0xf]
    %v3537 = vld [vmem:[#allocation13 + $0x70] sm:$0xf]
    %v3538 = vld [vmem:[#allocation13 + $0x74] sm:$0xf]
    %v3539 = vld [vmem:[#allocation13 + $0x78] sm:$0xf]
    %v3540 = vld [vmem:[#allocation13 + $0x7c] sm:$0xf]
    %v3541 = vld [vmem:[#allocation13 + $0x80] sm:$0xf]
    %v3542 = vld [vmem:[#allocation13 + $0x84] sm:$0xf]
    %v3543 = vld [vmem:[#allocation13 + $0x88] sm:$0xf]
    %v3544 = vld [vmem:[#allocation13 + $0x8c] sm:$0xf]
    %v3545 = vld [vmem:[#allocation13 + $0x90] sm:$0xf]
    %v3546 = vld [vmem:[#allocation13 + $0x94] sm:$0xf]
    %v3547 = vld [vmem:[#allocation13 + $0x98] sm:$0xf]
    %v3548 = vld [vmem:[#allocation13 + $0x9c] sm:$0xf]
    %v3549 = vld [vmem:[#allocation13 + $0xa0] sm:$0xf]
    %v3550 = vld [vmem:[#allocation13 + $0xa4] sm:$0xf]
    %v3551 = vld [vmem:[#allocation13 + $0xa8] sm:$0xf]
    %v3552 = vld [vmem:[#allocation13 + $0xac] sm:$0xf]
    %v3553 = vld [vmem:[#allocation13 + $0xb0] sm:$0xf]
    %v3554 = vld [vmem:[#allocation13 + $0xb4] sm:$0xf]
    %v3555 = vld [vmem:[#allocation13 + $0xb8] sm:$0xf]
    %v3556 = vld [vmem:[#allocation13 + $0xbc] sm:$0xf]
    %v3557 = vld [vmem:[#allocation13 + $0xc0] sm:$0xf]
    %v3558 = vld [vmem:[#allocation13 + $0xc4] sm:$0xf]
    %v3559 = vld [vmem:[#allocation13 + $0xc8] sm:$0xf]
    %v3560 = vld [vmem:[#allocation13 + $0xcc] sm:$0xf]
    %v3561 = vld [vmem:[#allocation13 + $0xd0] sm:$0xf]
    %v3562 = vld [vmem:[#allocation13 + $0xd4] sm:$0xf]
    %v3563 = vld [vmem:[#allocation13 + $0xd8] sm:$0xf]
    %v3564 = vld [vmem:[#allocation13 + $0xdc] sm:$0xf]
    %v3565 = vld [vmem:[#allocation13 + $0xe0] sm:$0xf]
    %v3566 = vld [vmem:[#allocation13 + $0xe4] sm:$0xf]
    %v3567 = vld [vmem:[#allocation13 + $0xe8] sm:$0xf]
    %v3568 = vld [vmem:[#allocation13 + $0xec] sm:$0xf]
    %v3569 = vld [vmem:[#allocation13 + $0xf0] sm:$0xf]
    %v3570 = vld [vmem:[#allocation13 + $0xf4] sm:$0xf]
    %v3571 = vld [vmem:[#allocation13 + $0xf8] sm:$0xf]
    %v3572 = vld [vmem:[#allocation13 + $0xfc] sm:$0xf]
    %v3573 = vpack.c.bf16 %v3501, %v3497
    %v3574 = vpack.c.bf16 %v3502, %v3498
    %v3575 = vpack.c.bf16 %v3503, %v3499
    %v3576 = vpack.c.bf16 %v3504, %v3500
    %v3577 = vld [vmem:[#allocation14] sm:$0xf]
    %v3578 = vld [vmem:[#allocation14 + $0x4] sm:$0xf]
    %v3579 = vld [vmem:[#allocation14 + $0x8] sm:$0xf]
    %v3580 = vld [vmem:[#allocation14 + $0xc] sm:$0xf]
    %v3581 = vld [vmem:[#allocation14 + $0x10] sm:$0xf]
    %v3582 = vld [vmem:[#allocation14 + $0x14] sm:$0xf]
    %v3583 = vld [vmem:[#allocation14 + $0x18] sm:$0xf]
    %v3584 = vld [vmem:[#allocation14 + $0x1c] sm:$0xf]
    %v3585 = vld [vmem:[#allocation14 + $0x20] sm:$0xf]
    %v3586 = vld [vmem:[#allocation14 + $0x24] sm:$0xf]
    %v3587 = vld [vmem:[#allocation14 + $0x28] sm:$0xf]
    %v3588 = vld [vmem:[#allocation14 + $0x2c] sm:$0xf]
    %v3589 = vld [vmem:[#allocation14 + $0x30] sm:$0xf]
    %v3590 = vld [vmem:[#allocation14 + $0x34] sm:$0xf]
    %v3591 = vld [vmem:[#allocation14 + $0x38] sm:$0xf]
    %v3592 = vld [vmem:[#allocation14 + $0x3c] sm:$0xf]
    %v3593 = vld [vmem:[#allocation14 + $0x40] sm:$0xf]
    %v3594 = vld [vmem:[#allocation14 + $0x44] sm:$0xf]
    %v3595 = vld [vmem:[#allocation14 + $0x48] sm:$0xf]
    %v3596 = vld [vmem:[#allocation14 + $0x4c] sm:$0xf]
    %v3597 = vld [vmem:[#allocation14 + $0x50] sm:$0xf]
    %v3598 = vld [vmem:[#allocation14 + $0x54] sm:$0xf]
    %v3599 = vld [vmem:[#allocation14 + $0x58] sm:$0xf]
    %v3600 = vld [vmem:[#allocation14 + $0x5c] sm:$0xf]
    %v3601 = vld [vmem:[#allocation14 + $0x60] sm:$0xf]
    %v3602 = vld [vmem:[#allocation14 + $0x64] sm:$0xf]
    %v3603 = vld [vmem:[#allocation14 + $0x68] sm:$0xf]
    %v3604 = vld [vmem:[#allocation14 + $0x6c] sm:$0xf]
    %v3605 = vld [vmem:[#allocation14 + $0x70] sm:$0xf]
    %v3606 = vld [vmem:[#allocation14 + $0x74] sm:$0xf]
    %v3607 = vld [vmem:[#allocation14 + $0x78] sm:$0xf]
    %v3608 = vld [vmem:[#allocation14 + $0x7c] sm:$0xf]
    %v3609 = vld [vmem:[#allocation14 + $0x80] sm:$0xf]
    %v3610 = vld [vmem:[#allocation14 + $0x84] sm:$0xf]
    %v3611 = vld [vmem:[#allocation14 + $0x88] sm:$0xf]
    %v3612 = vld [vmem:[#allocation14 + $0x8c] sm:$0xf]
    %v3613 = vld [vmem:[#allocation14 + $0x90] sm:$0xf]
    %v3614 = vld [vmem:[#allocation14 + $0x94] sm:$0xf]
    %v3615 = vld [vmem:[#allocation14 + $0x98] sm:$0xf]
    %v3616 = vld [vmem:[#allocation14 + $0x9c] sm:$0xf]
    %v3617 = vld [vmem:[#allocation14 + $0xa0] sm:$0xf]
    %v3618 = vld [vmem:[#allocation14 + $0xa4] sm:$0xf]
    %v3619 = vld [vmem:[#allocation14 + $0xa8] sm:$0xf]
    %v3620 = vld [vmem:[#allocation14 + $0xac] sm:$0xf]
    %v3621 = vld [vmem:[#allocation14 + $0xb0] sm:$0xf]
    %v3622 = vld [vmem:[#allocation14 + $0xb4] sm:$0xf]
    %v3623 = vld [vmem:[#allocation14 + $0xb8] sm:$0xf]
    %v3624 = vld [vmem:[#allocation14 + $0xbc] sm:$0xf]
    %v3625 = vld [vmem:[#allocation14 + $0xc0] sm:$0xf]
    %v3626 = vld [vmem:[#allocation14 + $0xc4] sm:$0xf]
    %v3627 = vld [vmem:[#allocation14 + $0xc8] sm:$0xf]
    %v3628 = vld [vmem:[#allocation14 + $0xcc] sm:$0xf]
    %v3629 = vld [vmem:[#allocation14 + $0xd0] sm:$0xf]
    %v3630 = vld [vmem:[#allocation14 + $0xd4] sm:$0xf]
    %v3631 = vld [vmem:[#allocation14 + $0xd8] sm:$0xf]
    %v3632 = vld [vmem:[#allocation14 + $0xdc] sm:$0xf]
    %v3633 = vld [vmem:[#allocation14 + $0xe0] sm:$0xf]
    %v3634 = vld [vmem:[#allocation14 + $0xe4] sm:$0xf]
    %v3635 = vld [vmem:[#allocation14 + $0xe8] sm:$0xf]
    %v3636 = vld [vmem:[#allocation14 + $0xec] sm:$0xf]
    %v3637 = vld [vmem:[#allocation14 + $0xf0] sm:$0xf]
    %v3638 = vld [vmem:[#allocation14 + $0xf4] sm:$0xf]
    %v3639 = vld [vmem:[#allocation14 + $0xf8] sm:$0xf]
    %v3640 = vld [vmem:[#allocation14 + $0xfc] sm:$0xf]
    %v3705 = vunpack.c.l.b16 %v3577
    %v3706 = vunpack.c.l.b16 %v3578
    %v3707 = vunpack.c.l.b16 %v3579
    %v3708 = vunpack.c.l.b16 %v3580
    %v3709 = vunpack.c.l.b16 %v3581
    %v3710 = vunpack.c.l.b16 %v3582
    %v3711 = vunpack.c.l.b16 %v3583
    %v3712 = vunpack.c.l.b16 %v3584
    %v3713 = vunpack.c.l.b16 %v3585
    %v3714 = vunpack.c.l.b16 %v3586
    %v3715 = vunpack.c.l.b16 %v3587
    %v3716 = vunpack.c.l.b16 %v3588
    %v3717 = vunpack.c.l.b16 %v3589
    %v3718 = vunpack.c.l.b16 %v3590
    %v3719 = vunpack.c.l.b16 %v3591
    %v3720 = vunpack.c.l.b16 %v3592
    %v3721 = vunpack.c.l.b16 %v3593
    %v3722 = vunpack.c.l.b16 %v3594
    %v3723 = vunpack.c.l.b16 %v3595
    %v3724 = vunpack.c.l.b16 %v3596
    %v3725 = vunpack.c.l.b16 %v3597
    %v3726 = vunpack.c.l.b16 %v3598
    %v3727 = vunpack.c.l.b16 %v3599
    %v3728 = vunpack.c.l.b16 %v3600
    %v3729 = vunpack.c.l.b16 %v3601
    %v3730 = vunpack.c.l.b16 %v3602
    %v3731 = vunpack.c.l.b16 %v3603
    %v3732 = vunpack.c.l.b16 %v3604
    %v3733 = vunpack.c.l.b16 %v3605
    %v3734 = vunpack.c.l.b16 %v3606
    %v3735 = vunpack.c.l.b16 %v3607
    %v3736 = vunpack.c.l.b16 %v3608
    %v3737 = vunpack.c.l.b16 %v3609
    %v3738 = vunpack.c.l.b16 %v3610
    %v3739 = vunpack.c.l.b16 %v3611
    %v3740 = vunpack.c.l.b16 %v3612
    %v3741 = vunpack.c.l.b16 %v3613
    %v3742 = vunpack.c.l.b16 %v3614
    %v3743 = vunpack.c.l.b16 %v3615
    %v3744 = vunpack.c.l.b16 %v3616
    %v3745 = vunpack.c.l.b16 %v3617
    %v3746 = vunpack.c.l.b16 %v3618
    %v3747 = vunpack.c.l.b16 %v3619
    %v3748 = vunpack.c.l.b16 %v3620
    %v3749 = vunpack.c.l.b16 %v3621
    %v3750 = vunpack.c.l.b16 %v3622
    %v3751 = vunpack.c.l.b16 %v3623
    %v3752 = vunpack.c.l.b16 %v3624
    %v3753 = vunpack.c.l.b16 %v3625
    %v3754 = vunpack.c.l.b16 %v3626
    %v3755 = vunpack.c.l.b16 %v3627
    %v3756 = vunpack.c.l.b16 %v3628
    %v3757 = vunpack.c.l.b16 %v3629
    %v3758 = vunpack.c.l.b16 %v3630
    %v3759 = vunpack.c.l.b16 %v3631
    %v3760 = vunpack.c.l.b16 %v3632
    %v3761 = vunpack.c.l.b16 %v3633
    %v3762 = vunpack.c.l.b16 %v3634
    %v3763 = vunpack.c.l.b16 %v3635
    %v3764 = vunpack.c.l.b16 %v3636
    %v3765 = vunpack.c.l.b16 %v3637
    %v3766 = vunpack.c.l.b16 %v3638
    %v3767 = vunpack.c.l.b16 %v3639
    %v3768 = vunpack.c.l.b16 %v3640
    %v3769 = vpack.c.b16 %v3706, %v3705
    %v3770 = vpack.c.b16 %v3708, %v3707
    %v3771 = vpack.c.b16 %v3710, %v3709
    %v3772 = vpack.c.b16 %v3712, %v3711
    %v3773 = vpack.c.b16 %v3714, %v3713
    %v3774 = vpack.c.b16 %v3716, %v3715
    %v3775 = vpack.c.b16 %v3718, %v3717
    %v3776 = vpack.c.b16 %v3720, %v3719
    %v3777 = vpack.c.b16 %v3722, %v3721
    %v3778 = vpack.c.b16 %v3724, %v3723
    %v3779 = vpack.c.b16 %v3726, %v3725
    %v3780 = vpack.c.b16 %v3728, %v3727
    %v3781 = vpack.c.b16 %v3730, %v3729
    %v3782 = vpack.c.b16 %v3732, %v3731
    %v3783 = vpack.c.b16 %v3734, %v3733
    %v3784 = vpack.c.b16 %v3736, %v3735
    %v3785 = vpack.c.b16 %v3738, %v3737
    %v3786 = vpack.c.b16 %v3740, %v3739
    %v3787 = vpack.c.b16 %v3742, %v3741
    %v3788 = vpack.c.b16 %v3744, %v3743
    %v3789 = vpack.c.b16 %v3746, %v3745
    %v3790 = vpack.c.b16 %v3748, %v3747
    %v3791 = vpack.c.b16 %v3750, %v3749
    %v3792 = vpack.c.b16 %v3752, %v3751
    %v3793 = vpack.c.b16 %v3754, %v3753
    %v3794 = vpack.c.b16 %v3756, %v3755
    %v3795 = vpack.c.b16 %v3758, %v3757
    %v3796 = vpack.c.b16 %v3760, %v3759
    %v3797 = vpack.c.b16 %v3762, %v3761
    %v3798 = vpack.c.b16 %v3764, %v3763
    %v3799 = vpack.c.b16 %v3766, %v3765
    %v3800 = vpack.c.b16 %v3768, %v3767
    %3833 = vmatpush.bf16.msra.mxu0 %v3776
    %3834 = vmatpush.bf16.msra.mxu0 %v3775
    %3835 = vmatpush.bf16.msra.mxu0 %v3774
    %3836 = vmatpush.bf16.msra.mxu0 %v3773
    %3837 = vmatpush.bf16.msra.mxu0 %v3772
    %3838 = vmatpush.bf16.msra.mxu0 %v3771
    %3839 = vmatpush.bf16.msra.mxu0 %v3770
    %3840 = vmatpush.bf16.msra.mxu0 %v3769
    %3841 = vmatmul.bf16.gmra.mxu0 %v3573
    %v3842 = vpop.f32.mrf.mxu0
    %v3843 = vadd.f32 0.0, %v3842
    %v3844 = vpop.f32.mrf.mxu0
    %v3845 = vadd.f32 0.0, %v3844
    %3846 = vdwg.mxu0
    %3847 = vmatpush.bf16.msra.mxu0 %v3784
    %3848 = vmatpush.bf16.msra.mxu0 %v3783
    %3849 = vmatpush.bf16.msra.mxu0 %v3782
    %3850 = vmatpush.bf16.msra.mxu0 %v3781
    %3851 = vmatpush.bf16.msra.mxu0 %v3780
    %3852 = vmatpush.bf16.msra.mxu0 %v3779
    %3853 = vmatpush.bf16.msra.mxu0 %v3778
    %3854 = vmatpush.bf16.msra.mxu0 %v3777
    %3855 = vmatmul.bf16.gmra.mxu0 %v3574
    %v3856 = vpop.f32.mrf.mxu0
    %v3857 = vadd.f32 %v3843, %v3856
    %v3858 = vpop.f32.mrf.mxu0
    %v3859 = vadd.f32 %v3845, %v3858
    %3860 = vdwg.mxu0
    %3861 = vmatpush.bf16.msra.mxu0 %v3792
    %3862 = vmatpush.bf16.msra.mxu0 %v3791
    %3863 = vmatpush.bf16.msra.mxu0 %v3790
    %3864 = vmatpush.bf16.msra.mxu0 %v3789
    %3865 = vmatpush.bf16.msra.mxu0 %v3788
    %3866 = vmatpush.bf16.msra.mxu0 %v3787
    %3867 = vmatpush.bf16.msra.mxu0 %v3786
    %3868 = vmatpush.bf16.msra.mxu0 %v3785
    %3869 = vmatmul.bf16.gmra.mxu0 %v3575
    %v3870 = vpop.f32.mrf.mxu0
    %v3871 = vadd.f32 %v3857, %v3870
    %v3872 = vpop.f32.mrf.mxu0
    %v3873 = vadd.f32 %v3859, %v3872
    %3874 = vdwg.mxu0
    %3875 = vmatpush.bf16.msra.mxu0 %v3800
    %3876 = vmatpush.bf16.msra.mxu0 %v3799
    %3877 = vmatpush.bf16.msra.mxu0 %v3798
    %3878 = vmatpush.bf16.msra.mxu0 %v3797
    %3879 = vmatpush.bf16.msra.mxu0 %v3796
    %3880 = vmatpush.bf16.msra.mxu0 %v3795
    %3881 = vmatpush.bf16.msra.mxu0 %v3794
    %3882 = vmatpush.bf16.msra.mxu0 %v3793
    %3883 = vmatmul.bf16.gmra.mxu0 %v3576
    %v3884 = vpop.f32.mrf.mxu0
    %v3885 = vadd.f32 %v3871, %v3884
    %v3886 = vpop.f32.mrf.mxu0
    %v3887 = vadd.f32 %v3873, %v3886
    %3888 = vdwg.mxu0
    %v3953 = vunpack.c.l.b16 %v3509
    %v3954 = vunpack.c.l.b16 %v3510
    %v3955 = vunpack.c.l.b16 %v3511
    %v3956 = vunpack.c.l.b16 %v3512
    %v3957 = vunpack.c.l.b16 %v3513
    %v3958 = vunpack.c.l.b16 %v3514
    %v3959 = vunpack.c.l.b16 %v3515
    %v3960 = vunpack.c.l.b16 %v3516
    %v3961 = vunpack.c.l.b16 %v3517
    %v3962 = vunpack.c.l.b16 %v3518
    %v3963 = vunpack.c.l.b16 %v3519
    %v3964 = vunpack.c.l.b16 %v3520
    %v3965 = vunpack.c.l.b16 %v3521
    %v3966 = vunpack.c.l.b16 %v3522
    %v3967 = vunpack.c.l.b16 %v3523
    %v3968 = vunpack.c.l.b16 %v3524
    %v3969 = vunpack.c.l.b16 %v3525
    %v3970 = vunpack.c.l.b16 %v3526
    %v3971 = vunpack.c.l.b16 %v3527
    %v3972 = vunpack.c.l.b16 %v3528
    %v3973 = vunpack.c.l.b16 %v3529
    %v3974 = vunpack.c.l.b16 %v3530
    %v3975 = vunpack.c.l.b16 %v3531
    %v3976 = vunpack.c.l.b16 %v3532
    %v3977 = vunpack.c.l.b16 %v3533
    %v3978 = vunpack.c.l.b16 %v3534
    %v3979 = vunpack.c.l.b16 %v3535
    %v3980 = vunpack.c.l.b16 %v3536
    %v3981 = vunpack.c.l.b16 %v3537
    %v3982 = vunpack.c.l.b16 %v3538
    %v3983 = vunpack.c.l.b16 %v3539
    %v3984 = vunpack.c.l.b16 %v3540
    %v3985 = vunpack.c.l.b16 %v3541
    %v3986 = vunpack.c.l.b16 %v3542
    %v3987 = vunpack.c.l.b16 %v3543
    %v3988 = vunpack.c.l.b16 %v3544
    %v3989 = vunpack.c.l.b16 %v3545
    %v3990 = vunpack.c.l.b16 %v3546
    %v3991 = vunpack.c.l.b16 %v3547
    %v3992 = vunpack.c.l.b16 %v3548
    %v3993 = vunpack.c.l.b16 %v3549
    %v3994 = vunpack.c.l.b16 %v3550
    %v3995 = vunpack.c.l.b16 %v3551
    %v3996 = vunpack.c.l.b16 %v3552
    %v3997 = vunpack.c.l.b16 %v3553
    %v3998 = vunpack.c.l.b16 %v3554
    %v3999 = vunpack.c.l.b16 %v3555
    %v4000 = vunpack.c.l.b16 %v3556
    %v4001 = vunpack.c.l.b16 %v3557
    %v4002 = vunpack.c.l.b16 %v3558
    %v4003 = vunpack.c.l.b16 %v3559
    %v4004 = vunpack.c.l.b16 %v3560
    %v4005 = vunpack.c.l.b16 %v3561
    %v4006 = vunpack.c.l.b16 %v3562
    %v4007 = vunpack.c.l.b16 %v3563
    %v4008 = vunpack.c.l.b16 %v3564
    %v4009 = vunpack.c.l.b16 %v3565
    %v4010 = vunpack.c.l.b16 %v3566
    %v4011 = vunpack.c.l.b16 %v3567
    %v4012 = vunpack.c.l.b16 %v3568
    %v4013 = vunpack.c.l.b16 %v3569
    %v4014 = vunpack.c.l.b16 %v3570
    %v4015 = vunpack.c.l.b16 %v3571
    %v4016 = vunpack.c.l.b16 %v3572
    %v4017 = vpack.c.b16 %v3954, %v3953
    %v4018 = vpack.c.b16 %v3956, %v3955
    %v4019 = vpack.c.b16 %v3958, %v3957
    %v4020 = vpack.c.b16 %v3960, %v3959
    %v4021 = vpack.c.b16 %v3962, %v3961
    %v4022 = vpack.c.b16 %v3964, %v3963
    %v4023 = vpack.c.b16 %v3966, %v3965
    %v4024 = vpack.c.b16 %v3968, %v3967
    %v4025 = vpack.c.b16 %v3970, %v3969
    %v4026 = vpack.c.b16 %v3972, %v3971
    %v4027 = vpack.c.b16 %v3974, %v3973
    %v4028 = vpack.c.b16 %v3976, %v3975
    %v4029 = vpack.c.b16 %v3978, %v3977
    %v4030 = vpack.c.b16 %v3980, %v3979
    %v4031 = vpack.c.b16 %v3982, %v3981
    %v4032 = vpack.c.b16 %v3984, %v3983
    %v4033 = vpack.c.b16 %v3986, %v3985
    %v4034 = vpack.c.b16 %v3988, %v3987
    %v4035 = vpack.c.b16 %v3990, %v3989
    %v4036 = vpack.c.b16 %v3992, %v3991
    %v4037 = vpack.c.b16 %v3994, %v3993
    %v4038 = vpack.c.b16 %v3996, %v3995
    %v4039 = vpack.c.b16 %v3998, %v3997
    %v4040 = vpack.c.b16 %v4000, %v3999
    %v4041 = vpack.c.b16 %v4002, %v4001
    %v4042 = vpack.c.b16 %v4004, %v4003
    %v4043 = vpack.c.b16 %v4006, %v4005
    %v4044 = vpack.c.b16 %v4008, %v4007
    %v4045 = vpack.c.b16 %v4010, %v4009
    %v4046 = vpack.c.b16 %v4012, %v4011
    %v4047 = vpack.c.b16 %v4014, %v4013
    %v4048 = vpack.c.b16 %v4016, %v4015
    %4081 = vmatpush.bf16.msra.mxu0 %v4024
    %4082 = vmatpush.bf16.msra.mxu0 %v4023
    %4083 = vmatpush.bf16.msra.mxu0 %v4022
    %4084 = vmatpush.bf16.msra.mxu0 %v4021
    %4085 = vmatpush.bf16.msra.mxu0 %v4020
    %4086 = vmatpush.bf16.msra.mxu0 %v4019
    %4087 = vmatpush.bf16.msra.mxu0 %v4018
    %4088 = vmatpush.bf16.msra.mxu0 %v4017
    %4089 = vmatmul.bf16.gmra.mxu0 %v3505
    %v4090 = vpop.f32.mrf.mxu0
    %v4091 = vadd.f32 %v3885, %v4090
    %v4092 = vpop.f32.mrf.mxu0
    %v4093 = vadd.f32 %v3887, %v4092
    %4094 = vdwg.mxu0
    %4095 = vmatpush.bf16.msra.mxu0 %v4032
    %4096 = vmatpush.bf16.msra.mxu0 %v4031
    %4097 = vmatpush.bf16.msra.mxu0 %v4030
    %4098 = vmatpush.bf16.msra.mxu0 %v4029
    %4099 = vmatpush.bf16.msra.mxu0 %v4028
    %4100 = vmatpush.bf16.msra.mxu0 %v4027
    %4101 = vmatpush.bf16.msra.mxu0 %v4026
    %4102 = vmatpush.bf16.msra.mxu0 %v4025
    %4103 = vmatmul.bf16.gmra.mxu0 %v3506
    %v4104 = vpop.f32.mrf.mxu0
    %v4105 = vadd.f32 %v4091, %v4104
    %v4106 = vpop.f32.mrf.mxu0
    %v4107 = vadd.f32 %v4093, %v4106
    %4108 = vdwg.mxu0
    %4109 = vmatpush.bf16.msra.mxu0 %v4040
    %4110 = vmatpush.bf16.msra.mxu0 %v4039
    %4111 = vmatpush.bf16.msra.mxu0 %v4038
    %4112 = vmatpush.bf16.msra.mxu0 %v4037
    %4113 = vmatpush.bf16.msra.mxu0 %v4036
    %4114 = vmatpush.bf16.msra.mxu0 %v4035
    %4115 = vmatpush.bf16.msra.mxu0 %v4034
    %4116 = vmatpush.bf16.msra.mxu0 %v4033
    %4117 = vmatmul.bf16.gmra.mxu0 %v3507
    %v4118 = vpop.f32.mrf.mxu0
    %v4119 = vadd.f32 %v4105, %v4118
    %v4120 = vpop.f32.mrf.mxu0
    %v4121 = vadd.f32 %v4107, %v4120
    %4122 = vdwg.mxu0
    %4123 = vmatpush.bf16.msra.mxu0 %v4048
    %4124 = vmatpush.bf16.msra.mxu0 %v4047
    %4125 = vmatpush.bf16.msra.mxu0 %v4046
    %4126 = vmatpush.bf16.msra.mxu0 %v4045
    %4127 = vmatpush.bf16.msra.mxu0 %v4044
    %4128 = vmatpush.bf16.msra.mxu0 %v4043
    %4129 = vmatpush.bf16.msra.mxu0 %v4042
    %4130 = vmatpush.bf16.msra.mxu0 %v4041
    %4131 = vmatmul.bf16.gmra.mxu0 %v3508
    %v4132 = vpop.f32.mrf.mxu0
    %v4133 = vadd.f32 %v4119, %v4132
    %v4134 = vpop.f32.mrf.mxu0
    %v4135 = vadd.f32 %v4121, %v4134
    %4136 = vdwg.mxu0
    %v4137 = vld [vmem:[%s15] sm:$0x1]
    %v4139 = vperm.slane %v4137, 0
    %v4141 = vadd.f32 %v4133, %v4139
    %v4142 = vadd.f32 %v4135, %v4139
    %4143 = vst [vmem:[%s16] sm:$0xff] %v4141
    %4144 = vst [vmem:[%s16 + $0x8] sm:$0xff] %v4142
    // Predicated region
    $region98: #{lstm_mlp_forward.1} parent=1 // pred_check
      _
    $region99: #{lstm_mlp_forward.1} parent=1 // pred_check_branch
      %4146 = sbr.rel (0) target = $region101
    $region100: #{lstm_mlp_forward.1} parent=1 // pred_region
      _
    $region101: #{lstm_mlp_forward.1} parent=1 // pred_fallthru
      _
    // Predicated region
    $region102: #{lstm_mlp_forward.1} parent=1 // pred_check
      _
    $region103: #{lstm_mlp_forward.1} parent=1 // pred_check_branch
      %4148 = sbr.rel (0) target = $region105
    $region104: #{lstm_mlp_forward.1} parent=1 // pred_region
      %4150 = vsyncadd [#allocation7], 0
      %s4152 = sshll.u32 [#allocation16], 4
      %s4153 = int_to_ptr.vmem [resolvable:$true] %s4152
      %s4154 = sshll.u32 %s17, 4
      %s4155 = int_to_ptr.hbm [resolvable:$true] %s4154
      %4157 = dma.vmem_to_hbm [thread:$0]  %s4153, 32, %s4155, [#allocation7]
    $region105: #{lstm_mlp_forward.1} parent=1 // pred_fallthru
      _
    // Predicated region
    $region106: #{lstm_mlp_forward.1} parent=1 // pred_check
      _
    $region107: #{lstm_mlp_forward.1} parent=1 // pred_check_branch
      %4159 = sbr.rel (0) target = $region109
    $region108: #{lstm_mlp_forward.1} parent=1 // pred_region
      %4161 = vsyncadd [#allocation18], 0
      %s4163 = sshll.u32 [#allocation17], 4
      %s4164 = int_to_ptr.vmem [resolvable:$true] %s4163
      %s4165 = sshll.u32 %s18, 4
      %s4166 = int_to_ptr.hbm [resolvable:$true] %s4165
      %4168 = dma.vmem_to_hbm [thread:$0]  %s4164, 32, %s4166, [#allocation18]
    $region109: #{lstm_mlp_forward.1} parent=1 // pred_fallthru
      _
    // Predicated region
    $region110: #{lstm_mlp_forward.1} parent=1 // pred_check
      _
    $region111: #{lstm_mlp_forward.1} parent=1 // pred_check_branch
      %4170 = sbr.rel (0) target = $region113
    $region112: #{lstm_mlp_forward.1} parent=1 // pred_region
      _
    $region113: #{lstm_mlp_forward.1} parent=1 // pred_fallthru
      _
    // Predicated region
    $region114: #{lstm_mlp_forward.1} parent=1 // pred_check
      _
    $region115: #{lstm_mlp_forward.1} parent=1 // pred_check_branch
      %4172 = sbr.rel (0) target = $region117
    $region116: #{lstm_mlp_forward.1} parent=1 // pred_region
      %4174 = dma.done [#allocation7], 32
    $region117: #{lstm_mlp_forward.1} parent=1 // pred_fallthru
      _
    // Predicated region
    $region118: #{lstm_mlp_forward.1} parent=1 // pred_check
      _
    $region119: #{lstm_mlp_forward.1} parent=1 // pred_check_branch
      %4176 = sbr.rel (0) target = $region121
    $region120: #{lstm_mlp_forward.1} parent=1 // pred_region
      %4178 = dma.done [#allocation18], 32
    $region121: #{lstm_mlp_forward.1} parent=1 // pred_fallthru
      _
    %4179 = vsyncpa [#allocation6], 1
    %4180 = vsyncpa [#allocation9], 1
    %4181 = vsyncpa [#allocation12], 1
    %4182 = vsyncpa [#allocation15], 1
    %4183 = vsyncpa [#allocation7], 1
    %4184 = vsyncpa [#allocation18], 1

</llo_original>
